<compile_context>
chip_gen: v6e
topology: v6e:2x2x1
jax: 0.10.0
libtpu: 0.0.40
codegen_flags: <defaults>
</compile_context>

<pallas_src>
import functools

import jax
import jax.numpy as jnp
from jax.experimental import pallas as pl
from jax.experimental.pallas import tpu as pltpu


def _round_up(x, m):
    return (x + m - 1) // m * m


def _sigmoid(x):
    # exp and the approx reciprocal both run on the EUP slot, keeping the
    # divide off the VPU. Accuracy is well within the bf16-level tolerance.
    return pl.reciprocal(1.0 + jnp.exp(-x), approx=True)


def autoencoder_kernel(x_ref, w1_ref, b1_ref, w2_ref, b2_ref, o_ref, *scratch,
                       nq):
    cdt = w1_ref.dtype          # bf16 storage/compute dtype for MXU operands
    nq_p = w1_ref.shape[0]      # 128-aligned feature dim

    if scratch:                 # nq < nq_p: zero-pad the feature dim in VMEM
        xpad_ref, = scratch
        # Re-zero the pad region every step (cheap VMEM stores) instead of a
        # program_id==0 init -- each TensorCore owns its own grid slice.
        xpad_ref[...] = jnp.zeros_like(xpad_ref)
        xpad_ref[:, :nq] = x_ref[...].astype(cdt)
        xb = xpad_ref[...]
    else:
        xb = x_ref[...].astype(cdt)

    # Layer g: inner = x @ W_g^T + b_g   (bf16 operands, f32 MXU accumulation)
    inner = jnp.dot(xb, w1_ref[...], preferred_element_type=jnp.float32)
    sinner = _sigmoid(inner + b1_ref[...])                  # (tb, k_p) f32

    # Layer h: outer = sigmoid(inner) @ W_h^T + b_h
    outer = jnp.dot(sinner.astype(cdt), w2_ref[...],
                    preferred_element_type=jnp.float32)
    souter = _sigmoid(outer + b2_ref[...])                  # (tb, nq_p) f32

    if nq != nq_p:
        souter = souter[:, :nq]          # drop padded output columns here,
    o_ref[...] = souter.astype(o_ref.dtype)  # not in a second HBM pass


def prepare_params(w_g, b_g, w_h, b_h, *, param_dtype=jnp.bfloat16):
    """One-time canonicalization of PyTorch-layout parameters.

    w_g: (k, nq)  -> w1 = W_g^T  zero-padded to (nq_p, k_p), param_dtype
    b_g: (k,)     -> b1          zero-padded to (1, k_p),    float32
    w_h: (nq, k)  -> w2 = W_h^T  zero-padded to (k_p, nq_p), param_dtype
    b_h: (nq,)    -> b2          zero-padded to (1, nq_p),   float32

    Padding note: padded b_g entries are 0 -> sigmoid(0)=0.5, but the matching
    padded ROWS of W_h^T are 0, so padded hidden units contribute nothing.
    Padded output columns are sliced off inside the kernel.
    """
    k, nq = w_g.shape
    k_p = _round_up(k, 128)
    nq_p = _round_up(nq, 128)

    w1 = jnp.zeros((nq_p, k_p), param_dtype).at[:nq, :k].set(
        w_g.T.astype(param_dtype))
    b1 = jnp.zeros((1, k_p), jnp.float32).at[0, :k].set(b_g.astype(jnp.float32))
    w2 = jnp.zeros((k_p, nq_p), param_dtype).at[:k, :nq].set(
        w_h.T.astype(param_dtype))
    b2 = jnp.zeros((1, nq_p), jnp.float32).at[0, :nq].set(b_h.astype(jnp.float32))
    return w1, b1, w2, b2


def autoencoder_forward(x, w1, b1, w2, b2, *, tb_max=512,
                        out_dtype=jnp.bfloat16):
    """x: (B, num_question) float (any float dtype; cast to bf16 in-kernel).
    Params from prepare_params (pre-transposed, pre-padded).
    Returns (B, num_question) in out_dtype (pass jnp.float32 for f32 output)."""
    B, nq = x.shape
    nq_p, k_p = w1.shape
    assert w2.shape == (k_p, nq_p) and b1.shape == (1, k_p) and b2.shape == (1, nq_p)
    assert nq <= nq_p

    compute_dtype = w1.dtype

    # Batch tile: <= tb_max rows, 8-aligned, step count even when > 1 so v7x's
    # 2 TensorCores get equal work. The (< tb) boundary overhang is handled by
    # Pallas block clamping (rows are independent), not host-side padding.
    steps = max(1, -(-B // tb_max))
    if steps > 1 and steps % 2:
        steps += 1
    tb = _round_up(-(-B // steps), 8)
    grid = (pl.cdiv(B, tb),)

    # VMEM budget: double-buffered x/out tiles + resident single-buffered
    # weights + feature-pad scratch. Only raise the scoped-VMEM limit above
    # v5e's 16 MiB default when needed; never request more than 48 MiB
    # (headroom under v7x's 64 MiB physical VMEM -- shrink tb_max instead).
    w_itemsize = jnp.dtype(compute_dtype).itemsize
    est = (2 * tb * nq * jnp.dtype(x.dtype).itemsize       # x tile (double-buffered)
           + 2 * tb * nq * jnp.dtype(out_dtype).itemsize   # out tile
           + 2 * nq_p * k_p * w_itemsize                   # resident weights
           + (k_p + nq_p) * 4                              # biases
           + tb * nq_p * w_itemsize                        # pad scratch
           + (1 << 20))                                    # slack
    vmem_limit = None
    if est > 16 * 1024 * 1024:
        vmem_limit = min(int(est * 1.25), 48 * 1024 * 1024)

    invariant = dict(pipeline_mode=pl.Buffered(1))   # weights: no double-buffer

    scratch_shapes = []
    if nq != nq_p:
        scratch_shapes.append(pltpu.VMEM((tb, nq_p), compute_dtype))

    kernel = functools.partial(autoencoder_kernel, nq=nq)

    return pl.pallas_call(
        kernel,
        out_shape=jax.ShapeDtypeStruct((B, nq), out_dtype),
        grid_spec=pltpu.PrefetchScalarGridSpec(
            num_scalar_prefetch=0,
            grid=grid,
            in_specs=[
                pl.BlockSpec((tb, nq), lambda i: (i, 0)),                  # x tile
                pl.BlockSpec((nq_p, k_p), lambda i: (0, 0), **invariant),  # W_g^T
                pl.BlockSpec((1, k_p), lambda i: (0, 0), **invariant),     # b_g
                pl.BlockSpec((k_p, nq_p), lambda i: (0, 0), **invariant),  # W_h^T
                pl.BlockSpec((1, nq_p), lambda i: (0, 0), **invariant),    # b_h
            ],
            out_specs=pl.BlockSpec((tb, nq), lambda i: (i, 0)),
            scratch_shapes=scratch_shapes,
        ),
        compiler_params=pltpu.CompilerParams(
            dimension_semantics=("parallel",),  # batch steps shard across TCs (v7x)
            vmem_limit_bytes=vmem_limit,
        ),
    )(x, w1, b1, w2, b2)


def init_params(key, num_question, k):
    """Deterministic init mimicking nn.Linear default (uniform +-1/sqrt(fan_in))."""
    k1, k2, k3, k4 = jax.random.split(key, 4)
    bound_g = 1.0 / jnp.sqrt(num_question)
    bound_h = 1.0 / jnp.sqrt(k)
    w_g = jax.random.uniform(k1, (k, num_question), jnp.float32, -bound_g, bound_g)
    b_g = jax.random.uniform(k2, (k,), jnp.float32, -bound_g, bound_g)
    w_h = jax.random.uniform(k3, (num_question, k), jnp.float32, -bound_h, bound_h)
    b_h = jax.random.uniform(k4, (num_question,), jnp.float32, -bound_h, bound_h)
    return w_g, b_g, w_h, b_h


if __name__ == "__main__":
    key = jax.random.PRNGKey(0)
    num_question = 300   # not 128-aligned: exercises in-kernel feature padding
    k = 100              # PyTorch module default; padded to 128 in prepare_params
    batch = 600          # -> tb=304, grid=(2,): even 2-TC split, 8-row overhang

    kx, kparam = jax.random.split(key)
    x = jax.random.uniform(kx, (batch, num_question), jnp.float32)
    w_g, b_g, w_h, b_h = init_params(kparam, num_question, k)

    # Canonicalize parameters ONCE (outside the per-step forward).
    w1, b1, w2, b2 = prepare_params(w_g, b_g, w_h, b_h)

    out = autoencoder_forward(x, w1, b1, w2, b2)
    out = jax.block_until_ready(out)

    # Reference (f32, PyTorch-layout math). bf16 params/activations/output +
    # approx-reciprocal sigmoid -> relaxed tolerance.
    ref = jax.nn.sigmoid(jax.nn.sigmoid(x @ w_g.T + b_g) @ w_h.T + b_h)
    assert out.shape == (batch, num_question)
    assert out.dtype == jnp.bfloat16
    max_err = float(jnp.max(jnp.abs(out.astype(jnp.float32) - ref)))
    assert max_err < 2.5e-2, f"max_err={max_err}"

    # TODO(synk): get_weight_norm() is a host-side scalar reduction over the
    # parameters, not part of the forward pass; compute it with jnp directly.
    print("KERNEL_OK")
</pallas_src>

<mosaic_0001>
module attributes {stable_mosaic.version = 11 : i64} {
  func.func @autoencoder_kernel(%arg0: i32, %arg1: memref<304x300xf32, #tpu.memory_space<vmem>>, %arg2: memref<384x128xbf16, #tpu.memory_space<vmem>>, %arg3: memref<1x128xf32, #tpu.memory_space<vmem>>, %arg4: memref<128x384xbf16, #tpu.memory_space<vmem>>, %arg5: memref<1x384xf32, #tpu.memory_space<vmem>>, %arg6: memref<304x300xbf16, #tpu.memory_space<vmem>>, %arg7: memref<304x384xbf16, #tpu.memory_space<vmem>>) attributes {dimension_semantics = [#tpu.dimension_semantics<parallel>], iteration_bounds = array<i64: 2>, scalar_prefetch = 0 : i64, scratch_operands = 1 : i64, tpu.core_type = #tpu.core_type<tc>, window_params = [{transform_indices = @transform_0, window_bounds = array<i64: 304, 300>}, {pipeline_mode = #tpu.pipeline_mode<synchronous>, transform_indices = @transform_1, window_bounds = array<i64: 384, 128>}, {pipeline_mode = #tpu.pipeline_mode<synchronous>, transform_indices = @transform_2, window_bounds = array<i64: 1, 128>}, {pipeline_mode = #tpu.pipeline_mode<synchronous>, transform_indices = @transform_3, window_bounds = array<i64: 128, 384>}, {pipeline_mode = #tpu.pipeline_mode<synchronous>, transform_indices = @transform_4, window_bounds = array<i64: 1, 384>}, {transform_indices = @transform_5, window_bounds = array<i64: 304, 300>}]} {
    %cst = arith.constant 0.000000e+00 : bf16
    %0 = vector.broadcast %cst : bf16 to vector<304x384xbf16>
    %c0 = arith.constant 0 : index
    %c0_0 = arith.constant 0 : index
    %1 = vector.load %arg7[%c0, %c0_0] : memref<304x384xbf16, #tpu.memory_space<vmem>>, vector<304x384xbf16>
    tpu.vector_store %arg7[%c0, %c0_0], %0 {strides = array<i32>} : memref<304x384xbf16, #tpu.memory_space<vmem>>, vector<304x384xbf16>,
    %c0_1 = arith.constant 0 : index
    %c0_2 = arith.constant 0 : index
    %2 = vector.load %arg1[%c0_1, %c0_2] : memref<304x300xf32, #tpu.memory_space<vmem>>, vector<304x300xf32>
    %3 = arith.truncf %2 : vector<304x300xf32> to vector<304x300xbf16>
    %c0_3 = arith.constant 0 : index
    %c0_4 = arith.constant 0 : index
    %4 = vector.load %arg7[%c0_3, %c0_4] : memref<304x384xbf16, #tpu.memory_space<vmem>>, vector<304x300xbf16>
    tpu.vector_store %arg7[%c0_3, %c0_4], %3 {strides = array<i32>} : memref<304x384xbf16, #tpu.memory_space<vmem>>, vector<304x300xbf16>,
    %c0_5 = arith.constant 0 : index
    %c0_6 = arith.constant 0 : index
    %5 = vector.load %arg7[%c0_5, %c0_6] : memref<304x384xbf16, #tpu.memory_space<vmem>>, vector<304x384xbf16>
    %c0_7 = arith.constant 0 : index
    %c0_8 = arith.constant 0 : index
    %6 = vector.load %arg2[%c0_7, %c0_8] : memref<384x128xbf16, #tpu.memory_space<vmem>>, vector<384x128xbf16>
    %cst_9 = arith.constant dense<0.000000e+00> : vector<304x128xf32>
    %7 = tpu.matmul %5, %6, %cst_9 {dimension_numbers = #tpu.dot_dimension_numbers<[1], [0], [0], [1], [0, 0, 1, 1], [], []>} : vector<304x384xbf16>, vector<384x128xbf16>, vector<304x128xf32> -> vector<304x128xf32>
    %c0_10 = arith.constant 0 : index
    %c0_11 = arith.constant 0 : index
    %8 = vector.load %arg3[%c0_10, %c0_11] : memref<1x128xf32, #tpu.memory_space<vmem>>, vector<1x128xf32>
    %9 = vector.broadcast %8 : vector<1x128xf32> to vector<304x128xf32>
    %10 = arith.addf %7, %9 : vector<304x128xf32>
    %cst_12 = arith.constant 0.000000e+00 : f32
    %11 = vector.broadcast %cst_12 : f32 to vector<304x128xf32>
    %12 = arith.subf %11, %10 : vector<304x128xf32>
    %13 = math.exp %12 : vector<304x128xf32>
    %cst_13 = arith.constant 1.000000e+00 : f32
    %14 = vector.broadcast %cst_13 : f32 to vector<304x128xf32>
    %15 = arith.addf %14, %13 : vector<304x128xf32>
    %16 = tpu.reciprocal %15 {approx = true} : vector<304x128xf32> -> vector<304x128xf32>
    %17 = arith.truncf %16 : vector<304x128xf32> to vector<304x128xbf16>
    %c0_14 = arith.constant 0 : index
    %c0_15 = arith.constant 0 : index
    %18 = vector.load %arg4[%c0_14, %c0_15] : memref<128x384xbf16, #tpu.memory_space<vmem>>, vector<128x384xbf16>
    %cst_16 = arith.constant dense<0.000000e+00> : vector<304x384xf32>
    %19 = tpu.matmul %17, %18, %cst_16 {dimension_numbers = #tpu.dot_dimension_numbers<[1], [0], [0], [1], [0, 0, 1, 1], [], []>} : vector<304x128xbf16>, vector<128x384xbf16>, vector<304x384xf32> -> vector<304x384xf32>
    %c0_17 = arith.constant 0 : index
    %c0_18 = arith.constant 0 : index
    %20 = vector.load %arg5[%c0_17, %c0_18] : memref<1x384xf32, #tpu.memory_space<vmem>>, vector<1x384xf32>
    %21 = vector.broadcast %20 : vector<1x384xf32> to vector<304x384xf32>
    %22 = arith.addf %19, %21 : vector<304x384xf32>
    %cst_19 = arith.constant 0.000000e+00 : f32
    %23 = vector.broadcast %cst_19 : f32 to vector<304x384xf32>
    %24 = arith.subf %23, %22 : vector<304x384xf32>
    %25 = math.exp %24 : vector<304x384xf32>
    %cst_20 = arith.constant 1.000000e+00 : f32
    %26 = vector.broadcast %cst_20 : f32 to vector<304x384xf32>
    %27 = arith.addf %26, %25 : vector<304x384xf32>
    %28 = tpu.reciprocal %27 {approx = true} : vector<304x384xf32> -> vector<304x384xf32>
    %29 = vector.extract_strided_slice %28 {offsets = [0, 0], sizes = [304, 300], strides = [1, 1]} : vector<304x384xf32> to vector<304x300xf32>
    %30 = arith.truncf %29 : vector<304x300xf32> to vector<304x300xbf16>
    %c0_21 = arith.constant 0 : index
    %c0_22 = arith.constant 0 : index
    %31 = vector.load %arg6[%c0_21, %c0_22] : memref<304x300xbf16, #tpu.memory_space<vmem>>, vector<304x300xbf16>
    tpu.vector_store %arg6[%c0_21, %c0_22], %30 {strides = array<i32>} : memref<304x300xbf16, #tpu.memory_space<vmem>>, vector<304x300xbf16>,
    return
  }
  func.func @transform_0(%arg0: i32) -> (i32, i32) {
    %c0_i32 = arith.constant 0 : i32
    %c0_i32_0 = arith.constant 0 : i32
    return %arg0, %c0_i32 : i32, i32
  }
  func.func @transform_1(%arg0: i32) -> (i32, i32) {
    %c0_i32 = arith.constant 0 : i32
    %c0_i32_0 = arith.constant 0 : i32
    %c0_i32_1 = arith.constant 0 : i32
    return %c0_i32, %c0_i32_0 : i32, i32
  }
  func.func @transform_2(%arg0: i32) -> (i32, i32) {
    %c0_i32 = arith.constant 0 : i32
    %c0_i32_0 = arith.constant 0 : i32
    %c0_i32_1 = arith.constant 0 : i32
    return %c0_i32, %c0_i32_0 : i32, i32
  }
  func.func @transform_3(%arg0: i32) -> (i32, i32) {
    %c0_i32 = arith.constant 0 : i32
    %c0_i32_0 = arith.constant 0 : i32
    %c0_i32_1 = arith.constant 0 : i32
    return %c0_i32, %c0_i32_0 : i32, i32
  }
  func.func @transform_4(%arg0: i32) -> (i32, i32) {
    %c0_i32 = arith.constant 0 : i32
    %c0_i32_0 = arith.constant 0 : i32
    %c0_i32_1 = arith.constant 0 : i32
    return %c0_i32, %c0_i32_0 : i32, i32
  }
  func.func @transform_5(%arg0: i32) -> (i32, i32) {
    %c0_i32 = arith.constant 0 : i32
    %c0_i32_0 = arith.constant 0 : i32
    return %arg0, %c0_i32 : i32, i32
  }
}

</mosaic_0001>

<llo_original>
// kernel: tpu_custom_call.1
$region0: #{tpu_custom_call.1}
  #allocation0 [shape = 'u32[]', space=smem, size = 0x4, offset = 0x4, fixed_abs, tag = 'smem constant byte address 0x4 - core index']
  #allocation1 [shape = 'u32[144,128]{1,0:T(1,128)}', space=vmem, size = 0x12000, scoped, tag = 'internal scratch']
  #allocation2 [shape = 'bf16[304,384]{1,0:T(8,128)(2,1)}', space=vmem, size = 0x39000, scoped, tag = 'scratch operand']
  %s0 = inlined_call_operand.vmem [shape: f32[600,300], index: 0, kind: input, shape index: {}]
  %s1 = inlined_call_operand.vmem [shape: bf16[384,128], index: 1, kind: input, shape index: {}]
  %s2 = inlined_call_operand.vmem [shape: f32[1,128], index: 2, kind: input, shape index: {}]
  %s3 = inlined_call_operand.vmem [shape: bf16[128,384], index: 3, kind: input, shape index: {}]
  %s4 = inlined_call_operand.vmem [shape: f32[1,384], index: 4, kind: input, shape index: {}]
  %s5 = inlined_call_operand.vmem [shape: bf16[600,300], index: 5, kind: output, shape index: {}]
  %s6 = sld [smem:[#allocation0]]
  $region89: #{tpu_custom_call.1} parent=0
    _
  %s8 = ssub.s32 1, %s6
  %s9 = scalar_select 0, %s8, %s6
  $region1: #{tpu_custom_call.1} parent=0
    #allocation3 [shape = 'u8[466944]{0}', space=vmem, size = 0x72000, scoped, tag = 'output window, operand 0']
    loop: start=0, step=1, limit=4
    $region2: #{tpu_custom_call.1} parent=1 // loop_pre_header
      _
    $region3: #{tpu_custom_call.1} parent=1 // loop_header
      %s11 = sphi 0, %s15
      %p12 = scmp.ge.s32.totalorder %s11, 4
      %s21 = sphi 0, %s23
      %s24 = sphi 0, %s21
      %s25 = sphi 0, %s24
      %s41 = sphi 0, %s25
      %s45 = sphi 0, %s45
      %s47 = sphi 0, %s45
      %s48 = sphi 0, %s47
      %s62 = sphi 0, %s48
      %s66 = sphi 0, %s66
      %s68 = sphi 0, %s66
      %s69 = sphi 0, %s68
      %s83 = sphi 0, %s69
      %s87 = sphi 0, %s87
      %s89 = sphi 0, %s87
      %s90 = sphi 0, %s89
      %s104 = sphi 0, %s90
      %s108 = sphi 0, %s108
      %s110 = sphi 0, %s108
      %s111 = sphi 0, %s110
      %s125 = sphi 0, %s111
      %s131 = sphi 0, %s133
      %s134 = sphi 0, %s131
      %s135 = sphi 0, %s134
      %s151 = sphi 0, %s135
    $region4: #{tpu_custom_call.1} parent=1 // loop_header_branch
      %14 = sbr.rel (%p12) target = $region8
    $region5: #{tpu_custom_call.1} parent=1 // loop_body
      %s16 = ssub.s32 %s11, 1
      %s17 = ssub.s32 %s11, 2
      %s18 = sadd.s32 %s11, 1
      %s19 = ssub.s32 %s11, %s18
      %p20 = scmp.eq.s32.totalorder %s19, 0
      %s22 = sadd.s32 %s21, 1
      %s23 = scalar_select %p20, %s21, %s22
      %p26 = pneg %p20
      %p27 = scmp.eq.s32.totalorder %s11, 1
      %p28 = por %p26, %p27
      %p29 = scmp.ne.s32.totalorder %s21, %s24
      %p30 = scmp.eq.s32.totalorder %s11, 0
      %p31 = por %p29, %p30
      %p32 = scmp.ne.s32.totalorder %s21, %s24
      %p33 = scmp.eq.s32.totalorder %s16, 1
      %p34 = por %p32, %p33
      %p35 = scmp.ne.s32.totalorder %s24, %s25
      %p36 = scmp.eq.s32.totalorder %s16, 0
      %p37 = por %p35, %p36
      %p38 = scmp.ne.s32.totalorder %s24, %s25
      %p39 = scmp.eq.s32.totalorder %s17, 1
      %p40 = por %p38, %p39
      %p42 = scmp.ne.s32.totalorder %s25, %s41
      %p43 = scmp.eq.s32.totalorder %s17, 0
      %p44 = por %p42, %p43
      %s46 = sadd.s32 %s45, 1
      %p49 = scmp.eq.s32.totalorder %s11, 1
      %p50 = scmp.ne.s32.totalorder %s45, %s47
      %p51 = scmp.eq.s32.totalorder %s11, 0
      %p52 = por %p50, %p51
      %p53 = scmp.ne.s32.totalorder %s45, %s47
      %p54 = scmp.eq.s32.totalorder %s16, 1
      %p55 = por %p53, %p54
      %p56 = scmp.ne.s32.totalorder %s47, %s48
      %p57 = scmp.eq.s32.totalorder %s16, 0
      %p58 = por %p56, %p57
      %p59 = scmp.ne.s32.totalorder %s47, %s48
      %p60 = scmp.eq.s32.totalorder %s17, 1
      %p61 = por %p59, %p60
      %p63 = scmp.ne.s32.totalorder %s48, %s62
      %p64 = scmp.eq.s32.totalorder %s17, 0
      %p65 = por %p63, %p64
      %s67 = sadd.s32 %s66, 1
      %p70 = scmp.eq.s32.totalorder %s11, 1
      %p71 = scmp.ne.s32.totalorder %s66, %s68
      %p72 = scmp.eq.s32.totalorder %s11, 0
      %p73 = por %p71, %p72
      %p74 = scmp.ne.s32.totalorder %s66, %s68
      %p75 = scmp.eq.s32.totalorder %s16, 1
      %p76 = por %p74, %p75
      %p77 = scmp.ne.s32.totalorder %s68, %s69
      %p78 = scmp.eq.s32.totalorder %s16, 0
      %p79 = por %p77, %p78
      %p80 = scmp.ne.s32.totalorder %s68, %s69
      %p81 = scmp.eq.s32.totalorder %s17, 1
      %p82 = por %p80, %p81
      %p84 = scmp.ne.s32.totalorder %s69, %s83
      %p85 = scmp.eq.s32.totalorder %s17, 0
      %p86 = por %p84, %p85
      %s88 = sadd.s32 %s87, 1
      %p91 = scmp.eq.s32.totalorder %s11, 1
      %p92 = scmp.ne.s32.totalorder %s87, %s89
      %p93 = scmp.eq.s32.totalorder %s11, 0
      %p94 = por %p92, %p93
      %p95 = scmp.ne.s32.totalorder %s87, %s89
      %p96 = scmp.eq.s32.totalorder %s16, 1
      %p97 = por %p95, %p96
      %p98 = scmp.ne.s32.totalorder %s89, %s90
      %p99 = scmp.eq.s32.totalorder %s16, 0
      %p100 = por %p98, %p99
      %p101 = scmp.ne.s32.totalorder %s89, %s90
      %p102 = scmp.eq.s32.totalorder %s17, 1
      %p103 = por %p101, %p102
      %p105 = scmp.ne.s32.totalorder %s90, %s104
      %p106 = scmp.eq.s32.totalorder %s17, 0
      %p107 = por %p105, %p106
      %s109 = sadd.s32 %s108, 1
      %p112 = scmp.eq.s32.totalorder %s11, 1
      %p113 = scmp.ne.s32.totalorder %s108, %s110
      %p114 = scmp.eq.s32.totalorder %s11, 0
      %p115 = por %p113, %p114
      %p116 = scmp.ne.s32.totalorder %s108, %s110
      %p117 = scmp.eq.s32.totalorder %s16, 1
      %p118 = por %p116, %p117
      %p119 = scmp.ne.s32.totalorder %s110, %s111
      %p120 = scmp.eq.s32.totalorder %s16, 0
      %p121 = por %p119, %p120
      %p122 = scmp.ne.s32.totalorder %s110, %s111
      %p123 = scmp.eq.s32.totalorder %s17, 1
      %p124 = por %p122, %p123
      %p126 = scmp.ne.s32.totalorder %s111, %s125
      %p127 = scmp.eq.s32.totalorder %s17, 0
      %p128 = por %p126, %p127
      %s129 = ssub.s32 %s11, %s18
      %p130 = scmp.eq.s32.totalorder %s129, 0
      %s132 = sadd.s32 %s131, 1
      %s133 = scalar_select %p130, %s131, %s132
      %p136 = pneg %p130
      %p137 = scmp.eq.s32.totalorder %s11, 1
      %p138 = por %p136, %p137
      %p139 = scmp.ne.s32.totalorder %s131, %s134
      %p140 = scmp.eq.s32.totalorder %s11, 0
      %p141 = por %p139, %p140
      %p142 = scmp.ne.s32.totalorder %s131, %s134
      %p143 = scmp.eq.s32.totalorder %s16, 1
      %p144 = por %p142, %p143
      %p145 = scmp.ne.s32.totalorder %s134, %s135
      %p146 = scmp.eq.s32.totalorder %s16, 0
      %p147 = por %p145, %p146
      %p148 = scmp.ne.s32.totalorder %s134, %s135
      %p149 = scmp.eq.s32.totalorder %s17, 1
      %p150 = por %p148, %p149
      %p152 = scmp.ne.s32.totalorder %s135, %s151
      %p153 = scmp.eq.s32.totalorder %s17, 0
      %p154 = por %p152, %p153
      %p155 = scmp.le.s32.totalorder 1, %s11
      %p156 = scmp.lt.s32.totalorder %s11, 3
      %p157 = pnand %p155, %p156
      %p158 = pneg %p157
      // Predicated region
      $region9: #{tpu_custom_call.1} parent=5 // pred_check
        _
      $region10: #{tpu_custom_call.1} parent=5 // pred_check_branch
        %160 = sbr.rel (%p157) target = $region12
      $region11: #{tpu_custom_call.1} parent=5 // pred_region
        %s161 = ssub.s32 %s11, 1
        // Predicated region
        $region13: #{tpu_custom_call.1} parent=11 // pred_check
          %p162 = pneg %p58
        $region14: #{tpu_custom_call.1} parent=11 // pred_check_branch
          %164 = sbr.rel (%p162) target = $region16
        $region15: #{tpu_custom_call.1} parent=11 // pred_region
          _
        $region16: #{tpu_custom_call.1} parent=11 // pred_fallthru
          _
        // Predicated region
        $region17: #{tpu_custom_call.1} parent=11 // pred_check
          %p165 = pneg %p79
        $region18: #{tpu_custom_call.1} parent=11 // pred_check_branch
          %167 = sbr.rel (%p165) target = $region20
        $region19: #{tpu_custom_call.1} parent=11 // pred_region
          _
        $region20: #{tpu_custom_call.1} parent=11 // pred_fallthru
          _
        // Predicated region
        $region21: #{tpu_custom_call.1} parent=11 // pred_check
          %p168 = pneg %p100
        $region22: #{tpu_custom_call.1} parent=11 // pred_check_branch
          %170 = sbr.rel (%p168) target = $region24
        $region23: #{tpu_custom_call.1} parent=11 // pred_region
          _
        $region24: #{tpu_custom_call.1} parent=11 // pred_fallthru
          _
        // Predicated region
        $region25: #{tpu_custom_call.1} parent=11 // pred_check
          %p171 = pneg %p121
        $region26: #{tpu_custom_call.1} parent=11 // pred_check_branch
          %173 = sbr.rel (%p171) target = $region28
        $region27: #{tpu_custom_call.1} parent=11 // pred_region
          _
        $region28: #{tpu_custom_call.1} parent=11 // pred_fallthru
          _
      $region12: #{tpu_custom_call.1} parent=5 // pred_fallthru
        _
      %p174 = scmp.lt.s32.totalorder %s11, 2
      // Predicated region
      $region29: #{tpu_custom_call.1} parent=5 // pred_check
        %p175 = pneg %p174
      $region30: #{tpu_custom_call.1} parent=5 // pred_check_branch
        %177 = sbr.rel (%p175) target = $region32
      $region31: #{tpu_custom_call.1} parent=5 // pred_region
        // Predicated region
        $region33: #{tpu_custom_call.1} parent=31 // pred_check
          %p178 = pneg %p31
        $region34: #{tpu_custom_call.1} parent=31 // pred_check_branch
          %180 = sbr.rel (%p178) target = $region36
        $region35: #{tpu_custom_call.1} parent=31 // pred_region
          %s181 = smul.u32 38, %s11
          %s182 = ssub.s32 75, %s181
          %p183 = scmp.lt.s32.totalorder %s182, 38
          %s184 = scalar_select %p183, %s182, 38
          %s185 = smul.u32 128, %s184
          %s186 = smul.u32 %s185, 3
          %p187 = scmp.lt.s32.totalorder %s181, 74
          %s188 = scalar_select %p187, %s181, 74
          %s189 = smul.addr %s188, 3
          %s190 = smul.addr %s189, 8
          %s191 = scalar_lea.vmem %s0, %s190
          %s192 = smul.u32 38, %s11
          %s193 = ssub.s32 75, %s192
          %p194 = scmp.lt.s32.totalorder %s193, 38
          %s195 = scalar_select %p194, %s193, 38
          %s196 = smul.u32 128, %s195
          %s197 = smul.u32 %s196, 3
        $region36: #{tpu_custom_call.1} parent=31 // pred_fallthru
          _
      $region32: #{tpu_custom_call.1} parent=5 // pred_fallthru
        _
      %p198 = scmp.le.s32.totalorder 1, %s11
      %p199 = scmp.lt.s32.totalorder %s11, 3
      %p200 = pnand %p198, %p199
      %p201 = pneg %p200
      // Predicated region
      $region37: #{tpu_custom_call.1} parent=5 // pred_check
        _
      $region38: #{tpu_custom_call.1} parent=5 // pred_check_branch
        %203 = sbr.rel (%p200) target = $region40
      $region39: #{tpu_custom_call.1} parent=5 // pred_region
        %s204 = ssub.s32 %s11, 1
        %s205 = smul.u32 38, %s16
        %s206 = ssub.s32 75, %s205
        %p207 = scmp.lt.s32.totalorder %s206, 38
        %s208 = scalar_select %p207, %s206, 38
        %s209 = smul.u32 128, %s208
        %s210 = smul.u32 %s209, 3
        %p211 = scmp.lt.s32.totalorder %s205, 74
        %s212 = scalar_select %p211, %s205, 74
        %s213 = smul.addr %s212, 3
        %s214 = smul.addr %s213, 8
        %s215 = scalar_lea.vmem %s0, %s214
        %p216 = pneg %p37
        %p217 = pneg %p34
        %p218 = pneg %p58
        %p219 = pneg %p55
        %p220 = pneg %p79
        %p221 = pneg %p76
        %p222 = pneg %p100
        %p223 = pneg %p97
        %p224 = pneg %p121
        %p225 = pneg %p118
        %p226 = pneg %p147
        %p227 = pneg %p144
        %s228 = sand.u32 %s134, 1
        %s229 = sand.u32 %s134, 1
        %s230 = smul.addr %s229, 456
        %s231 = scalar_lea.vmem [#allocation3], %s230
        %s232 = smul.u32 38, %s16
        %s233 = ssub.s32 75, %s232
        %p234 = scmp.lt.s32.totalorder %s233, 38
        %s235 = scalar_select %p234, %s233, 38
        %s236 = smul.u32 128, %s235
        %s237 = smul.u32 %s236, 3
        %p238 = scmp.lt.s32.totalorder %s232, 74
        %s239 = scalar_select %p238, %s232, 74
        %s240 = smul.addr %s239, 3
        %s241 = smul.addr %s240, 8
        %s242 = scalar_lea.vmem %s0, %s241
        %s243 = smul.u32 38, %s16
        %s244 = ssub.s32 75, %s243
        %p245 = scmp.lt.s32.totalorder %s244, 38
        %s246 = scalar_select %p245, %s244, 38
        %s247 = smul.u32 128, %s246
        %s248 = smul.u32 %s247, 3
        %s249 = smul.u32 38, %s16
        %s250 = ssub.s32 75, %s249
        %p251 = scmp.lt.s32.totalorder %s250, 38
        %s252 = scalar_select %p251, %s250, 38
        %s253 = smul.u32 64, %s252
        %s254 = smul.u32 %s253, 3
        %256 = vst [vmem:[#allocation2] sm:$0xff] 0
        %257 = vst [vmem:[#allocation2 + $0x8] sm:$0xf] 0
        %258 = vst [vmem:[#allocation2 + $0xc] sm:$0xff] 0
        %259 = vst [vmem:[#allocation2 + $0x14] sm:$0xf] 0
        %260 = vst [vmem:[#allocation2 + $0x18] sm:$0xff] 0
        %261 = vst [vmem:[#allocation2 + $0x20] sm:$0xf] 0
        %262 = vst [vmem:[#allocation2 + $0x24] sm:$0xff] 0
        %263 = vst [vmem:[#allocation2 + $0x2c] sm:$0xf] 0
        %264 = vst [vmem:[#allocation2 + $0x30] sm:$0xff] 0
        %265 = vst [vmem:[#allocation2 + $0x38] sm:$0xf] 0
        %266 = vst [vmem:[#allocation2 + $0x3c] sm:$0xff] 0
        %267 = vst [vmem:[#allocation2 + $0x44] sm:$0xf] 0
        %268 = vst [vmem:[#allocation2 + $0x48] sm:$0xff] 0
        %269 = vst [vmem:[#allocation2 + $0x50] sm:$0xf] 0
        %270 = vst [vmem:[#allocation2 + $0x54] sm:$0xff] 0
        %271 = vst [vmem:[#allocation2 + $0x5c] sm:$0xf] 0
        %272 = vst [vmem:[#allocation2 + $0x60] sm:$0xff] 0
        %273 = vst [vmem:[#allocation2 + $0x68] sm:$0xf] 0
        %274 = vst [vmem:[#allocation2 + $0x6c] sm:$0xff] 0
        %275 = vst [vmem:[#allocation2 + $0x74] sm:$0xf] 0
        %276 = vst [vmem:[#allocation2 + $0x78] sm:$0xff] 0
        %277 = vst [vmem:[#allocation2 + $0x80] sm:$0xf] 0
        %278 = vst [vmem:[#allocation2 + $0x84] sm:$0xff] 0
        %279 = vst [vmem:[#allocation2 + $0x8c] sm:$0xf] 0
        %280 = vst [vmem:[#allocation2 + $0x90] sm:$0xff] 0
        %281 = vst [vmem:[#allocation2 + $0x98] sm:$0xf] 0
        %282 = vst [vmem:[#allocation2 + $0x9c] sm:$0xff] 0
        %283 = vst [vmem:[#allocation2 + $0xa4] sm:$0xf] 0
        %284 = vst [vmem:[#allocation2 + $0xa8] sm:$0xff] 0
        %285 = vst [vmem:[#allocation2 + $0xb0] sm:$0xf] 0
        %286 = vst [vmem:[#allocation2 + $0xb4] sm:$0xff] 0
        %287 = vst [vmem:[#allocation2 + $0xbc] sm:$0xf] 0
        %288 = vst [vmem:[#allocation2 + $0xc0] sm:$0xff] 0
        %289 = vst [vmem:[#allocation2 + $0xc8] sm:$0xf] 0
        %290 = vst [vmem:[#allocation2 + $0xcc] sm:$0xff] 0
        %291 = vst [vmem:[#allocation2 + $0xd4] sm:$0xf] 0
        %292 = vst [vmem:[#allocation2 + $0xd8] sm:$0xff] 0
        %293 = vst [vmem:[#allocation2 + $0xe0] sm:$0xf] 0
        %294 = vst [vmem:[#allocation2 + $0xe4] sm:$0xff] 0
        %295 = vst [vmem:[#allocation2 + $0xec] sm:$0xf] 0
        %296 = vst [vmem:[#allocation2 + $0xf0] sm:$0xff] 0
        %297 = vst [vmem:[#allocation2 + $0xf8] sm:$0xf] 0
        %298 = vst [vmem:[#allocation2 + $0xfc] sm:$0xff] 0
        %299 = vst [vmem:[#allocation2 + $0x104] sm:$0xf] 0
        %300 = vst [vmem:[#allocation2 + $0x108] sm:$0xff] 0
        %301 = vst [vmem:[#allocation2 + $0x110] sm:$0xf] 0
        %302 = vst [vmem:[#allocation2 + $0x114] sm:$0xff] 0
        %303 = vst [vmem:[#allocation2 + $0x11c] sm:$0xf] 0
        %304 = vst [vmem:[#allocation2 + $0x120] sm:$0xff] 0
        %305 = vst [vmem:[#allocation2 + $0x128] sm:$0xf] 0
        %306 = vst [vmem:[#allocation2 + $0x12c] sm:$0xff] 0
        %307 = vst [vmem:[#allocation2 + $0x134] sm:$0xf] 0
        %308 = vst [vmem:[#allocation2 + $0x138] sm:$0xff] 0
        %309 = vst [vmem:[#allocation2 + $0x140] sm:$0xf] 0
        %310 = vst [vmem:[#allocation2 + $0x144] sm:$0xff] 0
        %311 = vst [vmem:[#allocation2 + $0x14c] sm:$0xf] 0
        %312 = vst [vmem:[#allocation2 + $0x150] sm:$0xff] 0
        %313 = vst [vmem:[#allocation2 + $0x158] sm:$0xf] 0
        %314 = vst [vmem:[#allocation2 + $0x15c] sm:$0xff] 0
        %315 = vst [vmem:[#allocation2 + $0x164] sm:$0xf] 0
        %316 = vst [vmem:[#allocation2 + $0x168] sm:$0xff] 0
        %317 = vst [vmem:[#allocation2 + $0x170] sm:$0xf] 0
        %318 = vst [vmem:[#allocation2 + $0x174] sm:$0xff] 0
        %319 = vst [vmem:[#allocation2 + $0x17c] sm:$0xf] 0
        %320 = vst [vmem:[#allocation2 + $0x180] sm:$0xff] 0
        %321 = vst [vmem:[#allocation2 + $0x188] sm:$0xf] 0
        %322 = vst [vmem:[#allocation2 + $0x18c] sm:$0xff] 0
        %323 = vst [vmem:[#allocation2 + $0x194] sm:$0xf] 0
        %324 = vst [vmem:[#allocation2 + $0x198] sm:$0xff] 0
        %325 = vst [vmem:[#allocation2 + $0x1a0] sm:$0xf] 0
        %326 = vst [vmem:[#allocation2 + $0x1a4] sm:$0xff] 0
        %327 = vst [vmem:[#allocation2 + $0x1ac] sm:$0xf] 0
        %328 = vst [vmem:[#allocation2 + $0x1b0] sm:$0xff] 0
        %329 = vst [vmem:[#allocation2 + $0x1b8] sm:$0xf] 0
        %330 = vst [vmem:[#allocation2 + $0x1bc] sm:$0xff] 0
        %331 = vst [vmem:[#allocation2 + $0x1c4] sm:$0xf] 0
        %v332 = vld [vmem:[%s242] sm:$0xff]
        %v333 = vld [vmem:[%s242 + $0x8] sm:$0xff]
        %v334 = vld [vmem:[%s242 + $0x10] sm:$0xff]
        %v335 = vld [vmem:[%s242 + $0x18] sm:$0xff]
        %v336 = vld [vmem:[%s242 + $0x20] sm:$0xff]
        %v337 = vld [vmem:[%s242 + $0x28] sm:$0xff]
        %v338 = vld [vmem:[%s242 + $0x30] sm:$0xff]
        %v339 = vld [vmem:[%s242 + $0x38] sm:$0xff]
        %v340 = vld [vmem:[%s242 + $0x40] sm:$0xff]
        %v341 = vld [vmem:[%s242 + $0x48] sm:$0xff]
        %v342 = vld [vmem:[%s242 + $0x50] sm:$0xff]
        %v343 = vld [vmem:[%s242 + $0x58] sm:$0xff]
        %v344 = vld [vmem:[%s242 + $0x60] sm:$0xff]
        %v345 = vld [vmem:[%s242 + $0x68] sm:$0xff]
        %v346 = vld [vmem:[%s242 + $0x70] sm:$0xff]
        %v347 = vld [vmem:[%s242 + $0x78] sm:$0xff]
        %v348 = vld [vmem:[%s242 + $0x80] sm:$0xff]
        %v349 = vld [vmem:[%s242 + $0x88] sm:$0xff]
        %v350 = vld [vmem:[%s242 + $0x90] sm:$0xff]
        %v351 = vld [vmem:[%s242 + $0x98] sm:$0xff]
        %v352 = vld [vmem:[%s242 + $0xa0] sm:$0xff]
        %v353 = vld [vmem:[%s242 + $0xa8] sm:$0xff]
        %v354 = vld [vmem:[%s242 + $0xb0] sm:$0xff]
        %v355 = vld [vmem:[%s242 + $0xb8] sm:$0xff]
        %v356 = vld [vmem:[%s242 + $0xc0] sm:$0xff]
        %v357 = vld [vmem:[%s242 + $0xc8] sm:$0xff]
        %v358 = vld [vmem:[%s242 + $0xd0] sm:$0xff]
        %v359 = vld [vmem:[%s242 + $0xd8] sm:$0xff]
        %v360 = vld [vmem:[%s242 + $0xe0] sm:$0xff]
        %v361 = vld [vmem:[%s242 + $0xe8] sm:$0xff]
        %v362 = vld [vmem:[%s242 + $0xf0] sm:$0xff]
        %v363 = vld [vmem:[%s242 + $0xf8] sm:$0xff]
        %v364 = vld [vmem:[%s242 + $0x100] sm:$0xff]
        %v365 = vld [vmem:[%s242 + $0x108] sm:$0xff]
        %v366 = vld [vmem:[%s242 + $0x110] sm:$0xff]
        %v367 = vld [vmem:[%s242 + $0x118] sm:$0xff]
        %v368 = vld [vmem:[%s242 + $0x120] sm:$0xff]
        %v369 = vld [vmem:[%s242 + $0x128] sm:$0xff]
        %v370 = vld [vmem:[%s242 + $0x130] sm:$0xff]
        %v371 = vld [vmem:[%s242 + $0x138] sm:$0xff]
        %v372 = vld [vmem:[%s242 + $0x140] sm:$0xff]
        %v373 = vld [vmem:[%s242 + $0x148] sm:$0xff]
        %v374 = vld [vmem:[%s242 + $0x150] sm:$0xff]
        %v375 = vld [vmem:[%s242 + $0x158] sm:$0xff]
        %v376 = vld [vmem:[%s242 + $0x160] sm:$0xff]
        %v377 = vld [vmem:[%s242 + $0x168] sm:$0xff]
        %v378 = vld [vmem:[%s242 + $0x170] sm:$0xff]
        %v379 = vld [vmem:[%s242 + $0x178] sm:$0xff]
        %v380 = vld [vmem:[%s242 + $0x180] sm:$0xff]
        %v381 = vld [vmem:[%s242 + $0x188] sm:$0xff]
        %v382 = vld [vmem:[%s242 + $0x190] sm:$0xff]
        %v383 = vld [vmem:[%s242 + $0x198] sm:$0xff]
        %v384 = vld [vmem:[%s242 + $0x1a0] sm:$0xff]
        %v385 = vld [vmem:[%s242 + $0x1a8] sm:$0xff]
        %v386 = vld [vmem:[%s242 + $0x1b0] sm:$0xff]
        %v387 = vld [vmem:[%s242 + $0x1b8] sm:$0xff]
        %v388 = vld [vmem:[%s242 + $0x1c0] sm:$0xff]
        %v389 = vld [vmem:[%s242 + $0x1c8] sm:$0xff]
        %v390 = vld [vmem:[%s242 + $0x1d0] sm:$0xff]
        %v391 = vld [vmem:[%s242 + $0x1d8] sm:$0xff]
        %v392 = vld [vmem:[%s242 + $0x1e0] sm:$0xff]
        %v393 = vld [vmem:[%s242 + $0x1e8] sm:$0xff]
        %v394 = vld [vmem:[%s242 + $0x1f0] sm:$0xff]
        %v395 = vld [vmem:[%s242 + $0x1f8] sm:$0xff]
        %v396 = vld [vmem:[%s242 + $0x200] sm:$0xff]
        %v397 = vld [vmem:[%s242 + $0x208] sm:$0xff]
        %v398 = vld [vmem:[%s242 + $0x210] sm:$0xff]
        %v399 = vld [vmem:[%s242 + $0x218] sm:$0xff]
        %v400 = vld [vmem:[%s242 + $0x220] sm:$0xff]
        %v401 = vld [vmem:[%s242 + $0x228] sm:$0xff]
        %v402 = vld [vmem:[%s242 + $0x230] sm:$0xff]
        %v403 = vld [vmem:[%s242 + $0x238] sm:$0xff]
        %v404 = vld [vmem:[%s242 + $0x240] sm:$0xff]
        %v405 = vld [vmem:[%s242 + $0x248] sm:$0xff]
        %v406 = vld [vmem:[%s242 + $0x250] sm:$0xff]
        %v407 = vld [vmem:[%s242 + $0x258] sm:$0xff]
        %v408 = vld [vmem:[%s242 + $0x260] sm:$0xff]
        %v409 = vld [vmem:[%s242 + $0x268] sm:$0xff]
        %v410 = vld [vmem:[%s242 + $0x270] sm:$0xff]
        %v411 = vld [vmem:[%s242 + $0x278] sm:$0xff]
        %v412 = vld [vmem:[%s242 + $0x280] sm:$0xff]
        %v413 = vld [vmem:[%s242 + $0x288] sm:$0xff]
        %v414 = vld [vmem:[%s242 + $0x290] sm:$0xff]
        %v415 = vld [vmem:[%s242 + $0x298] sm:$0xff]
        %v416 = vld [vmem:[%s242 + $0x2a0] sm:$0xff]
        %v417 = vld [vmem:[%s242 + $0x2a8] sm:$0xff]
        %v418 = vld [vmem:[%s242 + $0x2b0] sm:$0xff]
        %v419 = vld [vmem:[%s242 + $0x2b8] sm:$0xff]
        %v420 = vld [vmem:[%s242 + $0x2c0] sm:$0xff]
        %v421 = vld [vmem:[%s242 + $0x2c8] sm:$0xff]
        %v422 = vld [vmem:[%s242 + $0x2d0] sm:$0xff]
        %v423 = vld [vmem:[%s242 + $0x2d8] sm:$0xff]
        %v424 = vld [vmem:[%s242 + $0x2e0] sm:$0xff]
        %v425 = vld [vmem:[%s242 + $0x2e8] sm:$0xff]
        %v426 = vld [vmem:[%s242 + $0x2f0] sm:$0xff]
        %v427 = vld [vmem:[%s242 + $0x2f8] sm:$0xff]
        %v428 = vld [vmem:[%s242 + $0x300] sm:$0xff]
        %v429 = vld [vmem:[%s242 + $0x308] sm:$0xff]
        %v430 = vld [vmem:[%s242 + $0x310] sm:$0xff]
        %v431 = vld [vmem:[%s242 + $0x318] sm:$0xff]
        %v432 = vld [vmem:[%s242 + $0x320] sm:$0xff]
        %v433 = vld [vmem:[%s242 + $0x328] sm:$0xff]
        %v434 = vld [vmem:[%s242 + $0x330] sm:$0xff]
        %v435 = vld [vmem:[%s242 + $0x338] sm:$0xff]
        %v436 = vld [vmem:[%s242 + $0x340] sm:$0xff]
        %v437 = vld [vmem:[%s242 + $0x348] sm:$0xff]
        %v438 = vld [vmem:[%s242 + $0x350] sm:$0xff]
        %v439 = vld [vmem:[%s242 + $0x358] sm:$0xff]
        %v440 = vld [vmem:[%s242 + $0x360] sm:$0xff]
        %v441 = vld [vmem:[%s242 + $0x368] sm:$0xff]
        %v442 = vld [vmem:[%s242 + $0x370] sm:$0xff]
        %v443 = vld [vmem:[%s242 + $0x378] sm:$0xff]
        %v444 = vld [vmem:[%s242 + $0x380] sm:$0xff]
        %v445 = vld [vmem:[%s242 + $0x388] sm:$0xff]
        %v446 = vpack.c.bf16 %v335, %v332
        %v447 = vpack.c.bf16 %v336, %v333
        %v448 = vpack.c.bf16 %v337, %v334
        %v449 = vpack.c.bf16 %v341, %v338
        %v450 = vpack.c.bf16 %v342, %v339
        %v451 = vpack.c.bf16 %v343, %v340
        %v452 = vpack.c.bf16 %v347, %v344
        %v453 = vpack.c.bf16 %v348, %v345
        %v454 = vpack.c.bf16 %v349, %v346
        %v455 = vpack.c.bf16 %v353, %v350
        %v456 = vpack.c.bf16 %v354, %v351
        %v457 = vpack.c.bf16 %v355, %v352
        %v458 = vpack.c.bf16 %v359, %v356
        %v459 = vpack.c.bf16 %v360, %v357
        %v460 = vpack.c.bf16 %v361, %v358
        %v461 = vpack.c.bf16 %v365, %v362
        %v462 = vpack.c.bf16 %v366, %v363
        %v463 = vpack.c.bf16 %v367, %v364
        %v464 = vpack.c.bf16 %v371, %v368
        %v465 = vpack.c.bf16 %v372, %v369
        %v466 = vpack.c.bf16 %v373, %v370
        %v467 = vpack.c.bf16 %v377, %v374
        %v468 = vpack.c.bf16 %v378, %v375
        %v469 = vpack.c.bf16 %v379, %v376
        %v470 = vpack.c.bf16 %v383, %v380
        %v471 = vpack.c.bf16 %v384, %v381
        %v472 = vpack.c.bf16 %v385, %v382
        %v473 = vpack.c.bf16 %v389, %v386
        %v474 = vpack.c.bf16 %v390, %v387
        %v475 = vpack.c.bf16 %v391, %v388
        %v476 = vpack.c.bf16 %v395, %v392
        %v477 = vpack.c.bf16 %v396, %v393
        %v478 = vpack.c.bf16 %v397, %v394
        %v479 = vpack.c.bf16 %v401, %v398
        %v480 = vpack.c.bf16 %v402, %v399
        %v481 = vpack.c.bf16 %v403, %v400
        %v482 = vpack.c.bf16 %v407, %v404
        %v483 = vpack.c.bf16 %v408, %v405
        %v484 = vpack.c.bf16 %v409, %v406
        %v485 = vpack.c.bf16 %v413, %v410
        %v486 = vpack.c.bf16 %v414, %v411
        %v487 = vpack.c.bf16 %v415, %v412
        %v488 = vpack.c.bf16 %v419, %v416
        %v489 = vpack.c.bf16 %v420, %v417
        %v490 = vpack.c.bf16 %v421, %v418
        %v491 = vpack.c.bf16 %v425, %v422
        %v492 = vpack.c.bf16 %v426, %v423
        %v493 = vpack.c.bf16 %v427, %v424
        %v494 = vpack.c.bf16 %v431, %v428
        %v495 = vpack.c.bf16 %v432, %v429
        %v496 = vpack.c.bf16 %v433, %v430
        %v497 = vpack.c.bf16 %v437, %v434
        %v498 = vpack.c.bf16 %v438, %v435
        %v499 = vpack.c.bf16 %v439, %v436
        %v500 = vpack.c.bf16 %v443, %v440
        %v501 = vpack.c.bf16 %v444, %v441
        %v502 = vpack.c.bf16 %v445, %v442
        %v560 = vunpack.c.l.b16 %v446
        %v561 = vunpack.c.l.b16 %v447
        %v562 = vunpack.c.l.b16 %v448
        %v563 = vunpack.c.h.b16 %v446
        %v564 = vunpack.c.h.b16 %v447
        %v565 = vunpack.c.h.b16 %v448
        %v566 = vunpack.c.l.b16 %v449
        %v567 = vunpack.c.l.b16 %v450
        %v568 = vunpack.c.l.b16 %v451
        %v569 = vunpack.c.h.b16 %v449
        %v570 = vunpack.c.h.b16 %v450
        %v571 = vunpack.c.h.b16 %v451
        %v572 = vunpack.c.l.b16 %v452
        %v573 = vunpack.c.l.b16 %v453
        %v574 = vunpack.c.l.b16 %v454
        %v575 = vunpack.c.h.b16 %v452
        %v576 = vunpack.c.h.b16 %v453
        %v577 = vunpack.c.h.b16 %v454
        %v578 = vunpack.c.l.b16 %v455
        %v579 = vunpack.c.l.b16 %v456
        %v580 = vunpack.c.l.b16 %v457
        %v581 = vunpack.c.h.b16 %v455
        %v582 = vunpack.c.h.b16 %v456
        %v583 = vunpack.c.h.b16 %v457
        %v584 = vunpack.c.l.b16 %v458
        %v585 = vunpack.c.l.b16 %v459
        %v586 = vunpack.c.l.b16 %v460
        %v587 = vunpack.c.h.b16 %v458
        %v588 = vunpack.c.h.b16 %v459
        %v589 = vunpack.c.h.b16 %v460
        %v590 = vunpack.c.l.b16 %v461
        %v591 = vunpack.c.l.b16 %v462
        %v592 = vunpack.c.l.b16 %v463
        %v593 = vunpack.c.h.b16 %v461
        %v594 = vunpack.c.h.b16 %v462
        %v595 = vunpack.c.h.b16 %v463
        %v596 = vunpack.c.l.b16 %v464
        %v597 = vunpack.c.l.b16 %v465
        %v598 = vunpack.c.l.b16 %v466
        %v599 = vunpack.c.h.b16 %v464
        %v600 = vunpack.c.h.b16 %v465
        %v601 = vunpack.c.h.b16 %v466
        %v602 = vunpack.c.l.b16 %v467
        %v603 = vunpack.c.l.b16 %v468
        %v604 = vunpack.c.l.b16 %v469
        %v605 = vunpack.c.h.b16 %v467
        %v606 = vunpack.c.h.b16 %v468
        %v607 = vunpack.c.h.b16 %v469
        %v608 = vunpack.c.l.b16 %v470
        %v609 = vunpack.c.l.b16 %v471
        %v610 = vunpack.c.l.b16 %v472
        %v611 = vunpack.c.h.b16 %v470
        %v612 = vunpack.c.h.b16 %v471
        %v613 = vunpack.c.h.b16 %v472
        %v614 = vunpack.c.l.b16 %v473
        %v615 = vunpack.c.l.b16 %v474
        %v616 = vunpack.c.l.b16 %v475
        %v617 = vunpack.c.h.b16 %v473
        %v618 = vunpack.c.h.b16 %v474
        %v619 = vunpack.c.h.b16 %v475
        %v620 = vunpack.c.l.b16 %v476
        %v621 = vunpack.c.l.b16 %v477
        %v622 = vunpack.c.l.b16 %v478
        %v623 = vunpack.c.h.b16 %v476
        %v624 = vunpack.c.h.b16 %v477
        %v625 = vunpack.c.h.b16 %v478
        %v626 = vunpack.c.l.b16 %v479
        %v627 = vunpack.c.l.b16 %v480
        %v628 = vunpack.c.l.b16 %v481
        %v629 = vunpack.c.h.b16 %v479
        %v630 = vunpack.c.h.b16 %v480
        %v631 = vunpack.c.h.b16 %v481
        %v632 = vunpack.c.l.b16 %v482
        %v633 = vunpack.c.l.b16 %v483
        %v634 = vunpack.c.l.b16 %v484
        %v635 = vunpack.c.h.b16 %v482
        %v636 = vunpack.c.h.b16 %v483
        %v637 = vunpack.c.h.b16 %v484
        %v638 = vunpack.c.l.b16 %v485
        %v639 = vunpack.c.l.b16 %v486
        %v640 = vunpack.c.l.b16 %v487
        %v641 = vunpack.c.h.b16 %v485
        %v642 = vunpack.c.h.b16 %v486
        %v643 = vunpack.c.h.b16 %v487
        %v644 = vunpack.c.l.b16 %v488
        %v645 = vunpack.c.l.b16 %v489
        %v646 = vunpack.c.l.b16 %v490
        %v647 = vunpack.c.h.b16 %v488
        %v648 = vunpack.c.h.b16 %v489
        %v649 = vunpack.c.h.b16 %v490
        %v650 = vunpack.c.l.b16 %v491
        %v651 = vunpack.c.l.b16 %v492
        %v652 = vunpack.c.l.b16 %v493
        %v653 = vunpack.c.h.b16 %v491
        %v654 = vunpack.c.h.b16 %v492
        %v655 = vunpack.c.h.b16 %v493
        %v656 = vunpack.c.l.b16 %v494
        %v657 = vunpack.c.l.b16 %v495
        %v658 = vunpack.c.l.b16 %v496
        %v659 = vunpack.c.h.b16 %v494
        %v660 = vunpack.c.h.b16 %v495
        %v661 = vunpack.c.h.b16 %v496
        %v662 = vunpack.c.l.b16 %v497
        %v663 = vunpack.c.l.b16 %v498
        %v664 = vunpack.c.l.b16 %v499
        %v665 = vunpack.c.h.b16 %v497
        %v666 = vunpack.c.h.b16 %v498
        %v667 = vunpack.c.h.b16 %v499
        %v668 = vunpack.c.l.b16 %v500
        %v669 = vunpack.c.l.b16 %v501
        %v670 = vunpack.c.l.b16 %v502
        %v671 = vunpack.c.h.b16 %v500
        %v672 = vunpack.c.h.b16 %v501
        %v673 = vunpack.c.h.b16 %v502
        %v674 = vpack.c.b16 %v561, %v560
        %v675 = vpack.c.b16 %v562, %v562
        %v676 = vpack.c.b16 %v564, %v563
        %v677 = vpack.c.b16 %v565, %v565
        %v678 = vpack.c.b16 %v567, %v566
        %v679 = vpack.c.b16 %v568, %v568
        %v680 = vpack.c.b16 %v570, %v569
        %v681 = vpack.c.b16 %v571, %v571
        %v682 = vpack.c.b16 %v573, %v572
        %v683 = vpack.c.b16 %v574, %v574
        %v684 = vpack.c.b16 %v576, %v575
        %v685 = vpack.c.b16 %v577, %v577
        %v686 = vpack.c.b16 %v579, %v578
        %v687 = vpack.c.b16 %v580, %v580
        %v688 = vpack.c.b16 %v582, %v581
        %v689 = vpack.c.b16 %v583, %v583
        %v690 = vpack.c.b16 %v585, %v584
        %v691 = vpack.c.b16 %v586, %v586
        %v692 = vpack.c.b16 %v588, %v587
        %v693 = vpack.c.b16 %v589, %v589
        %v694 = vpack.c.b16 %v591, %v590
        %v695 = vpack.c.b16 %v592, %v592
        %v696 = vpack.c.b16 %v594, %v593
        %v697 = vpack.c.b16 %v595, %v595
        %v698 = vpack.c.b16 %v597, %v596
        %v699 = vpack.c.b16 %v598, %v598
        %v700 = vpack.c.b16 %v600, %v599
        %v701 = vpack.c.b16 %v601, %v601
        %v702 = vpack.c.b16 %v603, %v602
        %v703 = vpack.c.b16 %v604, %v604
        %v704 = vpack.c.b16 %v606, %v605
        %v705 = vpack.c.b16 %v607, %v607
        %v706 = vpack.c.b16 %v609, %v608
        %v707 = vpack.c.b16 %v610, %v610
        %v708 = vpack.c.b16 %v612, %v611
        %v709 = vpack.c.b16 %v613, %v613
        %v710 = vpack.c.b16 %v615, %v614
        %v711 = vpack.c.b16 %v616, %v616
        %v712 = vpack.c.b16 %v618, %v617
        %v713 = vpack.c.b16 %v619, %v619
        %v714 = vpack.c.b16 %v621, %v620
        %v715 = vpack.c.b16 %v622, %v622
        %v716 = vpack.c.b16 %v624, %v623
        %v717 = vpack.c.b16 %v625, %v625
        %v718 = vpack.c.b16 %v627, %v626
        %v719 = vpack.c.b16 %v628, %v628
        %v720 = vpack.c.b16 %v630, %v629
        %v721 = vpack.c.b16 %v631, %v631
        %v722 = vpack.c.b16 %v633, %v632
        %v723 = vpack.c.b16 %v634, %v634
        %v724 = vpack.c.b16 %v636, %v635
        %v725 = vpack.c.b16 %v637, %v637
        %v726 = vpack.c.b16 %v639, %v638
        %v727 = vpack.c.b16 %v640, %v640
        %v728 = vpack.c.b16 %v642, %v641
        %v729 = vpack.c.b16 %v643, %v643
        %v730 = vpack.c.b16 %v645, %v644
        %v731 = vpack.c.b16 %v646, %v646
        %v732 = vpack.c.b16 %v648, %v647
        %v733 = vpack.c.b16 %v649, %v649
        %v734 = vpack.c.b16 %v651, %v650
        %v735 = vpack.c.b16 %v652, %v652
        %v736 = vpack.c.b16 %v654, %v653
        %v737 = vpack.c.b16 %v655, %v655
        %v738 = vpack.c.b16 %v657, %v656
        %v739 = vpack.c.b16 %v658, %v658
        %v740 = vpack.c.b16 %v660, %v659
        %v741 = vpack.c.b16 %v661, %v661
        %v742 = vpack.c.b16 %v663, %v662
        %v743 = vpack.c.b16 %v664, %v664
        %v744 = vpack.c.b16 %v666, %v665
        %v745 = vpack.c.b16 %v667, %v667
        %v746 = vpack.c.b16 %v669, %v668
        %v747 = vpack.c.b16 %v670, %v670
        %v748 = vpack.c.b16 %v672, %v671
        %v749 = vpack.c.b16 %v673, %v673
        %826 = vst [vmem:[#allocation2] sm:$0xff] %v674
        %vm827 = vcmask 355328
        %828 = vst.msk [vmem:[#allocation2 + $0x8] sm:$0xf] %vm827, %v675
        %829 = vst [vmem:[#allocation2 + $0xc] sm:$0xff] %v676
        %830 = vst.msk [vmem:[#allocation2 + $0x14] sm:$0xf] %vm827, %v677
        %831 = vst [vmem:[#allocation2 + $0x18] sm:$0xff] %v678
        %832 = vst.msk [vmem:[#allocation2 + $0x20] sm:$0xf] %vm827, %v679
        %833 = vst [vmem:[#allocation2 + $0x24] sm:$0xff] %v680
        %834 = vst.msk [vmem:[#allocation2 + $0x2c] sm:$0xf] %vm827, %v681
        %835 = vst [vmem:[#allocation2 + $0x30] sm:$0xff] %v682
        %836 = vst.msk [vmem:[#allocation2 + $0x38] sm:$0xf] %vm827, %v683
        %837 = vst [vmem:[#allocation2 + $0x3c] sm:$0xff] %v684
        %838 = vst.msk [vmem:[#allocation2 + $0x44] sm:$0xf] %vm827, %v685
        %839 = vst [vmem:[#allocation2 + $0x48] sm:$0xff] %v686
        %840 = vst.msk [vmem:[#allocation2 + $0x50] sm:$0xf] %vm827, %v687
        %841 = vst [vmem:[#allocation2 + $0x54] sm:$0xff] %v688
        %842 = vst.msk [vmem:[#allocation2 + $0x5c] sm:$0xf] %vm827, %v689
        %843 = vst [vmem:[#allocation2 + $0x60] sm:$0xff] %v690
        %844 = vst.msk [vmem:[#allocation2 + $0x68] sm:$0xf] %vm827, %v691
        %845 = vst [vmem:[#allocation2 + $0x6c] sm:$0xff] %v692
        %846 = vst.msk [vmem:[#allocation2 + $0x74] sm:$0xf] %vm827, %v693
        %847 = vst [vmem:[#allocation2 + $0x78] sm:$0xff] %v694
        %848 = vst.msk [vmem:[#allocation2 + $0x80] sm:$0xf] %vm827, %v695
        %849 = vst [vmem:[#allocation2 + $0x84] sm:$0xff] %v696
        %850 = vst.msk [vmem:[#allocation2 + $0x8c] sm:$0xf] %vm827, %v697
        %851 = vst [vmem:[#allocation2 + $0x90] sm:$0xff] %v698
        %852 = vst.msk [vmem:[#allocation2 + $0x98] sm:$0xf] %vm827, %v699
        %853 = vst [vmem:[#allocation2 + $0x9c] sm:$0xff] %v700
        %854 = vst.msk [vmem:[#allocation2 + $0xa4] sm:$0xf] %vm827, %v701
        %855 = vst [vmem:[#allocation2 + $0xa8] sm:$0xff] %v702
        %856 = vst.msk [vmem:[#allocation2 + $0xb0] sm:$0xf] %vm827, %v703
        %857 = vst [vmem:[#allocation2 + $0xb4] sm:$0xff] %v704
        %858 = vst.msk [vmem:[#allocation2 + $0xbc] sm:$0xf] %vm827, %v705
        %859 = vst [vmem:[#allocation2 + $0xc0] sm:$0xff] %v706
        %860 = vst.msk [vmem:[#allocation2 + $0xc8] sm:$0xf] %vm827, %v707
        %861 = vst [vmem:[#allocation2 + $0xcc] sm:$0xff] %v708
        %862 = vst.msk [vmem:[#allocation2 + $0xd4] sm:$0xf] %vm827, %v709
        %863 = vst [vmem:[#allocation2 + $0xd8] sm:$0xff] %v710
        %864 = vst.msk [vmem:[#allocation2 + $0xe0] sm:$0xf] %vm827, %v711
        %865 = vst [vmem:[#allocation2 + $0xe4] sm:$0xff] %v712
        %866 = vst.msk [vmem:[#allocation2 + $0xec] sm:$0xf] %vm827, %v713
        %867 = vst [vmem:[#allocation2 + $0xf0] sm:$0xff] %v714
        %868 = vst.msk [vmem:[#allocation2 + $0xf8] sm:$0xf] %vm827, %v715
        %869 = vst [vmem:[#allocation2 + $0xfc] sm:$0xff] %v716
        %870 = vst.msk [vmem:[#allocation2 + $0x104] sm:$0xf] %vm827, %v717
        %871 = vst [vmem:[#allocation2 + $0x108] sm:$0xff] %v718
        %872 = vst.msk [vmem:[#allocation2 + $0x110] sm:$0xf] %vm827, %v719
        %873 = vst [vmem:[#allocation2 + $0x114] sm:$0xff] %v720
        %874 = vst.msk [vmem:[#allocation2 + $0x11c] sm:$0xf] %vm827, %v721
        %875 = vst [vmem:[#allocation2 + $0x120] sm:$0xff] %v722
        %876 = vst.msk [vmem:[#allocation2 + $0x128] sm:$0xf] %vm827, %v723
        %877 = vst [vmem:[#allocation2 + $0x12c] sm:$0xff] %v724
        %878 = vst.msk [vmem:[#allocation2 + $0x134] sm:$0xf] %vm827, %v725
        %879 = vst [vmem:[#allocation2 + $0x138] sm:$0xff] %v726
        %880 = vst.msk [vmem:[#allocation2 + $0x140] sm:$0xf] %vm827, %v727
        %881 = vst [vmem:[#allocation2 + $0x144] sm:$0xff] %v728
        %882 = vst.msk [vmem:[#allocation2 + $0x14c] sm:$0xf] %vm827, %v729
        %883 = vst [vmem:[#allocation2 + $0x150] sm:$0xff] %v730
        %884 = vst.msk [vmem:[#allocation2 + $0x158] sm:$0xf] %vm827, %v731
        %885 = vst [vmem:[#allocation2 + $0x15c] sm:$0xff] %v732
        %886 = vst.msk [vmem:[#allocation2 + $0x164] sm:$0xf] %vm827, %v733
        %887 = vst [vmem:[#allocation2 + $0x168] sm:$0xff] %v734
        %888 = vst.msk [vmem:[#allocation2 + $0x170] sm:$0xf] %vm827, %v735
        %889 = vst [vmem:[#allocation2 + $0x174] sm:$0xff] %v736
        %890 = vst.msk [vmem:[#allocation2 + $0x17c] sm:$0xf] %vm827, %v737
        %891 = vst [vmem:[#allocation2 + $0x180] sm:$0xff] %v738
        %892 = vst.msk [vmem:[#allocation2 + $0x188] sm:$0xf] %vm827, %v739
        %893 = vst [vmem:[#allocation2 + $0x18c] sm:$0xff] %v740
        %894 = vst.msk [vmem:[#allocation2 + $0x194] sm:$0xf] %vm827, %v741
        %895 = vst [vmem:[#allocation2 + $0x198] sm:$0xff] %v742
        %896 = vst.msk [vmem:[#allocation2 + $0x1a0] sm:$0xf] %vm827, %v743
        %897 = vst [vmem:[#allocation2 + $0x1a4] sm:$0xff] %v744
        %898 = vst.msk [vmem:[#allocation2 + $0x1ac] sm:$0xf] %vm827, %v745
        %899 = vst [vmem:[#allocation2 + $0x1b0] sm:$0xff] %v746
        %900 = vst.msk [vmem:[#allocation2 + $0x1b8] sm:$0xf] %vm827, %v747
        %901 = vst [vmem:[#allocation2 + $0x1bc] sm:$0xff] %v748
        %902 = vst.msk [vmem:[#allocation2 + $0x1c4] sm:$0xf] %vm827, %v749
        %v903 = vld [vmem:[#allocation2] sm:$0xff]
        %v904 = vld [vmem:[#allocation2 + $0x8] sm:$0xf]
        %v905 = vld [vmem:[#allocation2 + $0xc] sm:$0xff]
        %v906 = vld [vmem:[#allocation2 + $0x14] sm:$0xf]
        %v907 = vld [vmem:[#allocation2 + $0x18] sm:$0xff]
        %v908 = vld [vmem:[#allocation2 + $0x20] sm:$0xf]
        %v909 = vld [vmem:[#allocation2 + $0x24] sm:$0xff]
        %v910 = vld [vmem:[#allocation2 + $0x2c] sm:$0xf]
        %v911 = vld [vmem:[#allocation2 + $0x30] sm:$0xff]
        %v912 = vld [vmem:[#allocation2 + $0x38] sm:$0xf]
        %v913 = vld [vmem:[#allocation2 + $0x3c] sm:$0xff]
        %v914 = vld [vmem:[#allocation2 + $0x44] sm:$0xf]
        %v915 = vld [vmem:[#allocation2 + $0x48] sm:$0xff]
        %v916 = vld [vmem:[#allocation2 + $0x50] sm:$0xf]
        %v917 = vld [vmem:[#allocation2 + $0x54] sm:$0xff]
        %v918 = vld [vmem:[#allocation2 + $0x5c] sm:$0xf]
        %v919 = vld [vmem:[#allocation2 + $0x60] sm:$0xff]
        %v920 = vld [vmem:[#allocation2 + $0x68] sm:$0xf]
        %v921 = vld [vmem:[#allocation2 + $0x6c] sm:$0xff]
        %v922 = vld [vmem:[#allocation2 + $0x74] sm:$0xf]
        %v923 = vld [vmem:[#allocation2 + $0x78] sm:$0xff]
        %v924 = vld [vmem:[#allocation2 + $0x80] sm:$0xf]
        %v925 = vld [vmem:[#allocation2 + $0x84] sm:$0xff]
        %v926 = vld [vmem:[#allocation2 + $0x8c] sm:$0xf]
        %v927 = vld [vmem:[#allocation2 + $0x90] sm:$0xff]
        %v928 = vld [vmem:[#allocation2 + $0x98] sm:$0xf]
        %v929 = vld [vmem:[#allocation2 + $0x9c] sm:$0xff]
        %v930 = vld [vmem:[#allocation2 + $0xa4] sm:$0xf]
        %v931 = vld [vmem:[#allocation2 + $0xa8] sm:$0xff]
        %v932 = vld [vmem:[#allocation2 + $0xb0] sm:$0xf]
        %v933 = vld [vmem:[#allocation2 + $0xb4] sm:$0xff]
        %v934 = vld [vmem:[#allocation2 + $0xbc] sm:$0xf]
        %v935 = vld [vmem:[#allocation2 + $0xc0] sm:$0xff]
        %v936 = vld [vmem:[#allocation2 + $0xc8] sm:$0xf]
        %v937 = vld [vmem:[#allocation2 + $0xcc] sm:$0xff]
        %v938 = vld [vmem:[#allocation2 + $0xd4] sm:$0xf]
        %v939 = vld [vmem:[#allocation2 + $0xd8] sm:$0xff]
        %v940 = vld [vmem:[#allocation2 + $0xe0] sm:$0xf]
        %v941 = vld [vmem:[#allocation2 + $0xe4] sm:$0xff]
        %v942 = vld [vmem:[#allocation2 + $0xec] sm:$0xf]
        %v943 = vld [vmem:[#allocation2 + $0xf0] sm:$0xff]
        %v944 = vld [vmem:[#allocation2 + $0xf8] sm:$0xf]
        %v945 = vld [vmem:[#allocation2 + $0xfc] sm:$0xff]
        %v946 = vld [vmem:[#allocation2 + $0x104] sm:$0xf]
        %v947 = vld [vmem:[#allocation2 + $0x108] sm:$0xff]
        %v948 = vld [vmem:[#allocation2 + $0x110] sm:$0xf]
        %v949 = vld [vmem:[#allocation2 + $0x114] sm:$0xff]
        %v950 = vld [vmem:[#allocation2 + $0x11c] sm:$0xf]
        %v951 = vld [vmem:[#allocation2 + $0x120] sm:$0xff]
        %v952 = vld [vmem:[#allocation2 + $0x128] sm:$0xf]
        %v953 = vld [vmem:[#allocation2 + $0x12c] sm:$0xff]
        %v954 = vld [vmem:[#allocation2 + $0x134] sm:$0xf]
        %v955 = vld [vmem:[#allocation2 + $0x138] sm:$0xff]
        %v956 = vld [vmem:[#allocation2 + $0x140] sm:$0xf]
        %v957 = vld [vmem:[#allocation2 + $0x144] sm:$0xff]
        %v958 = vld [vmem:[#allocation2 + $0x14c] sm:$0xf]
        %v959 = vld [vmem:[#allocation2 + $0x150] sm:$0xff]
        %v960 = vld [vmem:[#allocation2 + $0x158] sm:$0xf]
        %v961 = vld [vmem:[#allocation2 + $0x15c] sm:$0xff]
        %v962 = vld [vmem:[#allocation2 + $0x164] sm:$0xf]
        %v963 = vld [vmem:[#allocation2 + $0x168] sm:$0xff]
        %v964 = vld [vmem:[#allocation2 + $0x170] sm:$0xf]
        %v965 = vld [vmem:[#allocation2 + $0x174] sm:$0xff]
        %v966 = vld [vmem:[#allocation2 + $0x17c] sm:$0xf]
        %v967 = vld [vmem:[#allocation2 + $0x180] sm:$0xff]
        %v968 = vld [vmem:[#allocation2 + $0x188] sm:$0xf]
        %v969 = vld [vmem:[#allocation2 + $0x18c] sm:$0xff]
        %v970 = vld [vmem:[#allocation2 + $0x194] sm:$0xf]
        %v971 = vld [vmem:[#allocation2 + $0x198] sm:$0xff]
        %v972 = vld [vmem:[#allocation2 + $0x1a0] sm:$0xf]
        %v973 = vld [vmem:[#allocation2 + $0x1a4] sm:$0xff]
        %v974 = vld [vmem:[#allocation2 + $0x1ac] sm:$0xf]
        %v975 = vld [vmem:[#allocation2 + $0x1b0] sm:$0xff]
        %v976 = vld [vmem:[#allocation2 + $0x1b8] sm:$0xf]
        %v977 = vld [vmem:[#allocation2 + $0x1bc] sm:$0xff]
        %v978 = vld [vmem:[#allocation2 + $0x1c4] sm:$0xf]
        %v979 = vld [vmem:[%s1] sm:$0xf]
        %v980 = vld [vmem:[%s1 + $0x4] sm:$0xf]
        %v981 = vld [vmem:[%s1 + $0x8] sm:$0xf]
        %v982 = vld [vmem:[%s1 + $0xc] sm:$0xf]
        %v983 = vld [vmem:[%s1 + $0x10] sm:$0xf]
        %v984 = vld [vmem:[%s1 + $0x14] sm:$0xf]
        %v985 = vld [vmem:[%s1 + $0x18] sm:$0xf]
        %v986 = vld [vmem:[%s1 + $0x1c] sm:$0xf]
        %v987 = vld [vmem:[%s1 + $0x20] sm:$0xf]
        %v988 = vld [vmem:[%s1 + $0x24] sm:$0xf]
        %v989 = vld [vmem:[%s1 + $0x28] sm:$0xf]
        %v990 = vld [vmem:[%s1 + $0x2c] sm:$0xf]
        %v991 = vld [vmem:[%s1 + $0x30] sm:$0xf]
        %v992 = vld [vmem:[%s1 + $0x34] sm:$0xf]
        %v993 = vld [vmem:[%s1 + $0x38] sm:$0xf]
        %v994 = vld [vmem:[%s1 + $0x3c] sm:$0xf]
        %v995 = vld [vmem:[%s1 + $0x40] sm:$0xf]
        %v996 = vld [vmem:[%s1 + $0x44] sm:$0xf]
        %v997 = vld [vmem:[%s1 + $0x48] sm:$0xf]
        %v998 = vld [vmem:[%s1 + $0x4c] sm:$0xf]
        %v999 = vld [vmem:[%s1 + $0x50] sm:$0xf]
        %v1000 = vld [vmem:[%s1 + $0x54] sm:$0xf]
        %v1001 = vld [vmem:[%s1 + $0x58] sm:$0xf]
        %v1002 = vld [vmem:[%s1 + $0x5c] sm:$0xf]
        %v1003 = vld [vmem:[%s1 + $0x60] sm:$0xf]
        %v1004 = vld [vmem:[%s1 + $0x64] sm:$0xf]
        %v1005 = vld [vmem:[%s1 + $0x68] sm:$0xf]
        %v1006 = vld [vmem:[%s1 + $0x6c] sm:$0xf]
        %v1007 = vld [vmem:[%s1 + $0x70] sm:$0xf]
        %v1008 = vld [vmem:[%s1 + $0x74] sm:$0xf]
        %v1009 = vld [vmem:[%s1 + $0x78] sm:$0xf]
        %v1010 = vld [vmem:[%s1 + $0x7c] sm:$0xf]
        %v1011 = vld [vmem:[%s1 + $0x80] sm:$0xf]
        %v1012 = vld [vmem:[%s1 + $0x84] sm:$0xf]
        %v1013 = vld [vmem:[%s1 + $0x88] sm:$0xf]
        %v1014 = vld [vmem:[%s1 + $0x8c] sm:$0xf]
        %v1015 = vld [vmem:[%s1 + $0x90] sm:$0xf]
        %v1016 = vld [vmem:[%s1 + $0x94] sm:$0xf]
        %v1017 = vld [vmem:[%s1 + $0x98] sm:$0xf]
        %v1018 = vld [vmem:[%s1 + $0x9c] sm:$0xf]
        %v1019 = vld [vmem:[%s1 + $0xa0] sm:$0xf]
        %v1020 = vld [vmem:[%s1 + $0xa4] sm:$0xf]
        %v1021 = vld [vmem:[%s1 + $0xa8] sm:$0xf]
        %v1022 = vld [vmem:[%s1 + $0xac] sm:$0xf]
        %v1023 = vld [vmem:[%s1 + $0xb0] sm:$0xf]
        %v1024 = vld [vmem:[%s1 + $0xb4] sm:$0xf]
        %v1025 = vld [vmem:[%s1 + $0xb8] sm:$0xf]
        %v1026 = vld [vmem:[%s1 + $0xbc] sm:$0xf]
        %v1027 = vld [vmem:[%s2] sm:$0x1]
        %v1029 = vlaneseq
        %v1030 = vshrl.u32 %v1029, 7
        %v1031 = vsub.s32 0, %v1030
        %v1032 = vrot.slane %v1027, %v1031
        %v1110 = vunpack.c.l.b16 %v903
        %v1111 = vunpack.c.h.b16 %v903
        %v1112 = vunpack.c.l.b16 %v904
        %v1113 = vunpack.c.l.b16 %v905
        %v1114 = vunpack.c.h.b16 %v905
        %v1115 = vunpack.c.l.b16 %v906
        %v1116 = vunpack.c.l.b16 %v907
        %v1117 = vunpack.c.h.b16 %v907
        %v1118 = vunpack.c.l.b16 %v908
        %v1119 = vunpack.c.l.b16 %v909
        %v1120 = vunpack.c.h.b16 %v909
        %v1121 = vunpack.c.l.b16 %v910
        %v1122 = vunpack.c.l.b16 %v911
        %v1123 = vunpack.c.h.b16 %v911
        %v1124 = vunpack.c.l.b16 %v912
        %v1125 = vunpack.c.l.b16 %v913
        %v1126 = vunpack.c.h.b16 %v913
        %v1127 = vunpack.c.l.b16 %v914
        %v1128 = vunpack.c.l.b16 %v915
        %v1129 = vunpack.c.h.b16 %v915
        %v1130 = vunpack.c.l.b16 %v916
        %v1131 = vunpack.c.l.b16 %v917
        %v1132 = vunpack.c.h.b16 %v917
        %v1133 = vunpack.c.l.b16 %v918
        %v1134 = vunpack.c.l.b16 %v919
        %v1135 = vunpack.c.h.b16 %v919
        %v1136 = vunpack.c.l.b16 %v920
        %v1137 = vunpack.c.l.b16 %v921
        %v1138 = vunpack.c.h.b16 %v921
        %v1139 = vunpack.c.l.b16 %v922
        %v1140 = vunpack.c.l.b16 %v923
        %v1141 = vunpack.c.h.b16 %v923
        %v1142 = vunpack.c.l.b16 %v924
        %v1143 = vunpack.c.l.b16 %v925
        %v1144 = vunpack.c.h.b16 %v925
        %v1145 = vunpack.c.l.b16 %v926
        %v1146 = vunpack.c.l.b16 %v927
        %v1147 = vunpack.c.h.b16 %v927
        %v1148 = vunpack.c.l.b16 %v928
        %v1149 = vunpack.c.l.b16 %v929
        %v1150 = vunpack.c.h.b16 %v929
        %v1151 = vunpack.c.l.b16 %v930
        %v1152 = vunpack.c.l.b16 %v931
        %v1153 = vunpack.c.h.b16 %v931
        %v1154 = vunpack.c.l.b16 %v932
        %v1155 = vunpack.c.l.b16 %v933
        %v1156 = vunpack.c.h.b16 %v933
        %v1157 = vunpack.c.l.b16 %v934
        %v1158 = vunpack.c.l.b16 %v935
        %v1159 = vunpack.c.h.b16 %v935
        %v1160 = vunpack.c.l.b16 %v936
        %v1161 = vunpack.c.l.b16 %v937
        %v1162 = vunpack.c.h.b16 %v937
        %v1163 = vunpack.c.l.b16 %v938
        %v1164 = vunpack.c.l.b16 %v939
        %v1165 = vunpack.c.h.b16 %v939
        %v1166 = vunpack.c.l.b16 %v940
        %v1167 = vunpack.c.l.b16 %v941
        %v1168 = vunpack.c.h.b16 %v941
        %v1169 = vunpack.c.l.b16 %v942
        %v1170 = vunpack.c.l.b16 %v943
        %v1171 = vunpack.c.h.b16 %v943
        %v1172 = vunpack.c.l.b16 %v944
        %v1173 = vunpack.c.l.b16 %v945
        %v1174 = vunpack.c.h.b16 %v945
        %v1175 = vunpack.c.l.b16 %v946
        %v1176 = vunpack.c.l.b16 %v947
        %v1177 = vunpack.c.h.b16 %v947
        %v1178 = vunpack.c.l.b16 %v948
        %v1179 = vunpack.c.l.b16 %v949
        %v1180 = vunpack.c.h.b16 %v949
        %v1181 = vunpack.c.l.b16 %v950
        %v1182 = vunpack.c.l.b16 %v951
        %v1183 = vunpack.c.h.b16 %v951
        %v1184 = vunpack.c.l.b16 %v952
        %v1185 = vunpack.c.l.b16 %v953
        %v1186 = vunpack.c.h.b16 %v953
        %v1187 = vunpack.c.l.b16 %v954
        %v1188 = vunpack.c.l.b16 %v955
        %v1189 = vunpack.c.h.b16 %v955
        %v1190 = vunpack.c.l.b16 %v956
        %v1191 = vunpack.c.l.b16 %v957
        %v1192 = vunpack.c.h.b16 %v957
        %v1193 = vunpack.c.l.b16 %v958
        %v1194 = vunpack.c.l.b16 %v959
        %v1195 = vunpack.c.h.b16 %v959
        %v1196 = vunpack.c.l.b16 %v960
        %v1197 = vunpack.c.l.b16 %v961
        %v1198 = vunpack.c.h.b16 %v961
        %v1199 = vunpack.c.l.b16 %v962
        %v1200 = vunpack.c.l.b16 %v963
        %v1201 = vunpack.c.h.b16 %v963
        %v1202 = vunpack.c.l.b16 %v964
        %v1203 = vunpack.c.l.b16 %v965
        %v1204 = vunpack.c.h.b16 %v965
        %v1205 = vunpack.c.l.b16 %v966
        %v1206 = vunpack.c.l.b16 %v967
        %v1207 = vunpack.c.h.b16 %v967
        %v1208 = vunpack.c.l.b16 %v968
        %v1209 = vunpack.c.l.b16 %v969
        %v1210 = vunpack.c.h.b16 %v969
        %v1211 = vunpack.c.l.b16 %v970
        %v1212 = vunpack.c.l.b16 %v971
        %v1213 = vunpack.c.h.b16 %v971
        %v1214 = vunpack.c.l.b16 %v972
        %v1215 = vunpack.c.l.b16 %v973
        %v1216 = vunpack.c.h.b16 %v973
        %v1217 = vunpack.c.l.b16 %v974
        %v1218 = vunpack.c.l.b16 %v975
        %v1219 = vunpack.c.h.b16 %v975
        %v1220 = vunpack.c.l.b16 %v976
        %v1221 = vunpack.c.l.b16 %v977
        %v1222 = vunpack.c.h.b16 %v977
        %v1223 = vunpack.c.l.b16 %v978
        %v1224 = vpack.c.b16 %v1113, %v1110
        %v1225 = vpack.c.b16 %v1114, %v1111
        %v1226 = vpack.c.b16 %v1115, %v1112
        %v1227 = vpack.c.b16 %v1119, %v1116
        %v1228 = vpack.c.b16 %v1120, %v1117
        %v1229 = vpack.c.b16 %v1121, %v1118
        %v1230 = vpack.c.b16 %v1125, %v1122
        %v1231 = vpack.c.b16 %v1126, %v1123
        %v1232 = vpack.c.b16 %v1127, %v1124
        %v1233 = vpack.c.b16 %v1131, %v1128
        %v1234 = vpack.c.b16 %v1132, %v1129
        %v1235 = vpack.c.b16 %v1133, %v1130
        %v1236 = vpack.c.b16 %v1137, %v1134
        %v1237 = vpack.c.b16 %v1138, %v1135
        %v1238 = vpack.c.b16 %v1139, %v1136
        %v1239 = vpack.c.b16 %v1143, %v1140
        %v1240 = vpack.c.b16 %v1144, %v1141
        %v1241 = vpack.c.b16 %v1145, %v1142
        %v1242 = vpack.c.b16 %v1149, %v1146
        %v1243 = vpack.c.b16 %v1150, %v1147
        %v1244 = vpack.c.b16 %v1151, %v1148
        %v1245 = vpack.c.b16 %v1155, %v1152
        %v1246 = vpack.c.b16 %v1156, %v1153
        %v1247 = vpack.c.b16 %v1157, %v1154
        %v1248 = vpack.c.b16 %v1161, %v1158
        %v1249 = vpack.c.b16 %v1162, %v1159
        %v1250 = vpack.c.b16 %v1163, %v1160
        %v1251 = vpack.c.b16 %v1167, %v1164
        %v1252 = vpack.c.b16 %v1168, %v1165
        %v1253 = vpack.c.b16 %v1169, %v1166
        %v1254 = vpack.c.b16 %v1173, %v1170
        %v1255 = vpack.c.b16 %v1174, %v1171
        %v1256 = vpack.c.b16 %v1175, %v1172
        %v1257 = vpack.c.b16 %v1179, %v1176
        %v1258 = vpack.c.b16 %v1180, %v1177
        %v1259 = vpack.c.b16 %v1181, %v1178
        %v1260 = vpack.c.b16 %v1185, %v1182
        %v1261 = vpack.c.b16 %v1186, %v1183
        %v1262 = vpack.c.b16 %v1187, %v1184
        %v1263 = vpack.c.b16 %v1191, %v1188
        %v1264 = vpack.c.b16 %v1192, %v1189
        %v1265 = vpack.c.b16 %v1193, %v1190
        %v1266 = vpack.c.b16 %v1197, %v1194
        %v1267 = vpack.c.b16 %v1198, %v1195
        %v1268 = vpack.c.b16 %v1199, %v1196
        %v1269 = vpack.c.b16 %v1203, %v1200
        %v1270 = vpack.c.b16 %v1204, %v1201
        %v1271 = vpack.c.b16 %v1205, %v1202
        %v1272 = vpack.c.b16 %v1209, %v1206
        %v1273 = vpack.c.b16 %v1210, %v1207
        %v1274 = vpack.c.b16 %v1211, %v1208
        %v1275 = vpack.c.b16 %v1215, %v1212
        %v1276 = vpack.c.b16 %v1216, %v1213
        %v1277 = vpack.c.b16 %v1217, %v1214
        %v1278 = vpack.c.b16 %v1221, %v1218
        %v1279 = vpack.c.b16 %v1222, %v1219
        %v1280 = vpack.c.b16 %v1223, %v1220
        %v1386 = vunpack.c.l.b16 %v979
        %v1387 = vunpack.c.l.b16 %v980
        %v1388 = vunpack.c.l.b16 %v981
        %v1389 = vunpack.c.l.b16 %v982
        %v1390 = vunpack.c.l.b16 %v983
        %v1391 = vunpack.c.l.b16 %v984
        %v1392 = vunpack.c.l.b16 %v985
        %v1393 = vunpack.c.l.b16 %v986
        %v1394 = vunpack.c.l.b16 %v987
        %v1395 = vunpack.c.l.b16 %v988
        %v1396 = vunpack.c.l.b16 %v989
        %v1397 = vunpack.c.l.b16 %v990
        %v1398 = vunpack.c.l.b16 %v991
        %v1399 = vunpack.c.l.b16 %v992
        %v1400 = vunpack.c.l.b16 %v993
        %v1401 = vunpack.c.l.b16 %v994
        %v1402 = vunpack.c.l.b16 %v995
        %v1403 = vunpack.c.l.b16 %v996
        %v1404 = vunpack.c.l.b16 %v997
        %v1405 = vunpack.c.l.b16 %v998
        %v1406 = vunpack.c.l.b16 %v999
        %v1407 = vunpack.c.l.b16 %v1000
        %v1408 = vunpack.c.l.b16 %v1001
        %v1409 = vunpack.c.l.b16 %v1002
        %v1410 = vunpack.c.l.b16 %v1003
        %v1411 = vunpack.c.l.b16 %v1004
        %v1412 = vunpack.c.l.b16 %v1005
        %v1413 = vunpack.c.l.b16 %v1006
        %v1414 = vunpack.c.l.b16 %v1007
        %v1415 = vunpack.c.l.b16 %v1008
        %v1416 = vunpack.c.l.b16 %v1009
        %v1417 = vunpack.c.l.b16 %v1010
        %v1418 = vunpack.c.l.b16 %v1011
        %v1419 = vunpack.c.l.b16 %v1012
        %v1420 = vunpack.c.l.b16 %v1013
        %v1421 = vunpack.c.l.b16 %v1014
        %v1422 = vunpack.c.l.b16 %v1015
        %v1423 = vunpack.c.l.b16 %v1016
        %v1424 = vunpack.c.l.b16 %v1017
        %v1425 = vunpack.c.l.b16 %v1018
        %v1426 = vunpack.c.l.b16 %v1019
        %v1427 = vunpack.c.l.b16 %v1020
        %v1428 = vunpack.c.l.b16 %v1021
        %v1429 = vunpack.c.l.b16 %v1022
        %v1430 = vunpack.c.l.b16 %v1023
        %v1431 = vunpack.c.l.b16 %v1024
        %v1432 = vunpack.c.l.b16 %v1025
        %v1433 = vunpack.c.l.b16 %v1026
        %v1434 = vpack.c.b16 %v1387, %v1386
        %v1435 = vpack.c.b16 %v1389, %v1388
        %v1436 = vpack.c.b16 %v1391, %v1390
        %v1437 = vpack.c.b16 %v1393, %v1392
        %v1438 = vpack.c.b16 %v1395, %v1394
        %v1439 = vpack.c.b16 %v1397, %v1396
        %v1440 = vpack.c.b16 %v1399, %v1398
        %v1441 = vpack.c.b16 %v1401, %v1400
        %v1442 = vpack.c.b16 %v1403, %v1402
        %v1443 = vpack.c.b16 %v1405, %v1404
        %v1444 = vpack.c.b16 %v1407, %v1406
        %v1445 = vpack.c.b16 %v1409, %v1408
        %v1446 = vpack.c.b16 %v1411, %v1410
        %v1447 = vpack.c.b16 %v1413, %v1412
        %v1448 = vpack.c.b16 %v1415, %v1414
        %v1449 = vpack.c.b16 %v1417, %v1416
        %v1450 = vpack.c.b16 %v1419, %v1418
        %v1451 = vpack.c.b16 %v1421, %v1420
        %v1452 = vpack.c.b16 %v1423, %v1422
        %v1453 = vpack.c.b16 %v1425, %v1424
        %v1454 = vpack.c.b16 %v1427, %v1426
        %v1455 = vpack.c.b16 %v1429, %v1428
        %v1456 = vpack.c.b16 %v1431, %v1430
        %v1457 = vpack.c.b16 %v1433, %v1432
        %1482 = vmatprep.subr.bf16.mxu0 0
        %1483 = vmatpush1.bf16.msra.mxu0 %v1441
        %1484 = vmatprep.subr.bf16.mxu0 0
        %1485 = vmatpush1.bf16.msra.mxu0 %v1440
        %1486 = vmatprep.subr.bf16.mxu0 0
        %1487 = vmatpush1.bf16.msra.mxu0 %v1439
        %1488 = vmatprep.subr.bf16.mxu0 0
        %1489 = vmatpush1.bf16.msra.mxu0 %v1438
        %1490 = vmatprep.subr.bf16.mxu0 0
        %1491 = vmatpush1.bf16.msra.mxu0 %v1437
        %1492 = vmatprep.subr.bf16.mxu0 0
        %1493 = vmatpush1.bf16.msra.mxu0 %v1436
        %1494 = vmatprep.subr.bf16.mxu0 0
        %1495 = vmatpush1.bf16.msra.mxu0 %v1435
        %1496 = vmatprep.subr.bf16.mxu0 0
        %1497 = vmatpush1.bf16.msra.mxu0 %v1434
        %1498 = vmatprep.subr.bf16.mxu0 0
        %1499 = vmatpush2.bf16.msra.mxu0 %v1449
        %1500 = vmatprep.subr.bf16.mxu0 0
        %1501 = vmatpush2.bf16.msra.mxu0 %v1448
        %1502 = vmatprep.subr.bf16.mxu0 0
        %1503 = vmatpush2.bf16.msra.mxu0 %v1447
        %1504 = vmatprep.subr.bf16.mxu0 0
        %1505 = vmatpush2.bf16.msra.mxu0 %v1446
        %1506 = vmatprep.subr.bf16.mxu0 0
        %1507 = vmatpush2.bf16.msra.mxu0 %v1445
        %1508 = vmatprep.subr.bf16.mxu0 0
        %1509 = vmatpush2.bf16.msra.mxu0 %v1444
        %1510 = vmatprep.subr.bf16.mxu0 0
        %1511 = vmatpush2.bf16.msra.mxu0 %v1443
        %1512 = vmatprep.subr.bf16.mxu0 0
        %1513 = vmatpush2.bf16.msra.mxu0 %v1442
        %1514 = vmatprep.mubr.bf16.mxu0 %v1225
        %1515 = vmatmul.mubr.bf16.gmra.mxu0 %v1224
        %v1516 = vpop.f32.mrf.mxu0
        %v1517 = vadd.f32 %v1032, %v1516
        %v1518 = vpop.f32.mrf.mxu0
        %v1519 = vpop.f32.mrf.mxu0
        %v1520 = vadd.f32 %v1032, %v1519
        %v1521 = vpop.f32.mrf.mxu0
        %1522 = vmatprep.mubr.bf16.mxu0 %v1228
        %1523 = vmatmul.mubr.bf16.gmra.mxu0 %v1227
        %v1524 = vpop.f32.mrf.mxu0
        %v1525 = vadd.f32 %v1032, %v1524
        %v1526 = vpop.f32.mrf.mxu0
        %v1527 = vpop.f32.mrf.mxu0
        %v1528 = vadd.f32 %v1032, %v1527
        %v1529 = vpop.f32.mrf.mxu0
        %1530 = vmatprep.mubr.bf16.mxu0 %v1231
        %1531 = vmatmul.mubr.bf16.gmra.mxu0 %v1230
        %v1532 = vpop.f32.mrf.mxu0
        %v1533 = vadd.f32 %v1032, %v1532
        %v1534 = vpop.f32.mrf.mxu0
        %v1535 = vpop.f32.mrf.mxu0
        %v1536 = vadd.f32 %v1032, %v1535
        %v1537 = vpop.f32.mrf.mxu0
        %1538 = vmatprep.mubr.bf16.mxu0 %v1234
        %1539 = vmatmul.mubr.bf16.gmra.mxu0 %v1233
        %v1540 = vpop.f32.mrf.mxu0
        %v1541 = vadd.f32 %v1032, %v1540
        %v1542 = vpop.f32.mrf.mxu0
        %v1543 = vpop.f32.mrf.mxu0
        %v1544 = vadd.f32 %v1032, %v1543
        %v1545 = vpop.f32.mrf.mxu0
        %1546 = vmatprep.mubr.bf16.mxu0 %v1237
        %1547 = vmatmul.mubr.bf16.gmra.mxu0 %v1236
        %v1548 = vpop.f32.mrf.mxu0
        %v1549 = vadd.f32 %v1032, %v1548
        %v1550 = vpop.f32.mrf.mxu0
        %v1551 = vpop.f32.mrf.mxu0
        %v1552 = vadd.f32 %v1032, %v1551
        %v1553 = vpop.f32.mrf.mxu0
        %1554 = vmatprep.mubr.bf16.mxu0 %v1240
        %1555 = vmatmul.mubr.bf16.gmra.mxu0 %v1239
        %v1556 = vpop.f32.mrf.mxu0
        %v1557 = vadd.f32 %v1032, %v1556
        %v1558 = vpop.f32.mrf.mxu0
        %v1559 = vpop.f32.mrf.mxu0
        %v1560 = vadd.f32 %v1032, %v1559
        %v1561 = vpop.f32.mrf.mxu0
        %1562 = vmatprep.mubr.bf16.mxu0 %v1243
        %1563 = vmatmul.mubr.bf16.gmra.mxu0 %v1242
        %v1564 = vpop.f32.mrf.mxu0
        %v1565 = vadd.f32 %v1032, %v1564
        %v1566 = vpop.f32.mrf.mxu0
        %v1567 = vpop.f32.mrf.mxu0
        %v1568 = vadd.f32 %v1032, %v1567
        %v1569 = vpop.f32.mrf.mxu0
        %1570 = vmatprep.mubr.bf16.mxu0 %v1246
        %1571 = vmatmul.mubr.bf16.gmra.mxu0 %v1245
        %v1572 = vpop.f32.mrf.mxu0
        %v1573 = vadd.f32 %v1032, %v1572
        %v1574 = vpop.f32.mrf.mxu0
        %v1575 = vpop.f32.mrf.mxu0
        %v1576 = vadd.f32 %v1032, %v1575
        %v1577 = vpop.f32.mrf.mxu0
        %1578 = vmatprep.mubr.bf16.mxu0 %v1249
        %1579 = vmatmul.mubr.bf16.gmra.mxu0 %v1248
        %v1580 = vpop.f32.mrf.mxu0
        %v1581 = vadd.f32 %v1032, %v1580
        %v1582 = vpop.f32.mrf.mxu0
        %v1583 = vpop.f32.mrf.mxu0
        %v1584 = vadd.f32 %v1032, %v1583
        %v1585 = vpop.f32.mrf.mxu0
        %1586 = vmatprep.mubr.bf16.mxu0 %v1252
        %1587 = vmatmul.mubr.bf16.gmra.mxu0 %v1251
        %v1588 = vpop.f32.mrf.mxu0
        %v1589 = vadd.f32 %v1032, %v1588
        %v1590 = vpop.f32.mrf.mxu0
        %v1591 = vpop.f32.mrf.mxu0
        %v1592 = vadd.f32 %v1032, %v1591
        %v1593 = vpop.f32.mrf.mxu0
        %1594 = vmatprep.mubr.bf16.mxu0 %v1255
        %1595 = vmatmul.mubr.bf16.gmra.mxu0 %v1254
        %v1596 = vpop.f32.mrf.mxu0
        %v1597 = vadd.f32 %v1032, %v1596
        %v1598 = vpop.f32.mrf.mxu0
        %v1599 = vpop.f32.mrf.mxu0
        %v1600 = vadd.f32 %v1032, %v1599
        %v1601 = vpop.f32.mrf.mxu0
        %1602 = vmatprep.mubr.bf16.mxu0 %v1258
        %1603 = vmatmul.mubr.bf16.gmra.mxu0 %v1257
        %v1604 = vpop.f32.mrf.mxu0
        %v1605 = vadd.f32 %v1032, %v1604
        %v1606 = vpop.f32.mrf.mxu0
        %v1607 = vpop.f32.mrf.mxu0
        %v1608 = vadd.f32 %v1032, %v1607
        %v1609 = vpop.f32.mrf.mxu0
        %1610 = vmatprep.mubr.bf16.mxu0 %v1261
        %1611 = vmatmul.mubr.bf16.gmra.mxu0 %v1260
        %v1612 = vpop.f32.mrf.mxu0
        %v1613 = vadd.f32 %v1032, %v1612
        %v1614 = vpop.f32.mrf.mxu0
        %v1615 = vpop.f32.mrf.mxu0
        %v1616 = vadd.f32 %v1032, %v1615
        %v1617 = vpop.f32.mrf.mxu0
        %1618 = vmatprep.mubr.bf16.mxu0 %v1264
        %1619 = vmatmul.mubr.bf16.gmra.mxu0 %v1263
        %v1620 = vpop.f32.mrf.mxu0
        %v1621 = vadd.f32 %v1032, %v1620
        %v1622 = vpop.f32.mrf.mxu0
        %v1623 = vpop.f32.mrf.mxu0
        %v1624 = vadd.f32 %v1032, %v1623
        %v1625 = vpop.f32.mrf.mxu0
        %1626 = vmatprep.mubr.bf16.mxu0 %v1267
        %1627 = vmatmul.mubr.bf16.gmra.mxu0 %v1266
        %v1628 = vpop.f32.mrf.mxu0
        %v1629 = vadd.f32 %v1032, %v1628
        %v1630 = vpop.f32.mrf.mxu0
        %v1631 = vpop.f32.mrf.mxu0
        %v1632 = vadd.f32 %v1032, %v1631
        %v1633 = vpop.f32.mrf.mxu0
        %1634 = vmatprep.mubr.bf16.mxu0 %v1270
        %1635 = vmatmul.mubr.bf16.gmra.mxu0 %v1269
        %v1636 = vpop.f32.mrf.mxu0
        %v1637 = vadd.f32 %v1032, %v1636
        %v1638 = vpop.f32.mrf.mxu0
        %v1639 = vpop.f32.mrf.mxu0
        %v1640 = vadd.f32 %v1032, %v1639
        %v1641 = vpop.f32.mrf.mxu0
        %1642 = vmatprep.mubr.bf16.mxu0 %v1273
        %1643 = vmatmul.mubr.bf16.gmra.mxu0 %v1272
        %v1644 = vpop.f32.mrf.mxu0
        %v1645 = vadd.f32 %v1032, %v1644
        %v1646 = vpop.f32.mrf.mxu0
        %v1647 = vpop.f32.mrf.mxu0
        %v1648 = vadd.f32 %v1032, %v1647
        %v1649 = vpop.f32.mrf.mxu0
        %1650 = vmatprep.mubr.bf16.mxu0 %v1276
        %1651 = vmatmul.mubr.bf16.gmra.mxu0 %v1275
        %v1652 = vpop.f32.mrf.mxu0
        %v1653 = vadd.f32 %v1032, %v1652
        %v1654 = vpop.f32.mrf.mxu0
        %v1655 = vpop.f32.mrf.mxu0
        %v1656 = vadd.f32 %v1032, %v1655
        %v1657 = vpop.f32.mrf.mxu0
        %1658 = vmatprep.mubr.bf16.mxu0 %v1279
        %1659 = vmatmul.mubr.bf16.gmra.mxu0 %v1278
        %v1660 = vpop.f32.mrf.mxu0
        %v1661 = vadd.f32 %v1032, %v1660
        %v1662 = vpop.f32.mrf.mxu0
        %v1663 = vpop.f32.mrf.mxu0
        %v1664 = vadd.f32 %v1032, %v1663
        %v1665 = vpop.f32.mrf.mxu0
        %1666 = vdwg.mxu0
        %1667 = vmatprep.subr.bf16.mxu0 0
        %1668 = vmatpush1.bf16.msra.mxu0 %v1457
        %1669 = vmatprep.subr.bf16.mxu0 0
        %1670 = vmatpush1.bf16.msra.mxu0 %v1456
        %1671 = vmatprep.subr.bf16.mxu0 0
        %1672 = vmatpush1.bf16.msra.mxu0 %v1455
        %1673 = vmatprep.subr.bf16.mxu0 0
        %1674 = vmatpush1.bf16.msra.mxu0 %v1454
        %1675 = vmatprep.subr.bf16.mxu0 0
        %1676 = vmatpush1.bf16.msra.mxu0 %v1453
        %1677 = vmatprep.subr.bf16.mxu0 0
        %1678 = vmatpush1.bf16.msra.mxu0 %v1452
        %1679 = vmatprep.subr.bf16.mxu0 0
        %1680 = vmatpush1.bf16.msra.mxu0 %v1451
        %1681 = vmatprep.subr.bf16.mxu0 0
        %1682 = vmatpush1.bf16.msra.mxu0 %v1450
        %1683 = vmatprep.subr.bf16.mxu0 0
        %1684 = vmatpush2.bf16.msra.mxu0 0
        %1685 = vmatprep.subr.bf16.mxu0 0
        %1686 = vmatpush2.bf16.msra.mxu0 0
        %1687 = vmatprep.subr.bf16.mxu0 0
        %1688 = vmatpush2.bf16.msra.mxu0 0
        %1689 = vmatprep.subr.bf16.mxu0 0
        %1690 = vmatpush2.bf16.msra.mxu0 0
        %1691 = vmatprep.subr.bf16.mxu0 0
        %1692 = vmatpush2.bf16.msra.mxu0 0
        %1693 = vmatprep.subr.bf16.mxu0 0
        %1694 = vmatpush2.bf16.msra.mxu0 0
        %1695 = vmatprep.subr.bf16.mxu0 0
        %1696 = vmatpush2.bf16.msra.mxu0 0
        %1697 = vmatprep.subr.bf16.mxu0 0
        %1698 = vmatpush2.bf16.msra.mxu0 0
        %1699 = vmatprep.mubr.bf16.mxu0 0
        %1700 = vmatmul.mubr.bf16.gmra.mxu0 %v1226
        %v1701 = vpop.f32.mrf.mxu0
        %v1702 = vadd.f32 %v1517, %v1701
        %v1703 = vpop.f32.mrf.mxu0
        %v1704 = vpop.f32.mrf.mxu0
        %v1705 = vadd.f32 %v1520, %v1704
        %v1706 = vpop.f32.mrf.mxu0
        %1707 = vmatprep.mubr.bf16.mxu0 0
        %1708 = vmatmul.mubr.bf16.gmra.mxu0 %v1229
        %v1709 = vpop.f32.mrf.mxu0
        %v1710 = vadd.f32 %v1525, %v1709
        %v1711 = vpop.f32.mrf.mxu0
        %v1712 = vpop.f32.mrf.mxu0
        %v1713 = vadd.f32 %v1528, %v1712
        %v1714 = vpop.f32.mrf.mxu0
        %1715 = vmatprep.mubr.bf16.mxu0 0
        %1716 = vmatmul.mubr.bf16.gmra.mxu0 %v1232
        %v1717 = vpop.f32.mrf.mxu0
        %v1718 = vadd.f32 %v1533, %v1717
        %v1719 = vpop.f32.mrf.mxu0
        %v1720 = vpop.f32.mrf.mxu0
        %v1721 = vadd.f32 %v1536, %v1720
        %v1722 = vpop.f32.mrf.mxu0
        %1723 = vmatprep.mubr.bf16.mxu0 0
        %1724 = vmatmul.mubr.bf16.gmra.mxu0 %v1235
        %v1725 = vpop.f32.mrf.mxu0
        %v1726 = vadd.f32 %v1541, %v1725
        %v1727 = vpop.f32.mrf.mxu0
        %v1728 = vpop.f32.mrf.mxu0
        %v1729 = vadd.f32 %v1544, %v1728
        %v1730 = vpop.f32.mrf.mxu0
        %1731 = vmatprep.mubr.bf16.mxu0 0
        %1732 = vmatmul.mubr.bf16.gmra.mxu0 %v1238
        %v1733 = vpop.f32.mrf.mxu0
        %v1734 = vadd.f32 %v1549, %v1733
        %v1735 = vpop.f32.mrf.mxu0
        %v1736 = vpop.f32.mrf.mxu0
        %v1737 = vadd.f32 %v1552, %v1736
        %v1738 = vpop.f32.mrf.mxu0
        %1739 = vmatprep.mubr.bf16.mxu0 0
        %1740 = vmatmul.mubr.bf16.gmra.mxu0 %v1241
        %v1741 = vpop.f32.mrf.mxu0
        %v1742 = vadd.f32 %v1557, %v1741
        %v1743 = vpop.f32.mrf.mxu0
        %v1744 = vpop.f32.mrf.mxu0
        %v1745 = vadd.f32 %v1560, %v1744
        %v1746 = vpop.f32.mrf.mxu0
        %1747 = vmatprep.mubr.bf16.mxu0 0
        %1748 = vmatmul.mubr.bf16.gmra.mxu0 %v1244
        %v1749 = vpop.f32.mrf.mxu0
        %v1750 = vadd.f32 %v1565, %v1749
        %v1751 = vpop.f32.mrf.mxu0
        %v1752 = vpop.f32.mrf.mxu0
        %v1753 = vadd.f32 %v1568, %v1752
        %v1754 = vpop.f32.mrf.mxu0
        %1755 = vmatprep.mubr.bf16.mxu0 0
        %1756 = vmatmul.mubr.bf16.gmra.mxu0 %v1247
        %v1757 = vpop.f32.mrf.mxu0
        %v1758 = vadd.f32 %v1573, %v1757
        %v1759 = vpop.f32.mrf.mxu0
        %v1760 = vpop.f32.mrf.mxu0
        %v1761 = vadd.f32 %v1576, %v1760
        %v1762 = vpop.f32.mrf.mxu0
        %1763 = vmatprep.mubr.bf16.mxu0 0
        %1764 = vmatmul.mubr.bf16.gmra.mxu0 %v1250
        %v1765 = vpop.f32.mrf.mxu0
        %v1766 = vadd.f32 %v1581, %v1765
        %v1767 = vpop.f32.mrf.mxu0
        %v1768 = vpop.f32.mrf.mxu0
        %v1769 = vadd.f32 %v1584, %v1768
        %v1770 = vpop.f32.mrf.mxu0
        %1771 = vmatprep.mubr.bf16.mxu0 0
        %1772 = vmatmul.mubr.bf16.gmra.mxu0 %v1253
        %v1773 = vpop.f32.mrf.mxu0
        %v1774 = vadd.f32 %v1589, %v1773
        %v1775 = vpop.f32.mrf.mxu0
        %v1776 = vpop.f32.mrf.mxu0
        %v1777 = vadd.f32 %v1592, %v1776
        %v1778 = vpop.f32.mrf.mxu0
        %1779 = vmatprep.mubr.bf16.mxu0 0
        %1780 = vmatmul.mubr.bf16.gmra.mxu0 %v1256
        %v1781 = vpop.f32.mrf.mxu0
        %v1782 = vadd.f32 %v1597, %v1781
        %v1783 = vpop.f32.mrf.mxu0
        %v1784 = vpop.f32.mrf.mxu0
        %v1785 = vadd.f32 %v1600, %v1784
        %v1786 = vpop.f32.mrf.mxu0
        %1787 = vmatprep.mubr.bf16.mxu0 0
        %1788 = vmatmul.mubr.bf16.gmra.mxu0 %v1259
        %v1789 = vpop.f32.mrf.mxu0
        %v1790 = vadd.f32 %v1605, %v1789
        %v1791 = vpop.f32.mrf.mxu0
        %v1792 = vpop.f32.mrf.mxu0
        %v1793 = vadd.f32 %v1608, %v1792
        %v1794 = vpop.f32.mrf.mxu0
        %1795 = vmatprep.mubr.bf16.mxu0 0
        %1796 = vmatmul.mubr.bf16.gmra.mxu0 %v1262
        %v1797 = vpop.f32.mrf.mxu0
        %v1798 = vadd.f32 %v1613, %v1797
        %v1799 = vpop.f32.mrf.mxu0
        %v1800 = vpop.f32.mrf.mxu0
        %v1801 = vadd.f32 %v1616, %v1800
        %v1802 = vpop.f32.mrf.mxu0
        %1803 = vmatprep.mubr.bf16.mxu0 0
        %1804 = vmatmul.mubr.bf16.gmra.mxu0 %v1265
        %v1805 = vpop.f32.mrf.mxu0
        %v1806 = vadd.f32 %v1621, %v1805
        %v1807 = vpop.f32.mrf.mxu0
        %v1808 = vpop.f32.mrf.mxu0
        %v1809 = vadd.f32 %v1624, %v1808
        %v1810 = vpop.f32.mrf.mxu0
        %1811 = vmatprep.mubr.bf16.mxu0 0
        %1812 = vmatmul.mubr.bf16.gmra.mxu0 %v1268
        %v1813 = vpop.f32.mrf.mxu0
        %v1814 = vadd.f32 %v1629, %v1813
        %v1815 = vpop.f32.mrf.mxu0
        %v1816 = vpop.f32.mrf.mxu0
        %v1817 = vadd.f32 %v1632, %v1816
        %v1818 = vpop.f32.mrf.mxu0
        %1819 = vmatprep.mubr.bf16.mxu0 0
        %1820 = vmatmul.mubr.bf16.gmra.mxu0 %v1271
        %v1821 = vpop.f32.mrf.mxu0
        %v1822 = vadd.f32 %v1637, %v1821
        %v1823 = vpop.f32.mrf.mxu0
        %v1824 = vpop.f32.mrf.mxu0
        %v1825 = vadd.f32 %v1640, %v1824
        %v1826 = vpop.f32.mrf.mxu0
        %1827 = vmatprep.mubr.bf16.mxu0 0
        %1828 = vmatmul.mubr.bf16.gmra.mxu0 %v1274
        %v1829 = vpop.f32.mrf.mxu0
        %v1830 = vadd.f32 %v1645, %v1829
        %v1831 = vpop.f32.mrf.mxu0
        %v1832 = vpop.f32.mrf.mxu0
        %v1833 = vadd.f32 %v1648, %v1832
        %v1834 = vpop.f32.mrf.mxu0
        %1835 = vmatprep.mubr.bf16.mxu0 0
        %1836 = vmatmul.mubr.bf16.gmra.mxu0 %v1277
        %v1837 = vpop.f32.mrf.mxu0
        %v1838 = vadd.f32 %v1653, %v1837
        %v1839 = vpop.f32.mrf.mxu0
        %v1840 = vpop.f32.mrf.mxu0
        %v1841 = vadd.f32 %v1656, %v1840
        %v1842 = vpop.f32.mrf.mxu0
        %1843 = vmatprep.mubr.bf16.mxu0 0
        %1844 = vmatmul.mubr.bf16.gmra.mxu0 %v1280
        %v1845 = vpop.f32.mrf.mxu0
        %v1846 = vadd.f32 %v1661, %v1845
        %v1847 = vpop.f32.mrf.mxu0
        %v1848 = vpop.f32.mrf.mxu0
        %v1849 = vadd.f32 %v1664, %v1848
        %v1850 = vpop.f32.mrf.mxu0
        %1851 = vdwg.mxu0
        %v1852 = vsub.f32 0.0, %v1702
        %v1853 = vsub.f32 0.0, %v1705
        %v1854 = vsub.f32 0.0, %v1710
        %v1855 = vsub.f32 0.0, %v1713
        %v1856 = vsub.f32 0.0, %v1718
        %v1857 = vsub.f32 0.0, %v1721
        %v1858 = vsub.f32 0.0, %v1726
        %v1859 = vsub.f32 0.0, %v1729
        %v1860 = vsub.f32 0.0, %v1734
        %v1861 = vsub.f32 0.0, %v1737
        %v1862 = vsub.f32 0.0, %v1742
        %v1863 = vsub.f32 0.0, %v1745
        %v1864 = vsub.f32 0.0, %v1750
        %v1865 = vsub.f32 0.0, %v1753
        %v1866 = vsub.f32 0.0, %v1758
        %v1867 = vsub.f32 0.0, %v1761
        %v1868 = vsub.f32 0.0, %v1766
        %v1869 = vsub.f32 0.0, %v1769
        %v1870 = vsub.f32 0.0, %v1774
        %v1871 = vsub.f32 0.0, %v1777
        %v1872 = vsub.f32 0.0, %v1782
        %v1873 = vsub.f32 0.0, %v1785
        %v1874 = vsub.f32 0.0, %v1790
        %v1875 = vsub.f32 0.0, %v1793
        %v1876 = vsub.f32 0.0, %v1798
        %v1877 = vsub.f32 0.0, %v1801
        %v1878 = vsub.f32 0.0, %v1806
        %v1879 = vsub.f32 0.0, %v1809
        %v1880 = vsub.f32 0.0, %v1814
        %v1881 = vsub.f32 0.0, %v1817
        %v1882 = vsub.f32 0.0, %v1822
        %v1883 = vsub.f32 0.0, %v1825
        %v1884 = vsub.f32 0.0, %v1830
        %v1885 = vsub.f32 0.0, %v1833
        %v1886 = vsub.f32 0.0, %v1838
        %v1887 = vsub.f32 0.0, %v1841
        %v1888 = vsub.f32 0.0, %v1846
        %v1889 = vsub.f32 0.0, %v1849
        %v1890 = vmul.f32 %v1852, 1.442695
        %v1891 = vpow.pop %v1890
        %v1892 = vmul.f32 %v1853, 1.442695
        %v1893 = vpow.pop %v1892
        %v1894 = vmul.f32 %v1854, 1.442695
        %v1895 = vpow.pop %v1894
        %v1896 = vmul.f32 %v1855, 1.442695
        %v1897 = vpow.pop %v1896
        %v1898 = vmul.f32 %v1856, 1.442695
        %v1899 = vpow.pop %v1898
        %v1900 = vmul.f32 %v1857, 1.442695
        %v1901 = vpow.pop %v1900
        %v1902 = vmul.f32 %v1858, 1.442695
        %v1903 = vpow.pop %v1902
        %v1904 = vmul.f32 %v1859, 1.442695
        %v1905 = vpow.pop %v1904
        %v1906 = vmul.f32 %v1860, 1.442695
        %v1907 = vpow.pop %v1906
        %v1908 = vmul.f32 %v1861, 1.442695
        %v1909 = vpow.pop %v1908
        %v1910 = vmul.f32 %v1862, 1.442695
        %v1911 = vpow.pop %v1910
        %v1912 = vmul.f32 %v1863, 1.442695
        %v1913 = vpow.pop %v1912
        %v1914 = vmul.f32 %v1864, 1.442695
        %v1915 = vpow.pop %v1914
        %v1916 = vmul.f32 %v1865, 1.442695
        %v1917 = vpow.pop %v1916
        %v1918 = vmul.f32 %v1866, 1.442695
        %v1919 = vpow.pop %v1918
        %v1920 = vmul.f32 %v1867, 1.442695
        %v1921 = vpow.pop %v1920
        %v1922 = vmul.f32 %v1868, 1.442695
        %v1923 = vpow.pop %v1922
        %v1924 = vmul.f32 %v1869, 1.442695
        %v1925 = vpow.pop %v1924
        %v1926 = vmul.f32 %v1870, 1.442695
        %v1927 = vpow.pop %v1926
        %v1928 = vmul.f32 %v1871, 1.442695
        %v1929 = vpow.pop %v1928
        %v1930 = vmul.f32 %v1872, 1.442695
        %v1931 = vpow.pop %v1930
        %v1932 = vmul.f32 %v1873, 1.442695
        %v1933 = vpow.pop %v1932
        %v1934 = vmul.f32 %v1874, 1.442695
        %v1935 = vpow.pop %v1934
        %v1936 = vmul.f32 %v1875, 1.442695
        %v1937 = vpow.pop %v1936
        %v1938 = vmul.f32 %v1876, 1.442695
        %v1939 = vpow.pop %v1938
        %v1940 = vmul.f32 %v1877, 1.442695
        %v1941 = vpow.pop %v1940
        %v1942 = vmul.f32 %v1878, 1.442695
        %v1943 = vpow.pop %v1942
        %v1944 = vmul.f32 %v1879, 1.442695
        %v1945 = vpow.pop %v1944
        %v1946 = vmul.f32 %v1880, 1.442695
        %v1947 = vpow.pop %v1946
        %v1948 = vmul.f32 %v1881, 1.442695
        %v1949 = vpow.pop %v1948
        %v1950 = vmul.f32 %v1882, 1.442695
        %v1951 = vpow.pop %v1950
        %v1952 = vmul.f32 %v1883, 1.442695
        %v1953 = vpow.pop %v1952
        %v1954 = vmul.f32 %v1884, 1.442695
        %v1955 = vpow.pop %v1954
        %v1956 = vmul.f32 %v1885, 1.442695
        %v1957 = vpow.pop %v1956
        %v1958 = vmul.f32 %v1886, 1.442695
        %v1959 = vpow.pop %v1958
        %v1960 = vmul.f32 %v1887, 1.442695
        %v1961 = vpow.pop %v1960
        %v1962 = vmul.f32 %v1888, 1.442695
        %v1963 = vpow.pop %v1962
        %v1964 = vmul.f32 %v1889, 1.442695
        %v1965 = vpow.pop %v1964
        %v1966 = vadd.f32 %v1891, 1.0
        %v1967 = vadd.f32 %v1893, 1.0
        %v1968 = vadd.f32 %v1895, 1.0
        %v1969 = vadd.f32 %v1897, 1.0
        %v1970 = vadd.f32 %v1899, 1.0
        %v1971 = vadd.f32 %v1901, 1.0
        %v1972 = vadd.f32 %v1903, 1.0
        %v1973 = vadd.f32 %v1905, 1.0
        %v1974 = vadd.f32 %v1907, 1.0
        %v1975 = vadd.f32 %v1909, 1.0
        %v1976 = vadd.f32 %v1911, 1.0
        %v1977 = vadd.f32 %v1913, 1.0
        %v1978 = vadd.f32 %v1915, 1.0
        %v1979 = vadd.f32 %v1917, 1.0
        %v1980 = vadd.f32 %v1919, 1.0
        %v1981 = vadd.f32 %v1921, 1.0
        %v1982 = vadd.f32 %v1923, 1.0
        %v1983 = vadd.f32 %v1925, 1.0
        %v1984 = vadd.f32 %v1927, 1.0
        %v1985 = vadd.f32 %v1929, 1.0
        %v1986 = vadd.f32 %v1931, 1.0
        %v1987 = vadd.f32 %v1933, 1.0
        %v1988 = vadd.f32 %v1935, 1.0
        %v1989 = vadd.f32 %v1937, 1.0
        %v1990 = vadd.f32 %v1939, 1.0
        %v1991 = vadd.f32 %v1941, 1.0
        %v1992 = vadd.f32 %v1943, 1.0
        %v1993 = vadd.f32 %v1945, 1.0
        %v1994 = vadd.f32 %v1947, 1.0
        %v1995 = vadd.f32 %v1949, 1.0
        %v1996 = vadd.f32 %v1951, 1.0
        %v1997 = vadd.f32 %v1953, 1.0
        %v1998 = vadd.f32 %v1955, 1.0
        %v1999 = vadd.f32 %v1957, 1.0
        %v2000 = vadd.f32 %v1959, 1.0
        %v2001 = vadd.f32 %v1961, 1.0
        %v2002 = vadd.f32 %v1963, 1.0
        %v2003 = vadd.f32 %v1965, 1.0
        %v2004 = vrcp.pop %v1966
        %v2005 = vrcp.pop %v1967
        %v2006 = vrcp.pop %v1968
        %v2007 = vrcp.pop %v1969
        %v2008 = vrcp.pop %v1970
        %v2009 = vrcp.pop %v1971
        %v2010 = vrcp.pop %v1972
        %v2011 = vrcp.pop %v1973
        %v2012 = vrcp.pop %v1974
        %v2013 = vrcp.pop %v1975
        %v2014 = vrcp.pop %v1976
        %v2015 = vrcp.pop %v1977
        %v2016 = vrcp.pop %v1978
        %v2017 = vrcp.pop %v1979
        %v2018 = vrcp.pop %v1980
        %v2019 = vrcp.pop %v1981
        %v2020 = vrcp.pop %v1982
        %v2021 = vrcp.pop %v1983
        %v2022 = vrcp.pop %v1984
        %v2023 = vrcp.pop %v1985
        %v2024 = vrcp.pop %v1986
        %v2025 = vrcp.pop %v1987
        %v2026 = vrcp.pop %v1988
        %v2027 = vrcp.pop %v1989
        %v2028 = vrcp.pop %v1990
        %v2029 = vrcp.pop %v1991
        %v2030 = vrcp.pop %v1992
        %v2031 = vrcp.pop %v1993
        %v2032 = vrcp.pop %v1994
        %v2033 = vrcp.pop %v1995
        %v2034 = vrcp.pop %v1996
        %v2035 = vrcp.pop %v1997
        %v2036 = vrcp.pop %v1998
        %v2037 = vrcp.pop %v1999
        %v2038 = vrcp.pop %v2000
        %v2039 = vrcp.pop %v2001
        %v2040 = vrcp.pop %v2002
        %v2041 = vrcp.pop %v2003
        %v2042 = vpack.c.bf16 %v2005, %v2004
        %v2043 = vpack.c.bf16 %v2007, %v2006
        %v2044 = vpack.c.bf16 %v2009, %v2008
        %v2045 = vpack.c.bf16 %v2011, %v2010
        %v2046 = vpack.c.bf16 %v2013, %v2012
        %v2047 = vpack.c.bf16 %v2015, %v2014
        %v2048 = vpack.c.bf16 %v2017, %v2016
        %v2049 = vpack.c.bf16 %v2019, %v2018
        %v2050 = vpack.c.bf16 %v2021, %v2020
        %v2051 = vpack.c.bf16 %v2023, %v2022
        %v2052 = vpack.c.bf16 %v2025, %v2024
        %v2053 = vpack.c.bf16 %v2027, %v2026
        %v2054 = vpack.c.bf16 %v2029, %v2028
        %v2055 = vpack.c.bf16 %v2031, %v2030
        %v2056 = vpack.c.bf16 %v2033, %v2032
        %v2057 = vpack.c.bf16 %v2035, %v2034
        %v2058 = vpack.c.bf16 %v2037, %v2036
        %v2059 = vpack.c.bf16 %v2039, %v2038
        %v2060 = vpack.c.bf16 %v2041, %v2040
        %v2061 = vld [vmem:[%s3] sm:$0xff]
        %v2062 = vld [vmem:[%s3 + $0x8] sm:$0xf]
        %v2063 = vld [vmem:[%s3 + $0xc] sm:$0xff]
        %v2064 = vld [vmem:[%s3 + $0x14] sm:$0xf]
        %v2065 = vld [vmem:[%s3 + $0x18] sm:$0xff]
        %v2066 = vld [vmem:[%s3 + $0x20] sm:$0xf]
        %v2067 = vld [vmem:[%s3 + $0x24] sm:$0xff]
        %v2068 = vld [vmem:[%s3 + $0x2c] sm:$0xf]
        %v2069 = vld [vmem:[%s3 + $0x30] sm:$0xff]
        %v2070 = vld [vmem:[%s3 + $0x38] sm:$0xf]
        %v2071 = vld [vmem:[%s3 + $0x3c] sm:$0xff]
        %v2072 = vld [vmem:[%s3 + $0x44] sm:$0xf]
        %v2073 = vld [vmem:[%s3 + $0x48] sm:$0xff]
        %v2074 = vld [vmem:[%s3 + $0x50] sm:$0xf]
        %v2075 = vld [vmem:[%s3 + $0x54] sm:$0xff]
        %v2076 = vld [vmem:[%s3 + $0x5c] sm:$0xf]
        %v2077 = vld [vmem:[%s3 + $0x60] sm:$0xff]
        %v2078 = vld [vmem:[%s3 + $0x68] sm:$0xf]
        %v2079 = vld [vmem:[%s3 + $0x6c] sm:$0xff]
        %v2080 = vld [vmem:[%s3 + $0x74] sm:$0xf]
        %v2081 = vld [vmem:[%s3 + $0x78] sm:$0xff]
        %v2082 = vld [vmem:[%s3 + $0x80] sm:$0xf]
        %v2083 = vld [vmem:[%s3 + $0x84] sm:$0xff]
        %v2084 = vld [vmem:[%s3 + $0x8c] sm:$0xf]
        %v2085 = vld [vmem:[%s3 + $0x90] sm:$0xff]
        %v2086 = vld [vmem:[%s3 + $0x98] sm:$0xf]
        %v2087 = vld [vmem:[%s3 + $0x9c] sm:$0xff]
        %v2088 = vld [vmem:[%s3 + $0xa4] sm:$0xf]
        %v2089 = vld [vmem:[%s3 + $0xa8] sm:$0xff]
        %v2090 = vld [vmem:[%s3 + $0xb0] sm:$0xf]
        %v2091 = vld [vmem:[%s3 + $0xb4] sm:$0xff]
        %v2092 = vld [vmem:[%s3 + $0xbc] sm:$0xf]
        %v2093 = vld [vmem:[%s4] sm:$0x7]
        %v2095 = vlaneseq
        %v2096 = vshrl.u32 %v2095, 7
        %v2097 = vsub.s32 0, %v2096
        %v2098 = vrot.slane %v2093, %v2097
        %v2099 = vlaneseq
        %v2100 = vshrl.u32 %v2099, 7
        %v2101 = vsub.s32 1, %v2100
        %v2102 = vrot.slane %v2093, %v2101
        %v2103 = vlaneseq
        %v2104 = vshrl.u32 %v2103, 7
        %v2105 = vsub.s32 2, %v2104
        %v2106 = vrot.slane %v2093, %v2105
        %v2142 = vunpack.c.l.b16 %v2061
        %v2143 = vunpack.c.h.b16 %v2061
        %v2144 = vunpack.c.l.b16 %v2062
        %v2145 = vunpack.c.l.b16 %v2063
        %v2146 = vunpack.c.h.b16 %v2063
        %v2147 = vunpack.c.l.b16 %v2064
        %v2148 = vunpack.c.l.b16 %v2065
        %v2149 = vunpack.c.h.b16 %v2065
        %v2150 = vunpack.c.l.b16 %v2066
        %v2151 = vunpack.c.l.b16 %v2067
        %v2152 = vunpack.c.h.b16 %v2067
        %v2153 = vunpack.c.l.b16 %v2068
        %v2154 = vunpack.c.l.b16 %v2069
        %v2155 = vunpack.c.h.b16 %v2069
        %v2156 = vunpack.c.l.b16 %v2070
        %v2157 = vunpack.c.l.b16 %v2071
        %v2158 = vunpack.c.h.b16 %v2071
        %v2159 = vunpack.c.l.b16 %v2072
        %v2160 = vunpack.c.l.b16 %v2073
        %v2161 = vunpack.c.h.b16 %v2073
        %v2162 = vunpack.c.l.b16 %v2074
        %v2163 = vunpack.c.l.b16 %v2075
        %v2164 = vunpack.c.h.b16 %v2075
        %v2165 = vunpack.c.l.b16 %v2076
        %v2166 = vunpack.c.l.b16 %v2077
        %v2167 = vunpack.c.h.b16 %v2077
        %v2168 = vunpack.c.l.b16 %v2078
        %v2169 = vunpack.c.l.b16 %v2079
        %v2170 = vunpack.c.h.b16 %v2079
        %v2171 = vunpack.c.l.b16 %v2080
        %v2172 = vunpack.c.l.b16 %v2081
        %v2173 = vunpack.c.h.b16 %v2081
        %v2174 = vunpack.c.l.b16 %v2082
        %v2175 = vunpack.c.l.b16 %v2083
        %v2176 = vunpack.c.h.b16 %v2083
        %v2177 = vunpack.c.l.b16 %v2084
        %v2178 = vunpack.c.l.b16 %v2085
        %v2179 = vunpack.c.h.b16 %v2085
        %v2180 = vunpack.c.l.b16 %v2086
        %v2181 = vunpack.c.l.b16 %v2087
        %v2182 = vunpack.c.h.b16 %v2087
        %v2183 = vunpack.c.l.b16 %v2088
        %v2184 = vunpack.c.l.b16 %v2089
        %v2185 = vunpack.c.h.b16 %v2089
        %v2186 = vunpack.c.l.b16 %v2090
        %v2187 = vunpack.c.l.b16 %v2091
        %v2188 = vunpack.c.h.b16 %v2091
        %v2189 = vunpack.c.l.b16 %v2092
        %v2190 = vpack.c.b16 %v2145, %v2142
        %v2191 = vpack.c.b16 %v2146, %v2143
        %v2192 = vpack.c.b16 %v2147, %v2144
        %v2193 = vpack.c.b16 %v2151, %v2148
        %v2194 = vpack.c.b16 %v2152, %v2149
        %v2195 = vpack.c.b16 %v2153, %v2150
        %v2196 = vpack.c.b16 %v2157, %v2154
        %v2197 = vpack.c.b16 %v2158, %v2155
        %v2198 = vpack.c.b16 %v2159, %v2156
        %v2199 = vpack.c.b16 %v2163, %v2160
        %v2200 = vpack.c.b16 %v2164, %v2161
        %v2201 = vpack.c.b16 %v2165, %v2162
        %v2202 = vpack.c.b16 %v2169, %v2166
        %v2203 = vpack.c.b16 %v2170, %v2167
        %v2204 = vpack.c.b16 %v2171, %v2168
        %v2205 = vpack.c.b16 %v2175, %v2172
        %v2206 = vpack.c.b16 %v2176, %v2173
        %v2207 = vpack.c.b16 %v2177, %v2174
        %v2208 = vpack.c.b16 %v2181, %v2178
        %v2209 = vpack.c.b16 %v2182, %v2179
        %v2210 = vpack.c.b16 %v2183, %v2180
        %v2211 = vpack.c.b16 %v2187, %v2184
        %v2212 = vpack.c.b16 %v2188, %v2185
        %v2213 = vpack.c.b16 %v2189, %v2186
        %2238 = vmatprep.subr.bf16.mxu0 %v2212
        %2239 = vmatpush1.bf16.msra.mxu0 %v2211
        %2240 = vmatprep.subr.bf16.mxu0 %v2209
        %2241 = vmatpush1.bf16.msra.mxu0 %v2208
        %2242 = vmatprep.subr.bf16.mxu0 %v2206
        %2243 = vmatpush1.bf16.msra.mxu0 %v2205
        %2244 = vmatprep.subr.bf16.mxu0 %v2203
        %2245 = vmatpush1.bf16.msra.mxu0 %v2202
        %2246 = vmatprep.subr.bf16.mxu0 %v2200
        %2247 = vmatpush1.bf16.msra.mxu0 %v2199
        %2248 = vmatprep.subr.bf16.mxu0 %v2197
        %2249 = vmatpush1.bf16.msra.mxu0 %v2196
        %2250 = vmatprep.subr.bf16.mxu0 %v2194
        %2251 = vmatpush1.bf16.msra.mxu0 %v2193
        %2252 = vmatprep.subr.bf16.mxu0 %v2191
        %2253 = vmatpush1.bf16.msra.mxu0 %v2190
        %2254 = vmatprep.subr.bf16.mxu0 0
        %2255 = vmatpush2.bf16.msra.mxu0 0
        %2256 = vmatprep.subr.bf16.mxu0 0
        %2257 = vmatpush2.bf16.msra.mxu0 0
        %2258 = vmatprep.subr.bf16.mxu0 0
        %2259 = vmatpush2.bf16.msra.mxu0 0
        %2260 = vmatprep.subr.bf16.mxu0 0
        %2261 = vmatpush2.bf16.msra.mxu0 0
        %2262 = vmatprep.subr.bf16.mxu0 0
        %2263 = vmatpush2.bf16.msra.mxu0 0
        %2264 = vmatprep.subr.bf16.mxu0 0
        %2265 = vmatpush2.bf16.msra.mxu0 0
        %2266 = vmatprep.subr.bf16.mxu0 0
        %2267 = vmatpush2.bf16.msra.mxu0 0
        %2268 = vmatprep.subr.bf16.mxu0 0
        %2269 = vmatpush2.bf16.msra.mxu0 0
        %2270 = vmatprep.mubr.bf16.mxu0 0
        %2271 = vmatmul.mubr.bf16.gmra.mxu0 %v2042
        %v2272 = vpop.f32.mrf.mxu0
        %v2273 = vadd.f32 %v2098, %v2272
        %v2274 = vpop.f32.mrf.mxu0
        %v2275 = vadd.f32 %v2102, %v2274
        %v2276 = vpop.f32.mrf.mxu0
        %v2277 = vadd.f32 %v2098, %v2276
        %v2278 = vpop.f32.mrf.mxu0
        %v2279 = vadd.f32 %v2102, %v2278
        %2280 = vmatprep.mubr.bf16.mxu0 0
        %2281 = vmatmul.mubr.bf16.gmra.mxu0 %v2043
        %v2282 = vpop.f32.mrf.mxu0
        %v2283 = vadd.f32 %v2098, %v2282
        %v2284 = vpop.f32.mrf.mxu0
        %v2285 = vadd.f32 %v2102, %v2284
        %v2286 = vpop.f32.mrf.mxu0
        %v2287 = vadd.f32 %v2098, %v2286
        %v2288 = vpop.f32.mrf.mxu0
        %v2289 = vadd.f32 %v2102, %v2288
        %2290 = vmatprep.mubr.bf16.mxu0 0
        %2291 = vmatmul.mubr.bf16.gmra.mxu0 %v2044
        %v2292 = vpop.f32.mrf.mxu0
        %v2293 = vadd.f32 %v2098, %v2292
        %v2294 = vpop.f32.mrf.mxu0
        %v2295 = vadd.f32 %v2102, %v2294
        %v2296 = vpop.f32.mrf.mxu0
        %v2297 = vadd.f32 %v2098, %v2296
        %v2298 = vpop.f32.mrf.mxu0
        %v2299 = vadd.f32 %v2102, %v2298
        %2300 = vmatprep.mubr.bf16.mxu0 0
        %2301 = vmatmul.mubr.bf16.gmra.mxu0 %v2045
        %v2302 = vpop.f32.mrf.mxu0
        %v2303 = vadd.f32 %v2098, %v2302
        %v2304 = vpop.f32.mrf.mxu0
        %v2305 = vadd.f32 %v2102, %v2304
        %v2306 = vpop.f32.mrf.mxu0
        %v2307 = vadd.f32 %v2098, %v2306
        %v2308 = vpop.f32.mrf.mxu0
        %v2309 = vadd.f32 %v2102, %v2308
        %2310 = vmatprep.mubr.bf16.mxu0 0
        %2311 = vmatmul.mubr.bf16.gmra.mxu0 %v2046
        %v2312 = vpop.f32.mrf.mxu0
        %v2313 = vadd.f32 %v2098, %v2312
        %v2314 = vpop.f32.mrf.mxu0
        %v2315 = vadd.f32 %v2102, %v2314
        %v2316 = vpop.f32.mrf.mxu0
        %v2317 = vadd.f32 %v2098, %v2316
        %v2318 = vpop.f32.mrf.mxu0
        %v2319 = vadd.f32 %v2102, %v2318
        %2320 = vmatprep.mubr.bf16.mxu0 0
        %2321 = vmatmul.mubr.bf16.gmra.mxu0 %v2047
        %v2322 = vpop.f32.mrf.mxu0
        %v2323 = vadd.f32 %v2098, %v2322
        %v2324 = vpop.f32.mrf.mxu0
        %v2325 = vadd.f32 %v2102, %v2324
        %v2326 = vpop.f32.mrf.mxu0
        %v2327 = vadd.f32 %v2098, %v2326
        %v2328 = vpop.f32.mrf.mxu0
        %v2329 = vadd.f32 %v2102, %v2328
        %2330 = vmatprep.mubr.bf16.mxu0 0
        %2331 = vmatmul.mubr.bf16.gmra.mxu0 %v2048
        %v2332 = vpop.f32.mrf.mxu0
        %v2333 = vadd.f32 %v2098, %v2332
        %v2334 = vpop.f32.mrf.mxu0
        %v2335 = vadd.f32 %v2102, %v2334
        %v2336 = vpop.f32.mrf.mxu0
        %v2337 = vadd.f32 %v2098, %v2336
        %v2338 = vpop.f32.mrf.mxu0
        %v2339 = vadd.f32 %v2102, %v2338
        %2340 = vmatprep.mubr.bf16.mxu0 0
        %2341 = vmatmul.mubr.bf16.gmra.mxu0 %v2049
        %v2342 = vpop.f32.mrf.mxu0
        %v2343 = vadd.f32 %v2098, %v2342
        %v2344 = vpop.f32.mrf.mxu0
        %v2345 = vadd.f32 %v2102, %v2344
        %v2346 = vpop.f32.mrf.mxu0
        %v2347 = vadd.f32 %v2098, %v2346
        %v2348 = vpop.f32.mrf.mxu0
        %v2349 = vadd.f32 %v2102, %v2348
        %2350 = vmatprep.mubr.bf16.mxu0 0
        %2351 = vmatmul.mubr.bf16.gmra.mxu0 %v2050
        %v2352 = vpop.f32.mrf.mxu0
        %v2353 = vadd.f32 %v2098, %v2352
        %v2354 = vpop.f32.mrf.mxu0
        %v2355 = vadd.f32 %v2102, %v2354
        %v2356 = vpop.f32.mrf.mxu0
        %v2357 = vadd.f32 %v2098, %v2356
        %v2358 = vpop.f32.mrf.mxu0
        %v2359 = vadd.f32 %v2102, %v2358
        %2360 = vmatprep.mubr.bf16.mxu0 0
        %2361 = vmatmul.mubr.bf16.gmra.mxu0 %v2051
        %v2362 = vpop.f32.mrf.mxu0
        %v2363 = vadd.f32 %v2098, %v2362
        %v2364 = vpop.f32.mrf.mxu0
        %v2365 = vadd.f32 %v2102, %v2364
        %v2366 = vpop.f32.mrf.mxu0
        %v2367 = vadd.f32 %v2098, %v2366
        %v2368 = vpop.f32.mrf.mxu0
        %v2369 = vadd.f32 %v2102, %v2368
        %2370 = vmatprep.mubr.bf16.mxu0 0
        %2371 = vmatmul.mubr.bf16.gmra.mxu0 %v2052
        %v2372 = vpop.f32.mrf.mxu0
        %v2373 = vadd.f32 %v2098, %v2372
        %v2374 = vpop.f32.mrf.mxu0
        %v2375 = vadd.f32 %v2102, %v2374
        %v2376 = vpop.f32.mrf.mxu0
        %v2377 = vadd.f32 %v2098, %v2376
        %v2378 = vpop.f32.mrf.mxu0
        %v2379 = vadd.f32 %v2102, %v2378
        %2380 = vmatprep.mubr.bf16.mxu0 0
        %2381 = vmatmul.mubr.bf16.gmra.mxu0 %v2053
        %v2382 = vpop.f32.mrf.mxu0
        %v2383 = vadd.f32 %v2098, %v2382
        %v2384 = vpop.f32.mrf.mxu0
        %v2385 = vadd.f32 %v2102, %v2384
        %v2386 = vpop.f32.mrf.mxu0
        %v2387 = vadd.f32 %v2098, %v2386
        %v2388 = vpop.f32.mrf.mxu0
        %v2389 = vadd.f32 %v2102, %v2388
        %2390 = vmatprep.mubr.bf16.mxu0 0
        %2391 = vmatmul.mubr.bf16.gmra.mxu0 %v2054
        %v2392 = vpop.f32.mrf.mxu0
        %v2393 = vadd.f32 %v2098, %v2392
        %v2394 = vpop.f32.mrf.mxu0
        %v2395 = vadd.f32 %v2102, %v2394
        %v2396 = vpop.f32.mrf.mxu0
        %v2397 = vadd.f32 %v2098, %v2396
        %v2398 = vpop.f32.mrf.mxu0
        %v2399 = vadd.f32 %v2102, %v2398
        %2400 = vmatprep.mubr.bf16.mxu0 0
        %2401 = vmatmul.mubr.bf16.gmra.mxu0 %v2055
        %v2402 = vpop.f32.mrf.mxu0
        %v2403 = vadd.f32 %v2098, %v2402
        %v2404 = vpop.f32.mrf.mxu0
        %v2405 = vadd.f32 %v2102, %v2404
        %v2406 = vpop.f32.mrf.mxu0
        %v2407 = vadd.f32 %v2098, %v2406
        %v2408 = vpop.f32.mrf.mxu0
        %v2409 = vadd.f32 %v2102, %v2408
        %2410 = vmatprep.mubr.bf16.mxu0 0
        %2411 = vmatmul.mubr.bf16.gmra.mxu0 %v2056
        %v2412 = vpop.f32.mrf.mxu0
        %v2413 = vadd.f32 %v2098, %v2412
        %v2414 = vpop.f32.mrf.mxu0
        %v2415 = vadd.f32 %v2102, %v2414
        %v2416 = vpop.f32.mrf.mxu0
        %v2417 = vadd.f32 %v2098, %v2416
        %v2418 = vpop.f32.mrf.mxu0
        %v2419 = vadd.f32 %v2102, %v2418
        %2420 = vmatprep.mubr.bf16.mxu0 0
        %2421 = vmatmul.mubr.bf16.gmra.mxu0 %v2057
        %v2422 = vpop.f32.mrf.mxu0
        %v2423 = vadd.f32 %v2098, %v2422
        %v2424 = vpop.f32.mrf.mxu0
        %v2425 = vadd.f32 %v2102, %v2424
        %v2426 = vpop.f32.mrf.mxu0
        %v2427 = vadd.f32 %v2098, %v2426
        %v2428 = vpop.f32.mrf.mxu0
        %v2429 = vadd.f32 %v2102, %v2428
        %2430 = vmatprep.mubr.bf16.mxu0 0
        %2431 = vmatmul.mubr.bf16.gmra.mxu0 %v2058
        %v2432 = vpop.f32.mrf.mxu0
        %v2433 = vadd.f32 %v2098, %v2432
        %v2434 = vpop.f32.mrf.mxu0
        %v2435 = vadd.f32 %v2102, %v2434
        %v2436 = vpop.f32.mrf.mxu0
        %v2437 = vadd.f32 %v2098, %v2436
        %v2438 = vpop.f32.mrf.mxu0
        %v2439 = vadd.f32 %v2102, %v2438
        %2440 = vmatprep.mubr.bf16.mxu0 0
        %2441 = vmatmul.mubr.bf16.gmra.mxu0 %v2059
        %v2442 = vpop.f32.mrf.mxu0
        %v2443 = vadd.f32 %v2098, %v2442
        %v2444 = vpop.f32.mrf.mxu0
        %v2445 = vadd.f32 %v2102, %v2444
        %v2446 = vpop.f32.mrf.mxu0
        %v2447 = vadd.f32 %v2098, %v2446
        %v2448 = vpop.f32.mrf.mxu0
        %v2449 = vadd.f32 %v2102, %v2448
        %2450 = vmatprep.mubr.bf16.mxu0 0
        %2451 = vmatmul.mubr.bf16.gmra.mxu0 %v2060
        %v2452 = vpop.f32.mrf.mxu0
        %v2453 = vadd.f32 %v2098, %v2452
        %v2454 = vpop.f32.mrf.mxu0
        %v2455 = vadd.f32 %v2102, %v2454
        %v2456 = vpop.f32.mrf.mxu0
        %v2457 = vadd.f32 %v2098, %v2456
        %v2458 = vpop.f32.mrf.mxu0
        %v2459 = vadd.f32 %v2102, %v2458
        %2460 = vdwg.mxu0
        %2461 = vmatprep.subr.bf16.mxu0 0
        %2462 = vmatpush1.bf16.msra.mxu0 %v2213
        %2463 = vmatprep.subr.bf16.mxu0 0
        %2464 = vmatpush1.bf16.msra.mxu0 %v2210
        %2465 = vmatprep.subr.bf16.mxu0 0
        %2466 = vmatpush1.bf16.msra.mxu0 %v2207
        %2467 = vmatprep.subr.bf16.mxu0 0
        %2468 = vmatpush1.bf16.msra.mxu0 %v2204
        %2469 = vmatprep.subr.bf16.mxu0 0
        %2470 = vmatpush1.bf16.msra.mxu0 %v2201
        %2471 = vmatprep.subr.bf16.mxu0 0
        %2472 = vmatpush1.bf16.msra.mxu0 %v2198
        %2473 = vmatprep.subr.bf16.mxu0 0
        %2474 = vmatpush1.bf16.msra.mxu0 %v2195
        %2475 = vmatprep.subr.bf16.mxu0 0
        %2476 = vmatpush1.bf16.msra.mxu0 %v2192
        %2477 = vmatprep.subr.bf16.mxu0 0
        %2478 = vmatpush2.bf16.msra.mxu0 0
        %2479 = vmatprep.subr.bf16.mxu0 0
        %2480 = vmatpush2.bf16.msra.mxu0 0
        %2481 = vmatprep.subr.bf16.mxu0 0
        %2482 = vmatpush2.bf16.msra.mxu0 0
        %2483 = vmatprep.subr.bf16.mxu0 0
        %2484 = vmatpush2.bf16.msra.mxu0 0
        %2485 = vmatprep.subr.bf16.mxu0 0
        %2486 = vmatpush2.bf16.msra.mxu0 0
        %2487 = vmatprep.subr.bf16.mxu0 0
        %2488 = vmatpush2.bf16.msra.mxu0 0
        %2489 = vmatprep.subr.bf16.mxu0 0
        %2490 = vmatpush2.bf16.msra.mxu0 0
        %2491 = vmatprep.subr.bf16.mxu0 0
        %2492 = vmatpush2.bf16.msra.mxu0 0
        %2493 = vmatprep.mubr.bf16.mxu0 0
        %2494 = vmatmul.mubr.bf16.gmra.mxu0 %v2042
        %v2495 = vpop.f32.mrf.mxu0
        %v2496 = vadd.f32 %v2106, %v2495
        %v2497 = vpop.f32.mrf.mxu0
        %v2498 = vpop.f32.mrf.mxu0
        %v2499 = vadd.f32 %v2106, %v2498
        %v2500 = vpop.f32.mrf.mxu0
        %2501 = vmatprep.mubr.bf16.mxu0 0
        %2502 = vmatmul.mubr.bf16.gmra.mxu0 %v2043
        %v2503 = vpop.f32.mrf.mxu0
        %v2504 = vadd.f32 %v2106, %v2503
        %v2505 = vpop.f32.mrf.mxu0
        %v2506 = vpop.f32.mrf.mxu0
        %v2507 = vadd.f32 %v2106, %v2506
        %v2508 = vpop.f32.mrf.mxu0
        %2509 = vmatprep.mubr.bf16.mxu0 0
        %2510 = vmatmul.mubr.bf16.gmra.mxu0 %v2044
        %v2511 = vpop.f32.mrf.mxu0
        %v2512 = vadd.f32 %v2106, %v2511
        %v2513 = vpop.f32.mrf.mxu0
        %v2514 = vpop.f32.mrf.mxu0
        %v2515 = vadd.f32 %v2106, %v2514
        %v2516 = vpop.f32.mrf.mxu0
        %2517 = vmatprep.mubr.bf16.mxu0 0
        %2518 = vmatmul.mubr.bf16.gmra.mxu0 %v2045
        %v2519 = vpop.f32.mrf.mxu0
        %v2520 = vadd.f32 %v2106, %v2519
        %v2521 = vpop.f32.mrf.mxu0
        %v2522 = vpop.f32.mrf.mxu0
        %v2523 = vadd.f32 %v2106, %v2522
        %v2524 = vpop.f32.mrf.mxu0
        %2525 = vmatprep.mubr.bf16.mxu0 0
        %2526 = vmatmul.mubr.bf16.gmra.mxu0 %v2046
        %v2527 = vpop.f32.mrf.mxu0
        %v2528 = vadd.f32 %v2106, %v2527
        %v2529 = vpop.f32.mrf.mxu0
        %v2530 = vpop.f32.mrf.mxu0
        %v2531 = vadd.f32 %v2106, %v2530
        %v2532 = vpop.f32.mrf.mxu0
        %2533 = vmatprep.mubr.bf16.mxu0 0
        %2534 = vmatmul.mubr.bf16.gmra.mxu0 %v2047
        %v2535 = vpop.f32.mrf.mxu0
        %v2536 = vadd.f32 %v2106, %v2535
        %v2537 = vpop.f32.mrf.mxu0
        %v2538 = vpop.f32.mrf.mxu0
        %v2539 = vadd.f32 %v2106, %v2538
        %v2540 = vpop.f32.mrf.mxu0
        %2541 = vmatprep.mubr.bf16.mxu0 0
        %2542 = vmatmul.mubr.bf16.gmra.mxu0 %v2048
        %v2543 = vpop.f32.mrf.mxu0
        %v2544 = vadd.f32 %v2106, %v2543
        %v2545 = vpop.f32.mrf.mxu0
        %v2546 = vpop.f32.mrf.mxu0
        %v2547 = vadd.f32 %v2106, %v2546
        %v2548 = vpop.f32.mrf.mxu0
        %2549 = vmatprep.mubr.bf16.mxu0 0
        %2550 = vmatmul.mubr.bf16.gmra.mxu0 %v2049
        %v2551 = vpop.f32.mrf.mxu0
        %v2552 = vadd.f32 %v2106, %v2551
        %v2553 = vpop.f32.mrf.mxu0
        %v2554 = vpop.f32.mrf.mxu0
        %v2555 = vadd.f32 %v2106, %v2554
        %v2556 = vpop.f32.mrf.mxu0
        %2557 = vmatprep.mubr.bf16.mxu0 0
        %2558 = vmatmul.mubr.bf16.gmra.mxu0 %v2050
        %v2559 = vpop.f32.mrf.mxu0
        %v2560 = vadd.f32 %v2106, %v2559
        %v2561 = vpop.f32.mrf.mxu0
        %v2562 = vpop.f32.mrf.mxu0
        %v2563 = vadd.f32 %v2106, %v2562
        %v2564 = vpop.f32.mrf.mxu0
        %2565 = vmatprep.mubr.bf16.mxu0 0
        %2566 = vmatmul.mubr.bf16.gmra.mxu0 %v2051
        %v2567 = vpop.f32.mrf.mxu0
        %v2568 = vadd.f32 %v2106, %v2567
        %v2569 = vpop.f32.mrf.mxu0
        %v2570 = vpop.f32.mrf.mxu0
        %v2571 = vadd.f32 %v2106, %v2570
        %v2572 = vpop.f32.mrf.mxu0
        %2573 = vmatprep.mubr.bf16.mxu0 0
        %2574 = vmatmul.mubr.bf16.gmra.mxu0 %v2052
        %v2575 = vpop.f32.mrf.mxu0
        %v2576 = vadd.f32 %v2106, %v2575
        %v2577 = vpop.f32.mrf.mxu0
        %v2578 = vpop.f32.mrf.mxu0
        %v2579 = vadd.f32 %v2106, %v2578
        %v2580 = vpop.f32.mrf.mxu0
        %2581 = vmatprep.mubr.bf16.mxu0 0
        %2582 = vmatmul.mubr.bf16.gmra.mxu0 %v2053
        %v2583 = vpop.f32.mrf.mxu0
        %v2584 = vadd.f32 %v2106, %v2583
        %v2585 = vpop.f32.mrf.mxu0
        %v2586 = vpop.f32.mrf.mxu0
        %v2587 = vadd.f32 %v2106, %v2586
        %v2588 = vpop.f32.mrf.mxu0
        %2589 = vmatprep.mubr.bf16.mxu0 0
        %2590 = vmatmul.mubr.bf16.gmra.mxu0 %v2054
        %v2591 = vpop.f32.mrf.mxu0
        %v2592 = vadd.f32 %v2106, %v2591
        %v2593 = vpop.f32.mrf.mxu0
        %v2594 = vpop.f32.mrf.mxu0
        %v2595 = vadd.f32 %v2106, %v2594
        %v2596 = vpop.f32.mrf.mxu0
        %2597 = vmatprep.mubr.bf16.mxu0 0
        %2598 = vmatmul.mubr.bf16.gmra.mxu0 %v2055
        %v2599 = vpop.f32.mrf.mxu0
        %v2600 = vadd.f32 %v2106, %v2599
        %v2601 = vpop.f32.mrf.mxu0
        %v2602 = vpop.f32.mrf.mxu0
        %v2603 = vadd.f32 %v2106, %v2602
        %v2604 = vpop.f32.mrf.mxu0
        %2605 = vmatprep.mubr.bf16.mxu0 0
        %2606 = vmatmul.mubr.bf16.gmra.mxu0 %v2056
        %v2607 = vpop.f32.mrf.mxu0
        %v2608 = vadd.f32 %v2106, %v2607
        %v2609 = vpop.f32.mrf.mxu0
        %v2610 = vpop.f32.mrf.mxu0
        %v2611 = vadd.f32 %v2106, %v2610
        %v2612 = vpop.f32.mrf.mxu0
        %2613 = vmatprep.mubr.bf16.mxu0 0
        %2614 = vmatmul.mubr.bf16.gmra.mxu0 %v2057
        %v2615 = vpop.f32.mrf.mxu0
        %v2616 = vadd.f32 %v2106, %v2615
        %v2617 = vpop.f32.mrf.mxu0
        %v2618 = vpop.f32.mrf.mxu0
        %v2619 = vadd.f32 %v2106, %v2618
        %v2620 = vpop.f32.mrf.mxu0
        %2621 = vmatprep.mubr.bf16.mxu0 0
        %2622 = vmatmul.mubr.bf16.gmra.mxu0 %v2058
        %v2623 = vpop.f32.mrf.mxu0
        %v2624 = vadd.f32 %v2106, %v2623
        %v2625 = vpop.f32.mrf.mxu0
        %v2626 = vpop.f32.mrf.mxu0
        %v2627 = vadd.f32 %v2106, %v2626
        %v2628 = vpop.f32.mrf.mxu0
        %2629 = vmatprep.mubr.bf16.mxu0 0
        %2630 = vmatmul.mubr.bf16.gmra.mxu0 %v2059
        %v2631 = vpop.f32.mrf.mxu0
        %v2632 = vadd.f32 %v2106, %v2631
        %v2633 = vpop.f32.mrf.mxu0
        %v2634 = vpop.f32.mrf.mxu0
        %v2635 = vadd.f32 %v2106, %v2634
        %v2636 = vpop.f32.mrf.mxu0
        %2637 = vmatprep.mubr.bf16.mxu0 0
        %2638 = vmatmul.mubr.bf16.gmra.mxu0 %v2060
        %v2639 = vpop.f32.mrf.mxu0
        %v2640 = vadd.f32 %v2106, %v2639
        %v2641 = vpop.f32.mrf.mxu0
        %v2642 = vpop.f32.mrf.mxu0
        %v2643 = vadd.f32 %v2106, %v2642
        %v2644 = vpop.f32.mrf.mxu0
        %2645 = vdwg.mxu0
        %v2646 = vsub.f32 0.0, %v2273
        %v2647 = vsub.f32 0.0, %v2275
        %v2648 = vsub.f32 0.0, %v2496
        %v2649 = vsub.f32 0.0, %v2277
        %v2650 = vsub.f32 0.0, %v2279
        %v2651 = vsub.f32 0.0, %v2499
        %v2652 = vsub.f32 0.0, %v2283
        %v2653 = vsub.f32 0.0, %v2285
        %v2654 = vsub.f32 0.0, %v2504
        %v2655 = vsub.f32 0.0, %v2287
        %v2656 = vsub.f32 0.0, %v2289
        %v2657 = vsub.f32 0.0, %v2507
        %v2658 = vsub.f32 0.0, %v2293
        %v2659 = vsub.f32 0.0, %v2295
        %v2660 = vsub.f32 0.0, %v2512
        %v2661 = vsub.f32 0.0, %v2297
        %v2662 = vsub.f32 0.0, %v2299
        %v2663 = vsub.f32 0.0, %v2515
        %v2664 = vsub.f32 0.0, %v2303
        %v2665 = vsub.f32 0.0, %v2305
        %v2666 = vsub.f32 0.0, %v2520
        %v2667 = vsub.f32 0.0, %v2307
        %v2668 = vsub.f32 0.0, %v2309
        %v2669 = vsub.f32 0.0, %v2523
        %v2670 = vsub.f32 0.0, %v2313
        %v2671 = vsub.f32 0.0, %v2315
        %v2672 = vsub.f32 0.0, %v2528
        %v2673 = vsub.f32 0.0, %v2317
        %v2674 = vsub.f32 0.0, %v2319
        %v2675 = vsub.f32 0.0, %v2531
        %v2676 = vsub.f32 0.0, %v2323
        %v2677 = vsub.f32 0.0, %v2325
        %v2678 = vsub.f32 0.0, %v2536
        %v2679 = vsub.f32 0.0, %v2327
        %v2680 = vsub.f32 0.0, %v2329
        %v2681 = vsub.f32 0.0, %v2539
        %v2682 = vsub.f32 0.0, %v2333
        %v2683 = vsub.f32 0.0, %v2335
        %v2684 = vsub.f32 0.0, %v2544
        %v2685 = vsub.f32 0.0, %v2337
        %v2686 = vsub.f32 0.0, %v2339
        %v2687 = vsub.f32 0.0, %v2547
        %v2688 = vsub.f32 0.0, %v2343
        %v2689 = vsub.f32 0.0, %v2345
        %v2690 = vsub.f32 0.0, %v2552
        %v2691 = vsub.f32 0.0, %v2347
        %v2692 = vsub.f32 0.0, %v2349
        %v2693 = vsub.f32 0.0, %v2555
        %v2694 = vsub.f32 0.0, %v2353
        %v2695 = vsub.f32 0.0, %v2355
        %v2696 = vsub.f32 0.0, %v2560
        %v2697 = vsub.f32 0.0, %v2357
        %v2698 = vsub.f32 0.0, %v2359
        %v2699 = vsub.f32 0.0, %v2563
        %v2700 = vsub.f32 0.0, %v2363
        %v2701 = vsub.f32 0.0, %v2365
        %v2702 = vsub.f32 0.0, %v2568
        %v2703 = vsub.f32 0.0, %v2367
        %v2704 = vsub.f32 0.0, %v2369
        %v2705 = vsub.f32 0.0, %v2571
        %v2706 = vsub.f32 0.0, %v2373
        %v2707 = vsub.f32 0.0, %v2375
        %v2708 = vsub.f32 0.0, %v2576
        %v2709 = vsub.f32 0.0, %v2377
        %v2710 = vsub.f32 0.0, %v2379
        %v2711 = vsub.f32 0.0, %v2579
        %v2712 = vsub.f32 0.0, %v2383
        %v2713 = vsub.f32 0.0, %v2385
        %v2714 = vsub.f32 0.0, %v2584
        %v2715 = vsub.f32 0.0, %v2387
        %v2716 = vsub.f32 0.0, %v2389
        %v2717 = vsub.f32 0.0, %v2587
        %v2718 = vsub.f32 0.0, %v2393
        %v2719 = vsub.f32 0.0, %v2395
        %v2720 = vsub.f32 0.0, %v2592
        %v2721 = vsub.f32 0.0, %v2397
        %v2722 = vsub.f32 0.0, %v2399
        %v2723 = vsub.f32 0.0, %v2595
        %v2724 = vsub.f32 0.0, %v2403
        %v2725 = vsub.f32 0.0, %v2405
        %v2726 = vsub.f32 0.0, %v2600
        %v2727 = vsub.f32 0.0, %v2407
        %v2728 = vsub.f32 0.0, %v2409
        %v2729 = vsub.f32 0.0, %v2603
        %v2730 = vsub.f32 0.0, %v2413
        %v2731 = vsub.f32 0.0, %v2415
        %v2732 = vsub.f32 0.0, %v2608
        %v2733 = vsub.f32 0.0, %v2417
        %v2734 = vsub.f32 0.0, %v2419
        %v2735 = vsub.f32 0.0, %v2611
        %v2736 = vsub.f32 0.0, %v2423
        %v2737 = vsub.f32 0.0, %v2425
        %v2738 = vsub.f32 0.0, %v2616
        %v2739 = vsub.f32 0.0, %v2427
        %v2740 = vsub.f32 0.0, %v2429
        %v2741 = vsub.f32 0.0, %v2619
        %v2742 = vsub.f32 0.0, %v2433
        %v2743 = vsub.f32 0.0, %v2435
        %v2744 = vsub.f32 0.0, %v2624
        %v2745 = vsub.f32 0.0, %v2437
        %v2746 = vsub.f32 0.0, %v2439
        %v2747 = vsub.f32 0.0, %v2627
        %v2748 = vsub.f32 0.0, %v2443
        %v2749 = vsub.f32 0.0, %v2445
        %v2750 = vsub.f32 0.0, %v2632
        %v2751 = vsub.f32 0.0, %v2447
        %v2752 = vsub.f32 0.0, %v2449
        %v2753 = vsub.f32 0.0, %v2635
        %v2754 = vsub.f32 0.0, %v2453
        %v2755 = vsub.f32 0.0, %v2455
        %v2756 = vsub.f32 0.0, %v2640
        %v2757 = vsub.f32 0.0, %v2457
        %v2758 = vsub.f32 0.0, %v2459
        %v2759 = vsub.f32 0.0, %v2643
        %v2760 = vmul.f32 %v2646, 1.442695
        %v2761 = vpow.pop %v2760
        %v2762 = vmul.f32 %v2647, 1.442695
        %v2763 = vpow.pop %v2762
        %v2764 = vmul.f32 %v2648, 1.442695
        %v2765 = vpow.pop %v2764
        %v2766 = vmul.f32 %v2649, 1.442695
        %v2767 = vpow.pop %v2766
        %v2768 = vmul.f32 %v2650, 1.442695
        %v2769 = vpow.pop %v2768
        %v2770 = vmul.f32 %v2651, 1.442695
        %v2771 = vpow.pop %v2770
        %v2772 = vmul.f32 %v2652, 1.442695
        %v2773 = vpow.pop %v2772
        %v2774 = vmul.f32 %v2653, 1.442695
        %v2775 = vpow.pop %v2774
        %v2776 = vmul.f32 %v2654, 1.442695
        %v2777 = vpow.pop %v2776
        %v2778 = vmul.f32 %v2655, 1.442695
        %v2779 = vpow.pop %v2778
        %v2780 = vmul.f32 %v2656, 1.442695
        %v2781 = vpow.pop %v2780
        %v2782 = vmul.f32 %v2657, 1.442695
        %v2783 = vpow.pop %v2782
        %v2784 = vmul.f32 %v2658, 1.442695
        %v2785 = vpow.pop %v2784
        %v2786 = vmul.f32 %v2659, 1.442695
        %v2787 = vpow.pop %v2786
        %v2788 = vmul.f32 %v2660, 1.442695
        %v2789 = vpow.pop %v2788
        %v2790 = vmul.f32 %v2661, 1.442695
        %v2791 = vpow.pop %v2790
        %v2792 = vmul.f32 %v2662, 1.442695
        %v2793 = vpow.pop %v2792
        %v2794 = vmul.f32 %v2663, 1.442695
        %v2795 = vpow.pop %v2794
        %v2796 = vmul.f32 %v2664, 1.442695
        %v2797 = vpow.pop %v2796
        %v2798 = vmul.f32 %v2665, 1.442695
        %v2799 = vpow.pop %v2798
        %v2800 = vmul.f32 %v2666, 1.442695
        %v2801 = vpow.pop %v2800
        %v2802 = vmul.f32 %v2667, 1.442695
        %v2803 = vpow.pop %v2802
        %v2804 = vmul.f32 %v2668, 1.442695
        %v2805 = vpow.pop %v2804
        %v2806 = vmul.f32 %v2669, 1.442695
        %v2807 = vpow.pop %v2806
        %v2808 = vmul.f32 %v2670, 1.442695
        %v2809 = vpow.pop %v2808
        %v2810 = vmul.f32 %v2671, 1.442695
        %v2811 = vpow.pop %v2810
        %v2812 = vmul.f32 %v2672, 1.442695
        %v2813 = vpow.pop %v2812
        %v2814 = vmul.f32 %v2673, 1.442695
        %v2815 = vpow.pop %v2814
        %v2816 = vmul.f32 %v2674, 1.442695
        %v2817 = vpow.pop %v2816
        %v2818 = vmul.f32 %v2675, 1.442695
        %v2819 = vpow.pop %v2818
        %v2820 = vmul.f32 %v2676, 1.442695
        %v2821 = vpow.pop %v2820
        %v2822 = vmul.f32 %v2677, 1.442695
        %v2823 = vpow.pop %v2822
        %v2824 = vmul.f32 %v2678, 1.442695
        %v2825 = vpow.pop %v2824
        %v2826 = vmul.f32 %v2679, 1.442695
        %v2827 = vpow.pop %v2826
        %v2828 = vmul.f32 %v2680, 1.442695
        %v2829 = vpow.pop %v2828
        %v2830 = vmul.f32 %v2681, 1.442695
        %v2831 = vpow.pop %v2830
        %v2832 = vmul.f32 %v2682, 1.442695
        %v2833 = vpow.pop %v2832
        %v2834 = vmul.f32 %v2683, 1.442695
        %v2835 = vpow.pop %v2834
        %v2836 = vmul.f32 %v2684, 1.442695
        %v2837 = vpow.pop %v2836
        %v2838 = vmul.f32 %v2685, 1.442695
        %v2839 = vpow.pop %v2838
        %v2840 = vmul.f32 %v2686, 1.442695
        %v2841 = vpow.pop %v2840
        %v2842 = vmul.f32 %v2687, 1.442695
        %v2843 = vpow.pop %v2842
        %v2844 = vmul.f32 %v2688, 1.442695
        %v2845 = vpow.pop %v2844
        %v2846 = vmul.f32 %v2689, 1.442695
        %v2847 = vpow.pop %v2846
        %v2848 = vmul.f32 %v2690, 1.442695
        %v2849 = vpow.pop %v2848
        %v2850 = vmul.f32 %v2691, 1.442695
        %v2851 = vpow.pop %v2850
        %v2852 = vmul.f32 %v2692, 1.442695
        %v2853 = vpow.pop %v2852
        %v2854 = vmul.f32 %v2693, 1.442695
        %v2855 = vpow.pop %v2854
        %v2856 = vmul.f32 %v2694, 1.442695
        %v2857 = vpow.pop %v2856
        %v2858 = vmul.f32 %v2695, 1.442695
        %v2859 = vpow.pop %v2858
        %v2860 = vmul.f32 %v2696, 1.442695
        %v2861 = vpow.pop %v2860
        %v2862 = vmul.f32 %v2697, 1.442695
        %v2863 = vpow.pop %v2862
        %v2864 = vmul.f32 %v2698, 1.442695
        %v2865 = vpow.pop %v2864
        %v2866 = vmul.f32 %v2699, 1.442695
        %v2867 = vpow.pop %v2866
        %v2868 = vmul.f32 %v2700, 1.442695
        %v2869 = vpow.pop %v2868
        %v2870 = vmul.f32 %v2701, 1.442695
        %v2871 = vpow.pop %v2870
        %v2872 = vmul.f32 %v2702, 1.442695
        %v2873 = vpow.pop %v2872
        %v2874 = vmul.f32 %v2703, 1.442695
        %v2875 = vpow.pop %v2874
        %v2876 = vmul.f32 %v2704, 1.442695
        %v2877 = vpow.pop %v2876
        %v2878 = vmul.f32 %v2705, 1.442695
        %v2879 = vpow.pop %v2878
        %v2880 = vmul.f32 %v2706, 1.442695
        %v2881 = vpow.pop %v2880
        %v2882 = vmul.f32 %v2707, 1.442695
        %v2883 = vpow.pop %v2882
        %v2884 = vmul.f32 %v2708, 1.442695
        %v2885 = vpow.pop %v2884
        %v2886 = vmul.f32 %v2709, 1.442695
        %v2887 = vpow.pop %v2886
        %v2888 = vmul.f32 %v2710, 1.442695
        %v2889 = vpow.pop %v2888
        %v2890 = vmul.f32 %v2711, 1.442695
        %v2891 = vpow.pop %v2890
        %v2892 = vmul.f32 %v2712, 1.442695
        %v2893 = vpow.pop %v2892
        %v2894 = vmul.f32 %v2713, 1.442695
        %v2895 = vpow.pop %v2894
        %v2896 = vmul.f32 %v2714, 1.442695
        %v2897 = vpow.pop %v2896
        %v2898 = vmul.f32 %v2715, 1.442695
        %v2899 = vpow.pop %v2898
        %v2900 = vmul.f32 %v2716, 1.442695
        %v2901 = vpow.pop %v2900
        %v2902 = vmul.f32 %v2717, 1.442695
        %v2903 = vpow.pop %v2902
        %v2904 = vmul.f32 %v2718, 1.442695
        %v2905 = vpow.pop %v2904
        %v2906 = vmul.f32 %v2719, 1.442695
        %v2907 = vpow.pop %v2906
        %v2908 = vmul.f32 %v2720, 1.442695
        %v2909 = vpow.pop %v2908
        %v2910 = vmul.f32 %v2721, 1.442695
        %v2911 = vpow.pop %v2910
        %v2912 = vmul.f32 %v2722, 1.442695
        %v2913 = vpow.pop %v2912
        %v2914 = vmul.f32 %v2723, 1.442695
        %v2915 = vpow.pop %v2914
        %v2916 = vmul.f32 %v2724, 1.442695
        %v2917 = vpow.pop %v2916
        %v2918 = vmul.f32 %v2725, 1.442695
        %v2919 = vpow.pop %v2918
        %v2920 = vmul.f32 %v2726, 1.442695
        %v2921 = vpow.pop %v2920
        %v2922 = vmul.f32 %v2727, 1.442695
        %v2923 = vpow.pop %v2922
        %v2924 = vmul.f32 %v2728, 1.442695
        %v2925 = vpow.pop %v2924
        %v2926 = vmul.f32 %v2729, 1.442695
        %v2927 = vpow.pop %v2926
        %v2928 = vmul.f32 %v2730, 1.442695
        %v2929 = vpow.pop %v2928
        %v2930 = vmul.f32 %v2731, 1.442695
        %v2931 = vpow.pop %v2930
        %v2932 = vmul.f32 %v2732, 1.442695
        %v2933 = vpow.pop %v2932
        %v2934 = vmul.f32 %v2733, 1.442695
        %v2935 = vpow.pop %v2934
        %v2936 = vmul.f32 %v2734, 1.442695
        %v2937 = vpow.pop %v2936
        %v2938 = vmul.f32 %v2735, 1.442695
        %v2939 = vpow.pop %v2938
        %v2940 = vmul.f32 %v2736, 1.442695
        %v2941 = vpow.pop %v2940
        %v2942 = vmul.f32 %v2737, 1.442695
        %v2943 = vpow.pop %v2942
        %v2944 = vmul.f32 %v2738, 1.442695
        %v2945 = vpow.pop %v2944
        %v2946 = vmul.f32 %v2739, 1.442695
        %v2947 = vpow.pop %v2946
        %v2948 = vmul.f32 %v2740, 1.442695
        %v2949 = vpow.pop %v2948
        %v2950 = vmul.f32 %v2741, 1.442695
        %v2951 = vpow.pop %v2950
        %v2952 = vmul.f32 %v2742, 1.442695
        %v2953 = vpow.pop %v2952
        %v2954 = vmul.f32 %v2743, 1.442695
        %v2955 = vpow.pop %v2954
        %v2956 = vmul.f32 %v2744, 1.442695
        %v2957 = vpow.pop %v2956
        %v2958 = vmul.f32 %v2745, 1.442695
        %v2959 = vpow.pop %v2958
        %v2960 = vmul.f32 %v2746, 1.442695
        %v2961 = vpow.pop %v2960
        %v2962 = vmul.f32 %v2747, 1.442695
        %v2963 = vpow.pop %v2962
        %v2964 = vmul.f32 %v2748, 1.442695
        %v2965 = vpow.pop %v2964
        %v2966 = vmul.f32 %v2749, 1.442695
        %v2967 = vpow.pop %v2966
        %v2968 = vmul.f32 %v2750, 1.442695
        %v2969 = vpow.pop %v2968
        %v2970 = vmul.f32 %v2751, 1.442695
        %v2971 = vpow.pop %v2970
        %v2972 = vmul.f32 %v2752, 1.442695
        %v2973 = vpow.pop %v2972
        %v2974 = vmul.f32 %v2753, 1.442695
        %v2975 = vpow.pop %v2974
        %v2976 = vmul.f32 %v2754, 1.442695
        %v2977 = vpow.pop %v2976
        %v2978 = vmul.f32 %v2755, 1.442695
        %v2979 = vpow.pop %v2978
        %v2980 = vmul.f32 %v2756, 1.442695
        %v2981 = vpow.pop %v2980
        %v2982 = vmul.f32 %v2757, 1.442695
        %v2983 = vpow.pop %v2982
        %v2984 = vmul.f32 %v2758, 1.442695
        %v2985 = vpow.pop %v2984
        %v2986 = vmul.f32 %v2759, 1.442695
        %v2987 = vpow.pop %v2986
        %v2988 = vadd.f32 %v2761, 1.0
        %v2989 = vadd.f32 %v2763, 1.0
        %v2990 = vadd.f32 %v2765, 1.0
        %v2991 = vadd.f32 %v2767, 1.0
        %v2992 = vadd.f32 %v2769, 1.0
        %v2993 = vadd.f32 %v2771, 1.0
        %v2994 = vadd.f32 %v2773, 1.0
        %v2995 = vadd.f32 %v2775, 1.0
        %v2996 = vadd.f32 %v2777, 1.0
        %v2997 = vadd.f32 %v2779, 1.0
        %v2998 = vadd.f32 %v2781, 1.0
        %v2999 = vadd.f32 %v2783, 1.0
        %v3000 = vadd.f32 %v2785, 1.0
        %v3001 = vadd.f32 %v2787, 1.0
        %v3002 = vadd.f32 %v2789, 1.0
        %v3003 = vadd.f32 %v2791, 1.0
        %v3004 = vadd.f32 %v2793, 1.0
        %v3005 = vadd.f32 %v2795, 1.0
        %v3006 = vadd.f32 %v2797, 1.0
        %v3007 = vadd.f32 %v2799, 1.0
        %v3008 = vadd.f32 %v2801, 1.0
        %v3009 = vadd.f32 %v2803, 1.0
        %v3010 = vadd.f32 %v2805, 1.0
        %v3011 = vadd.f32 %v2807, 1.0
        %v3012 = vadd.f32 %v2809, 1.0
        %v3013 = vadd.f32 %v2811, 1.0
        %v3014 = vadd.f32 %v2813, 1.0
        %v3015 = vadd.f32 %v2815, 1.0
        %v3016 = vadd.f32 %v2817, 1.0
        %v3017 = vadd.f32 %v2819, 1.0
        %v3018 = vadd.f32 %v2821, 1.0
        %v3019 = vadd.f32 %v2823, 1.0
        %v3020 = vadd.f32 %v2825, 1.0
        %v3021 = vadd.f32 %v2827, 1.0
        %v3022 = vadd.f32 %v2829, 1.0
        %v3023 = vadd.f32 %v2831, 1.0
        %v3024 = vadd.f32 %v2833, 1.0
        %v3025 = vadd.f32 %v2835, 1.0
        %v3026 = vadd.f32 %v2837, 1.0
        %v3027 = vadd.f32 %v2839, 1.0
        %v3028 = vadd.f32 %v2841, 1.0
        %v3029 = vadd.f32 %v2843, 1.0
        %v3030 = vadd.f32 %v2845, 1.0
        %v3031 = vadd.f32 %v2847, 1.0
        %v3032 = vadd.f32 %v2849, 1.0
        %v3033 = vadd.f32 %v2851, 1.0
        %v3034 = vadd.f32 %v2853, 1.0
        %v3035 = vadd.f32 %v2855, 1.0
        %v3036 = vadd.f32 %v2857, 1.0
        %v3037 = vadd.f32 %v2859, 1.0
        %v3038 = vadd.f32 %v2861, 1.0
        %v3039 = vadd.f32 %v2863, 1.0
        %v3040 = vadd.f32 %v2865, 1.0
        %v3041 = vadd.f32 %v2867, 1.0
        %v3042 = vadd.f32 %v2869, 1.0
        %v3043 = vadd.f32 %v2871, 1.0
        %v3044 = vadd.f32 %v2873, 1.0
        %v3045 = vadd.f32 %v2875, 1.0
        %v3046 = vadd.f32 %v2877, 1.0
        %v3047 = vadd.f32 %v2879, 1.0
        %v3048 = vadd.f32 %v2881, 1.0
        %v3049 = vadd.f32 %v2883, 1.0
        %v3050 = vadd.f32 %v2885, 1.0
        %v3051 = vadd.f32 %v2887, 1.0
        %v3052 = vadd.f32 %v2889, 1.0
        %v3053 = vadd.f32 %v2891, 1.0
        %v3054 = vadd.f32 %v2893, 1.0
        %v3055 = vadd.f32 %v2895, 1.0
        %v3056 = vadd.f32 %v2897, 1.0
        %v3057 = vadd.f32 %v2899, 1.0
        %v3058 = vadd.f32 %v2901, 1.0
        %v3059 = vadd.f32 %v2903, 1.0
        %v3060 = vadd.f32 %v2905, 1.0
        %v3061 = vadd.f32 %v2907, 1.0
        %v3062 = vadd.f32 %v2909, 1.0
        %v3063 = vadd.f32 %v2911, 1.0
        %v3064 = vadd.f32 %v2913, 1.0
        %v3065 = vadd.f32 %v2915, 1.0
        %v3066 = vadd.f32 %v2917, 1.0
        %v3067 = vadd.f32 %v2919, 1.0
        %v3068 = vadd.f32 %v2921, 1.0
        %v3069 = vadd.f32 %v2923, 1.0
        %v3070 = vadd.f32 %v2925, 1.0
        %v3071 = vadd.f32 %v2927, 1.0
        %v3072 = vadd.f32 %v2929, 1.0
        %v3073 = vadd.f32 %v2931, 1.0
        %v3074 = vadd.f32 %v2933, 1.0
        %v3075 = vadd.f32 %v2935, 1.0
        %v3076 = vadd.f32 %v2937, 1.0
        %v3077 = vadd.f32 %v2939, 1.0
        %v3078 = vadd.f32 %v2941, 1.0
        %v3079 = vadd.f32 %v2943, 1.0
        %v3080 = vadd.f32 %v2945, 1.0
        %v3081 = vadd.f32 %v2947, 1.0
        %v3082 = vadd.f32 %v2949, 1.0
        %v3083 = vadd.f32 %v2951, 1.0
        %v3084 = vadd.f32 %v2953, 1.0
        %v3085 = vadd.f32 %v2955, 1.0
        %v3086 = vadd.f32 %v2957, 1.0
        %v3087 = vadd.f32 %v2959, 1.0
        %v3088 = vadd.f32 %v2961, 1.0
        %v3089 = vadd.f32 %v2963, 1.0
        %v3090 = vadd.f32 %v2965, 1.0
        %v3091 = vadd.f32 %v2967, 1.0
        %v3092 = vadd.f32 %v2969, 1.0
        %v3093 = vadd.f32 %v2971, 1.0
        %v3094 = vadd.f32 %v2973, 1.0
        %v3095 = vadd.f32 %v2975, 1.0
        %v3096 = vadd.f32 %v2977, 1.0
        %v3097 = vadd.f32 %v2979, 1.0
        %v3098 = vadd.f32 %v2981, 1.0
        %v3099 = vadd.f32 %v2983, 1.0
        %v3100 = vadd.f32 %v2985, 1.0
        %v3101 = vadd.f32 %v2987, 1.0
        %v3102 = vrcp.pop %v2988
        %v3103 = vrcp.pop %v2989
        %v3104 = vrcp.pop %v2990
        %v3105 = vrcp.pop %v2991
        %v3106 = vrcp.pop %v2992
        %v3107 = vrcp.pop %v2993
        %v3108 = vrcp.pop %v2994
        %v3109 = vrcp.pop %v2995
        %v3110 = vrcp.pop %v2996
        %v3111 = vrcp.pop %v2997
        %v3112 = vrcp.pop %v2998
        %v3113 = vrcp.pop %v2999
        %v3114 = vrcp.pop %v3000
        %v3115 = vrcp.pop %v3001
        %v3116 = vrcp.pop %v3002
        %v3117 = vrcp.pop %v3003
        %v3118 = vrcp.pop %v3004
        %v3119 = vrcp.pop %v3005
        %v3120 = vrcp.pop %v3006
        %v3121 = vrcp.pop %v3007
        %v3122 = vrcp.pop %v3008
        %v3123 = vrcp.pop %v3009
        %v3124 = vrcp.pop %v3010
        %v3125 = vrcp.pop %v3011
        %v3126 = vrcp.pop %v3012
        %v3127 = vrcp.pop %v3013
        %v3128 = vrcp.pop %v3014
        %v3129 = vrcp.pop %v3015
        %v3130 = vrcp.pop %v3016
        %v3131 = vrcp.pop %v3017
        %v3132 = vrcp.pop %v3018
        %v3133 = vrcp.pop %v3019
        %v3134 = vrcp.pop %v3020
        %v3135 = vrcp.pop %v3021
        %v3136 = vrcp.pop %v3022
        %v3137 = vrcp.pop %v3023
        %v3138 = vrcp.pop %v3024
        %v3139 = vrcp.pop %v3025
        %v3140 = vrcp.pop %v3026
        %v3141 = vrcp.pop %v3027
        %v3142 = vrcp.pop %v3028
        %v3143 = vrcp.pop %v3029
        %v3144 = vrcp.pop %v3030
        %v3145 = vrcp.pop %v3031
        %v3146 = vrcp.pop %v3032
        %v3147 = vrcp.pop %v3033
        %v3148 = vrcp.pop %v3034
        %v3149 = vrcp.pop %v3035
        %v3150 = vrcp.pop %v3036
        %v3151 = vrcp.pop %v3037
        %v3152 = vrcp.pop %v3038
        %v3153 = vrcp.pop %v3039
        %v3154 = vrcp.pop %v3040
        %v3155 = vrcp.pop %v3041
        %v3156 = vrcp.pop %v3042
        %v3157 = vrcp.pop %v3043
        %v3158 = vrcp.pop %v3044
        %v3159 = vrcp.pop %v3045
        %v3160 = vrcp.pop %v3046
        %v3161 = vrcp.pop %v3047
        %v3162 = vrcp.pop %v3048
        %v3163 = vrcp.pop %v3049
        %v3164 = vrcp.pop %v3050
        %v3165 = vrcp.pop %v3051
        %v3166 = vrcp.pop %v3052
        %v3167 = vrcp.pop %v3053
        %v3168 = vrcp.pop %v3054
        %v3169 = vrcp.pop %v3055
        %v3170 = vrcp.pop %v3056
        %v3171 = vrcp.pop %v3057
        %v3172 = vrcp.pop %v3058
        %v3173 = vrcp.pop %v3059
        %v3174 = vrcp.pop %v3060
        %v3175 = vrcp.pop %v3061
        %v3176 = vrcp.pop %v3062
        %v3177 = vrcp.pop %v3063
        %v3178 = vrcp.pop %v3064
        %v3179 = vrcp.pop %v3065
        %v3180 = vrcp.pop %v3066
        %v3181 = vrcp.pop %v3067
        %v3182 = vrcp.pop %v3068
        %v3183 = vrcp.pop %v3069
        %v3184 = vrcp.pop %v3070
        %v3185 = vrcp.pop %v3071
        %v3186 = vrcp.pop %v3072
        %v3187 = vrcp.pop %v3073
        %v3188 = vrcp.pop %v3074
        %v3189 = vrcp.pop %v3075
        %v3190 = vrcp.pop %v3076
        %v3191 = vrcp.pop %v3077
        %v3192 = vrcp.pop %v3078
        %v3193 = vrcp.pop %v3079
        %v3194 = vrcp.pop %v3080
        %v3195 = vrcp.pop %v3081
        %v3196 = vrcp.pop %v3082
        %v3197 = vrcp.pop %v3083
        %v3198 = vrcp.pop %v3084
        %v3199 = vrcp.pop %v3085
        %v3200 = vrcp.pop %v3086
        %v3201 = vrcp.pop %v3087
        %v3202 = vrcp.pop %v3088
        %v3203 = vrcp.pop %v3089
        %v3204 = vrcp.pop %v3090
        %v3205 = vrcp.pop %v3091
        %v3206 = vrcp.pop %v3092
        %v3207 = vrcp.pop %v3093
        %v3208 = vrcp.pop %v3094
        %v3209 = vrcp.pop %v3095
        %v3210 = vrcp.pop %v3096
        %v3211 = vrcp.pop %v3097
        %v3212 = vrcp.pop %v3098
        %v3213 = vrcp.pop %v3099
        %v3214 = vrcp.pop %v3100
        %v3215 = vrcp.pop %v3101
        %v3216 = vpack.c.bf16 %v3105, %v3102
        %v3217 = vpack.c.bf16 %v3106, %v3103
        %v3218 = vpack.c.bf16 %v3107, %v3104
        %v3219 = vpack.c.bf16 %v3111, %v3108
        %v3220 = vpack.c.bf16 %v3112, %v3109
        %v3221 = vpack.c.bf16 %v3113, %v3110
        %v3222 = vpack.c.bf16 %v3117, %v3114
        %v3223 = vpack.c.bf16 %v3118, %v3115
        %v3224 = vpack.c.bf16 %v3119, %v3116
        %v3225 = vpack.c.bf16 %v3123, %v3120
        %v3226 = vpack.c.bf16 %v3124, %v3121
        %v3227 = vpack.c.bf16 %v3125, %v3122
        %v3228 = vpack.c.bf16 %v3129, %v3126
        %v3229 = vpack.c.bf16 %v3130, %v3127
        %v3230 = vpack.c.bf16 %v3131, %v3128
        %v3231 = vpack.c.bf16 %v3135, %v3132
        %v3232 = vpack.c.bf16 %v3136, %v3133
        %v3233 = vpack.c.bf16 %v3137, %v3134
        %v3234 = vpack.c.bf16 %v3141, %v3138
        %v3235 = vpack.c.bf16 %v3142, %v3139
        %v3236 = vpack.c.bf16 %v3143, %v3140
        %v3237 = vpack.c.bf16 %v3147, %v3144
        %v3238 = vpack.c.bf16 %v3148, %v3145
        %v3239 = vpack.c.bf16 %v3149, %v3146
        %v3240 = vpack.c.bf16 %v3153, %v3150
        %v3241 = vpack.c.bf16 %v3154, %v3151
        %v3242 = vpack.c.bf16 %v3155, %v3152
        %v3243 = vpack.c.bf16 %v3159, %v3156
        %v3244 = vpack.c.bf16 %v3160, %v3157
        %v3245 = vpack.c.bf16 %v3161, %v3158
        %v3246 = vpack.c.bf16 %v3165, %v3162
        %v3247 = vpack.c.bf16 %v3166, %v3163
        %v3248 = vpack.c.bf16 %v3167, %v3164
        %v3249 = vpack.c.bf16 %v3171, %v3168
        %v3250 = vpack.c.bf16 %v3172, %v3169
        %v3251 = vpack.c.bf16 %v3173, %v3170
        %v3252 = vpack.c.bf16 %v3177, %v3174
        %v3253 = vpack.c.bf16 %v3178, %v3175
        %v3254 = vpack.c.bf16 %v3179, %v3176
        %v3255 = vpack.c.bf16 %v3183, %v3180
        %v3256 = vpack.c.bf16 %v3184, %v3181
        %v3257 = vpack.c.bf16 %v3185, %v3182
        %v3258 = vpack.c.bf16 %v3189, %v3186
        %v3259 = vpack.c.bf16 %v3190, %v3187
        %v3260 = vpack.c.bf16 %v3191, %v3188
        %v3261 = vpack.c.bf16 %v3195, %v3192
        %v3262 = vpack.c.bf16 %v3196, %v3193
        %v3263 = vpack.c.bf16 %v3197, %v3194
        %v3264 = vpack.c.bf16 %v3201, %v3198
        %v3265 = vpack.c.bf16 %v3202, %v3199
        %v3266 = vpack.c.bf16 %v3203, %v3200
        %v3267 = vpack.c.bf16 %v3207, %v3204
        %v3268 = vpack.c.bf16 %v3208, %v3205
        %v3269 = vpack.c.bf16 %v3209, %v3206
        %v3270 = vpack.c.bf16 %v3213, %v3210
        %v3271 = vpack.c.bf16 %v3214, %v3211
        %v3272 = vpack.c.bf16 %v3215, %v3212
        %v3330 = vunpack.c.l.b16 %v3216
        %v3331 = vunpack.c.l.b16 %v3217
        %v3332 = vunpack.c.l.b16 %v3218
        %v3333 = vunpack.c.h.b16 %v3216
        %v3334 = vunpack.c.h.b16 %v3217
        %v3335 = vunpack.c.h.b16 %v3218
        %v3336 = vunpack.c.l.b16 %v3219
        %v3337 = vunpack.c.l.b16 %v3220
        %v3338 = vunpack.c.l.b16 %v3221
        %v3339 = vunpack.c.h.b16 %v3219
        %v3340 = vunpack.c.h.b16 %v3220
        %v3341 = vunpack.c.h.b16 %v3221
        %v3342 = vunpack.c.l.b16 %v3222
        %v3343 = vunpack.c.l.b16 %v3223
        %v3344 = vunpack.c.l.b16 %v3224
        %v3345 = vunpack.c.h.b16 %v3222
        %v3346 = vunpack.c.h.b16 %v3223
        %v3347 = vunpack.c.h.b16 %v3224
        %v3348 = vunpack.c.l.b16 %v3225
        %v3349 = vunpack.c.l.b16 %v3226
        %v3350 = vunpack.c.l.b16 %v3227
        %v3351 = vunpack.c.h.b16 %v3225
        %v3352 = vunpack.c.h.b16 %v3226
        %v3353 = vunpack.c.h.b16 %v3227
        %v3354 = vunpack.c.l.b16 %v3228
        %v3355 = vunpack.c.l.b16 %v3229
        %v3356 = vunpack.c.l.b16 %v3230
        %v3357 = vunpack.c.h.b16 %v3228
        %v3358 = vunpack.c.h.b16 %v3229
        %v3359 = vunpack.c.h.b16 %v3230
        %v3360 = vunpack.c.l.b16 %v3231
        %v3361 = vunpack.c.l.b16 %v3232
        %v3362 = vunpack.c.l.b16 %v3233
        %v3363 = vunpack.c.h.b16 %v3231
        %v3364 = vunpack.c.h.b16 %v3232
        %v3365 = vunpack.c.h.b16 %v3233
        %v3366 = vunpack.c.l.b16 %v3234
        %v3367 = vunpack.c.l.b16 %v3235
        %v3368 = vunpack.c.l.b16 %v3236
        %v3369 = vunpack.c.h.b16 %v3234
        %v3370 = vunpack.c.h.b16 %v3235
        %v3371 = vunpack.c.h.b16 %v3236
        %v3372 = vunpack.c.l.b16 %v3237
        %v3373 = vunpack.c.l.b16 %v3238
        %v3374 = vunpack.c.l.b16 %v3239
        %v3375 = vunpack.c.h.b16 %v3237
        %v3376 = vunpack.c.h.b16 %v3238
        %v3377 = vunpack.c.h.b16 %v3239
        %v3378 = vunpack.c.l.b16 %v3240
        %v3379 = vunpack.c.l.b16 %v3241
        %v3380 = vunpack.c.l.b16 %v3242
        %v3381 = vunpack.c.h.b16 %v3240
        %v3382 = vunpack.c.h.b16 %v3241
        %v3383 = vunpack.c.h.b16 %v3242
        %v3384 = vunpack.c.l.b16 %v3243
        %v3385 = vunpack.c.l.b16 %v3244
        %v3386 = vunpack.c.l.b16 %v3245
        %v3387 = vunpack.c.h.b16 %v3243
        %v3388 = vunpack.c.h.b16 %v3244
        %v3389 = vunpack.c.h.b16 %v3245
        %v3390 = vunpack.c.l.b16 %v3246
        %v3391 = vunpack.c.l.b16 %v3247
        %v3392 = vunpack.c.l.b16 %v3248
        %v3393 = vunpack.c.h.b16 %v3246
        %v3394 = vunpack.c.h.b16 %v3247
        %v3395 = vunpack.c.h.b16 %v3248
        %v3396 = vunpack.c.l.b16 %v3249
        %v3397 = vunpack.c.l.b16 %v3250
        %v3398 = vunpack.c.l.b16 %v3251
        %v3399 = vunpack.c.h.b16 %v3249
        %v3400 = vunpack.c.h.b16 %v3250
        %v3401 = vunpack.c.h.b16 %v3251
        %v3402 = vunpack.c.l.b16 %v3252
        %v3403 = vunpack.c.l.b16 %v3253
        %v3404 = vunpack.c.l.b16 %v3254
        %v3405 = vunpack.c.h.b16 %v3252
        %v3406 = vunpack.c.h.b16 %v3253
        %v3407 = vunpack.c.h.b16 %v3254
        %v3408 = vunpack.c.l.b16 %v3255
        %v3409 = vunpack.c.l.b16 %v3256
        %v3410 = vunpack.c.l.b16 %v3257
        %v3411 = vunpack.c.h.b16 %v3255
        %v3412 = vunpack.c.h.b16 %v3256
        %v3413 = vunpack.c.h.b16 %v3257
        %v3414 = vunpack.c.l.b16 %v3258
        %v3415 = vunpack.c.l.b16 %v3259
        %v3416 = vunpack.c.l.b16 %v3260
        %v3417 = vunpack.c.h.b16 %v3258
        %v3418 = vunpack.c.h.b16 %v3259
        %v3419 = vunpack.c.h.b16 %v3260
        %v3420 = vunpack.c.l.b16 %v3261
        %v3421 = vunpack.c.l.b16 %v3262
        %v3422 = vunpack.c.l.b16 %v3263
        %v3423 = vunpack.c.h.b16 %v3261
        %v3424 = vunpack.c.h.b16 %v3262
        %v3425 = vunpack.c.h.b16 %v3263
        %v3426 = vunpack.c.l.b16 %v3264
        %v3427 = vunpack.c.l.b16 %v3265
        %v3428 = vunpack.c.l.b16 %v3266
        %v3429 = vunpack.c.h.b16 %v3264
        %v3430 = vunpack.c.h.b16 %v3265
        %v3431 = vunpack.c.h.b16 %v3266
        %v3432 = vunpack.c.l.b16 %v3267
        %v3433 = vunpack.c.l.b16 %v3268
        %v3434 = vunpack.c.l.b16 %v3269
        %v3435 = vunpack.c.h.b16 %v3267
        %v3436 = vunpack.c.h.b16 %v3268
        %v3437 = vunpack.c.h.b16 %v3269
        %v3438 = vunpack.c.l.b16 %v3270
        %v3439 = vunpack.c.l.b16 %v3271
        %v3440 = vunpack.c.l.b16 %v3272
        %v3441 = vunpack.c.h.b16 %v3270
        %v3442 = vunpack.c.h.b16 %v3271
        %v3443 = vunpack.c.h.b16 %v3272
        %v3444 = vpack.c.b16 %v3331, %v3330
        %v3445 = vpack.c.b16 %v3332, %v3332
        %v3446 = vpack.c.b16 %v3334, %v3333
        %v3447 = vpack.c.b16 %v3335, %v3335
        %v3448 = vpack.c.b16 %v3337, %v3336
        %v3449 = vpack.c.b16 %v3338, %v3338
        %v3450 = vpack.c.b16 %v3340, %v3339
        %v3451 = vpack.c.b16 %v3341, %v3341
        %v3452 = vpack.c.b16 %v3343, %v3342
        %v3453 = vpack.c.b16 %v3344, %v3344
        %v3454 = vpack.c.b16 %v3346, %v3345
        %v3455 = vpack.c.b16 %v3347, %v3347
        %v3456 = vpack.c.b16 %v3349, %v3348
        %v3457 = vpack.c.b16 %v3350, %v3350
        %v3458 = vpack.c.b16 %v3352, %v3351
        %v3459 = vpack.c.b16 %v3353, %v3353
        %v3460 = vpack.c.b16 %v3355, %v3354
        %v3461 = vpack.c.b16 %v3356, %v3356
        %v3462 = vpack.c.b16 %v3358, %v3357
        %v3463 = vpack.c.b16 %v3359, %v3359
        %v3464 = vpack.c.b16 %v3361, %v3360
        %v3465 = vpack.c.b16 %v3362, %v3362
        %v3466 = vpack.c.b16 %v3364, %v3363
        %v3467 = vpack.c.b16 %v3365, %v3365
        %v3468 = vpack.c.b16 %v3367, %v3366
        %v3469 = vpack.c.b16 %v3368, %v3368
        %v3470 = vpack.c.b16 %v3370, %v3369
        %v3471 = vpack.c.b16 %v3371, %v3371
        %v3472 = vpack.c.b16 %v3373, %v3372
        %v3473 = vpack.c.b16 %v3374, %v3374
        %v3474 = vpack.c.b16 %v3376, %v3375
        %v3475 = vpack.c.b16 %v3377, %v3377
        %v3476 = vpack.c.b16 %v3379, %v3378
        %v3477 = vpack.c.b16 %v3380, %v3380
        %v3478 = vpack.c.b16 %v3382, %v3381
        %v3479 = vpack.c.b16 %v3383, %v3383
        %v3480 = vpack.c.b16 %v3385, %v3384
        %v3481 = vpack.c.b16 %v3386, %v3386
        %v3482 = vpack.c.b16 %v3388, %v3387
        %v3483 = vpack.c.b16 %v3389, %v3389
        %v3484 = vpack.c.b16 %v3391, %v3390
        %v3485 = vpack.c.b16 %v3392, %v3392
        %v3486 = vpack.c.b16 %v3394, %v3393
        %v3487 = vpack.c.b16 %v3395, %v3395
        %v3488 = vpack.c.b16 %v3397, %v3396
        %v3489 = vpack.c.b16 %v3398, %v3398
        %v3490 = vpack.c.b16 %v3400, %v3399
        %v3491 = vpack.c.b16 %v3401, %v3401
        %v3492 = vpack.c.b16 %v3403, %v3402
        %v3493 = vpack.c.b16 %v3404, %v3404
        %v3494 = vpack.c.b16 %v3406, %v3405
        %v3495 = vpack.c.b16 %v3407, %v3407
        %v3496 = vpack.c.b16 %v3409, %v3408
        %v3497 = vpack.c.b16 %v3410, %v3410
        %v3498 = vpack.c.b16 %v3412, %v3411
        %v3499 = vpack.c.b16 %v3413, %v3413
        %v3500 = vpack.c.b16 %v3415, %v3414
        %v3501 = vpack.c.b16 %v3416, %v3416
        %v3502 = vpack.c.b16 %v3418, %v3417
        %v3503 = vpack.c.b16 %v3419, %v3419
        %v3504 = vpack.c.b16 %v3421, %v3420
        %v3505 = vpack.c.b16 %v3422, %v3422
        %v3506 = vpack.c.b16 %v3424, %v3423
        %v3507 = vpack.c.b16 %v3425, %v3425
        %v3508 = vpack.c.b16 %v3427, %v3426
        %v3509 = vpack.c.b16 %v3428, %v3428
        %v3510 = vpack.c.b16 %v3430, %v3429
        %v3511 = vpack.c.b16 %v3431, %v3431
        %v3512 = vpack.c.b16 %v3433, %v3432
        %v3513 = vpack.c.b16 %v3434, %v3434
        %v3514 = vpack.c.b16 %v3436, %v3435
        %v3515 = vpack.c.b16 %v3437, %v3437
        %v3516 = vpack.c.b16 %v3439, %v3438
        %v3517 = vpack.c.b16 %v3440, %v3440
        %v3518 = vpack.c.b16 %v3442, %v3441
        %v3519 = vpack.c.b16 %v3443, %v3443
        %3596 = vst [vmem:[%s231] sm:$0xff] %v3444
        %3597 = vst.msk [vmem:[%s231 + $0x8] sm:$0xf] %vm827, %v3445
        %3598 = vst [vmem:[%s231 + $0xc] sm:$0xff] %v3446
        %3599 = vst.msk [vmem:[%s231 + $0x14] sm:$0xf] %vm827, %v3447
        %3600 = vst [vmem:[%s231 + $0x18] sm:$0xff] %v3448
        %3601 = vst.msk [vmem:[%s231 + $0x20] sm:$0xf] %vm827, %v3449
        %3602 = vst [vmem:[%s231 + $0x24] sm:$0xff] %v3450
        %3603 = vst.msk [vmem:[%s231 + $0x2c] sm:$0xf] %vm827, %v3451
        %3604 = vst [vmem:[%s231 + $0x30] sm:$0xff] %v3452
        %3605 = vst.msk [vmem:[%s231 + $0x38] sm:$0xf] %vm827, %v3453
        %3606 = vst [vmem:[%s231 + $0x3c] sm:$0xff] %v3454
        %3607 = vst.msk [vmem:[%s231 + $0x44] sm:$0xf] %vm827, %v3455
        %3608 = vst [vmem:[%s231 + $0x48] sm:$0xff] %v3456
        %3609 = vst.msk [vmem:[%s231 + $0x50] sm:$0xf] %vm827, %v3457
        %3610 = vst [vmem:[%s231 + $0x54] sm:$0xff] %v3458
        %3611 = vst.msk [vmem:[%s231 + $0x5c] sm:$0xf] %vm827, %v3459
        %3612 = vst [vmem:[%s231 + $0x60] sm:$0xff] %v3460
        %3613 = vst.msk [vmem:[%s231 + $0x68] sm:$0xf] %vm827, %v3461
        %3614 = vst [vmem:[%s231 + $0x6c] sm:$0xff] %v3462
        %3615 = vst.msk [vmem:[%s231 + $0x74] sm:$0xf] %vm827, %v3463
        %3616 = vst [vmem:[%s231 + $0x78] sm:$0xff] %v3464
        %3617 = vst.msk [vmem:[%s231 + $0x80] sm:$0xf] %vm827, %v3465
        %3618 = vst [vmem:[%s231 + $0x84] sm:$0xff] %v3466
        %3619 = vst.msk [vmem:[%s231 + $0x8c] sm:$0xf] %vm827, %v3467
        %3620 = vst [vmem:[%s231 + $0x90] sm:$0xff] %v3468
        %3621 = vst.msk [vmem:[%s231 + $0x98] sm:$0xf] %vm827, %v3469
        %3622 = vst [vmem:[%s231 + $0x9c] sm:$0xff] %v3470
        %3623 = vst.msk [vmem:[%s231 + $0xa4] sm:$0xf] %vm827, %v3471
        %3624 = vst [vmem:[%s231 + $0xa8] sm:$0xff] %v3472
        %3625 = vst.msk [vmem:[%s231 + $0xb0] sm:$0xf] %vm827, %v3473
        %3626 = vst [vmem:[%s231 + $0xb4] sm:$0xff] %v3474
        %3627 = vst.msk [vmem:[%s231 + $0xbc] sm:$0xf] %vm827, %v3475
        %3628 = vst [vmem:[%s231 + $0xc0] sm:$0xff] %v3476
        %3629 = vst.msk [vmem:[%s231 + $0xc8] sm:$0xf] %vm827, %v3477
        %3630 = vst [vmem:[%s231 + $0xcc] sm:$0xff] %v3478
        %3631 = vst.msk [vmem:[%s231 + $0xd4] sm:$0xf] %vm827, %v3479
        %3632 = vst [vmem:[%s231 + $0xd8] sm:$0xff] %v3480
        %3633 = vst.msk [vmem:[%s231 + $0xe0] sm:$0xf] %vm827, %v3481
        %3634 = vst [vmem:[%s231 + $0xe4] sm:$0xff] %v3482
        %3635 = vst.msk [vmem:[%s231 + $0xec] sm:$0xf] %vm827, %v3483
        %3636 = vst [vmem:[%s231 + $0xf0] sm:$0xff] %v3484
        %3637 = vst.msk [vmem:[%s231 + $0xf8] sm:$0xf] %vm827, %v3485
        %3638 = vst [vmem:[%s231 + $0xfc] sm:$0xff] %v3486
        %3639 = vst.msk [vmem:[%s231 + $0x104] sm:$0xf] %vm827, %v3487
        %3640 = vst [vmem:[%s231 + $0x108] sm:$0xff] %v3488
        %3641 = vst.msk [vmem:[%s231 + $0x110] sm:$0xf] %vm827, %v3489
        %3642 = vst [vmem:[%s231 + $0x114] sm:$0xff] %v3490
        %3643 = vst.msk [vmem:[%s231 + $0x11c] sm:$0xf] %vm827, %v3491
        %3644 = vst [vmem:[%s231 + $0x120] sm:$0xff] %v3492
        %3645 = vst.msk [vmem:[%s231 + $0x128] sm:$0xf] %vm827, %v3493
        %3646 = vst [vmem:[%s231 + $0x12c] sm:$0xff] %v3494
        %3647 = vst.msk [vmem:[%s231 + $0x134] sm:$0xf] %vm827, %v3495
        %3648 = vst [vmem:[%s231 + $0x138] sm:$0xff] %v3496
        %3649 = vst.msk [vmem:[%s231 + $0x140] sm:$0xf] %vm827, %v3497
        %3650 = vst [vmem:[%s231 + $0x144] sm:$0xff] %v3498
        %3651 = vst.msk [vmem:[%s231 + $0x14c] sm:$0xf] %vm827, %v3499
        %3652 = vst [vmem:[%s231 + $0x150] sm:$0xff] %v3500
        %3653 = vst.msk [vmem:[%s231 + $0x158] sm:$0xf] %vm827, %v3501
        %3654 = vst [vmem:[%s231 + $0x15c] sm:$0xff] %v3502
        %3655 = vst.msk [vmem:[%s231 + $0x164] sm:$0xf] %vm827, %v3503
        %3656 = vst [vmem:[%s231 + $0x168] sm:$0xff] %v3504
        %3657 = vst.msk [vmem:[%s231 + $0x170] sm:$0xf] %vm827, %v3505
        %3658 = vst [vmem:[%s231 + $0x174] sm:$0xff] %v3506
        %3659 = vst.msk [vmem:[%s231 + $0x17c] sm:$0xf] %vm827, %v3507
        %3660 = vst [vmem:[%s231 + $0x180] sm:$0xff] %v3508
        %3661 = vst.msk [vmem:[%s231 + $0x188] sm:$0xf] %vm827, %v3509
        %3662 = vst [vmem:[%s231 + $0x18c] sm:$0xff] %v3510
        %3663 = vst.msk [vmem:[%s231 + $0x194] sm:$0xf] %vm827, %v3511
        %3664 = vst [vmem:[%s231 + $0x198] sm:$0xff] %v3512
        %3665 = vst.msk [vmem:[%s231 + $0x1a0] sm:$0xf] %vm827, %v3513
        %3666 = vst [vmem:[%s231 + $0x1a4] sm:$0xff] %v3514
        %3667 = vst.msk [vmem:[%s231 + $0x1ac] sm:$0xf] %vm827, %v3515
        %3668 = vst [vmem:[%s231 + $0x1b0] sm:$0xff] %v3516
        %3669 = vst.msk [vmem:[%s231 + $0x1b8] sm:$0xf] %vm827, %v3517
        %3670 = vst [vmem:[%s231 + $0x1bc] sm:$0xff] %v3518
        %3671 = vst.msk [vmem:[%s231 + $0x1c4] sm:$0xf] %vm827, %v3519
        %s3672 = sand.u32 %s134, 1
        %s3673 = sand.u32 %s134, 1
        %s3674 = smul.addr %s3673, 456
        %s3675 = scalar_lea.vmem [#allocation3], %s3674
        // Predicated region
        $region41: #{tpu_custom_call.1} parent=39 // pred_check
          %p3676 = pneg %p144
        $region42: #{tpu_custom_call.1} parent=39 // pred_check_branch
          %3678 = sbr.rel (%p3676) target = $region44
        $region43: #{tpu_custom_call.1} parent=39 // pred_region
          %s3679 = smul.u32 38, %s16
          %s3680 = ssub.s32 75, %s3679
          %p3681 = scmp.lt.s32.totalorder %s3680, 38
          %s3682 = scalar_select %p3681, %s3680, 38
          %s3683 = smul.u32 64, %s3682
          %s3684 = smul.u32 %s3683, 3
          %p3685 = scmp.ne.s32.totalorder 0, %s3684
          %s3686 = smul.addr %s3679, 3
          %s3687 = smul.addr %s3686, 4
          %s3688 = scalar_lea.vmem %s5, %s3687
          // Predicated region
          $region45: #{tpu_custom_call.1} parent=43 // pred_check
            %p3689 = pneg %p3685
          $region46: #{tpu_custom_call.1} parent=43 // pred_check_branch
            %3691 = sbr.rel (%p3689) target = $region48
          $region47: #{tpu_custom_call.1} parent=43 // pred_region
            // Predicated region
            $region49: #{tpu_custom_call.1} parent=47 // pred_check
              _
            $region50: #{tpu_custom_call.1} parent=47 // pred_check_branch
              %3693 = sbr.rel (0) target = $region52
            $region51: #{tpu_custom_call.1} parent=47 // pred_region
              %s3694 = scalar_lea.vmem %s3675, 8 [#allocation3]
              %s3695 = scalar_lea.vmem %s3688, 8
              %s3696 = sdiv.u32.pop %s3682, 38
              %s3697 = srem.u32.pop %s3682, 38
              // While loop
              $region53: #{tpu_custom_call.1} parent=51 // loop_pre_header
                _
              $region54: #{tpu_custom_call.1} parent=51 // loop_header
                %s3699 = sphi 0, %s3701
                %p3700 = scmp.ge.s32.totalorder %s3699, %s3696
                %s3704 = sphi 0, %s3785
                %s3705 = sphi %s3675, %s3788
                %s3706 = sphi %s3688, %s3789
              $region55: #{tpu_custom_call.1} parent=51 // loop_header_branch
                %3703 = sbr.rel (%p3700) target = $region59
              $region56: #{tpu_custom_call.1} parent=51 // loop_body
                %v3707 = vld [vmem:[%s3705] sm:$0xff]
                %3708 = vst [vmem:[%s3706] sm:$0xff] %v3707
                %v3709 = vld [vmem:[%s3705 + $0xc] sm:$0xff]
                %3710 = vst [vmem:[%s3706 + $0xc] sm:$0xff] %v3709
                %v3711 = vld [vmem:[%s3705 + $0x18] sm:$0xff]
                %3712 = vst [vmem:[%s3706 + $0x18] sm:$0xff] %v3711
                %v3713 = vld [vmem:[%s3705 + $0x24] sm:$0xff]
                %3714 = vst [vmem:[%s3706 + $0x24] sm:$0xff] %v3713
                %v3715 = vld [vmem:[%s3705 + $0x30] sm:$0xff]
                %3716 = vst [vmem:[%s3706 + $0x30] sm:$0xff] %v3715
                %v3717 = vld [vmem:[%s3705 + $0x3c] sm:$0xff]
                %3718 = vst [vmem:[%s3706 + $0x3c] sm:$0xff] %v3717
                %v3719 = vld [vmem:[%s3705 + $0x48] sm:$0xff]
                %3720 = vst [vmem:[%s3706 + $0x48] sm:$0xff] %v3719
                %v3721 = vld [vmem:[%s3705 + $0x54] sm:$0xff]
                %3722 = vst [vmem:[%s3706 + $0x54] sm:$0xff] %v3721
                %v3723 = vld [vmem:[%s3705 + $0x60] sm:$0xff]
                %3724 = vst [vmem:[%s3706 + $0x60] sm:$0xff] %v3723
                %v3725 = vld [vmem:[%s3705 + $0x6c] sm:$0xff]
                %3726 = vst [vmem:[%s3706 + $0x6c] sm:$0xff] %v3725
                %v3727 = vld [vmem:[%s3705 + $0x78] sm:$0xff]
                %3728 = vst [vmem:[%s3706 + $0x78] sm:$0xff] %v3727
                %v3729 = vld [vmem:[%s3705 + $0x84] sm:$0xff]
                %3730 = vst [vmem:[%s3706 + $0x84] sm:$0xff] %v3729
                %v3731 = vld [vmem:[%s3705 + $0x90] sm:$0xff]
                %3732 = vst [vmem:[%s3706 + $0x90] sm:$0xff] %v3731
                %v3733 = vld [vmem:[%s3705 + $0x9c] sm:$0xff]
                %3734 = vst [vmem:[%s3706 + $0x9c] sm:$0xff] %v3733
                %v3735 = vld [vmem:[%s3705 + $0xa8] sm:$0xff]
                %3736 = vst [vmem:[%s3706 + $0xa8] sm:$0xff] %v3735
                %v3737 = vld [vmem:[%s3705 + $0xb4] sm:$0xff]
                %3738 = vst [vmem:[%s3706 + $0xb4] sm:$0xff] %v3737
                %v3739 = vld [vmem:[%s3705 + $0xc0] sm:$0xff]
                %3740 = vst [vmem:[%s3706 + $0xc0] sm:$0xff] %v3739
                %v3741 = vld [vmem:[%s3705 + $0xcc] sm:$0xff]
                %3742 = vst [vmem:[%s3706 + $0xcc] sm:$0xff] %v3741
                %v3743 = vld [vmem:[%s3705 + $0xd8] sm:$0xff]
                %3744 = vst [vmem:[%s3706 + $0xd8] sm:$0xff] %v3743
                %v3745 = vld [vmem:[%s3705 + $0xe4] sm:$0xff]
                %3746 = vst [vmem:[%s3706 + $0xe4] sm:$0xff] %v3745
                %v3747 = vld [vmem:[%s3705 + $0xf0] sm:$0xff]
                %3748 = vst [vmem:[%s3706 + $0xf0] sm:$0xff] %v3747
                %v3749 = vld [vmem:[%s3705 + $0xfc] sm:$0xff]
                %3750 = vst [vmem:[%s3706 + $0xfc] sm:$0xff] %v3749
                %v3751 = vld [vmem:[%s3705 + $0x108] sm:$0xff]
                %3752 = vst [vmem:[%s3706 + $0x108] sm:$0xff] %v3751
                %v3753 = vld [vmem:[%s3705 + $0x114] sm:$0xff]
                %3754 = vst [vmem:[%s3706 + $0x114] sm:$0xff] %v3753
                %v3755 = vld [vmem:[%s3705 + $0x120] sm:$0xff]
                %3756 = vst [vmem:[%s3706 + $0x120] sm:$0xff] %v3755
                %v3757 = vld [vmem:[%s3705 + $0x12c] sm:$0xff]
                %3758 = vst [vmem:[%s3706 + $0x12c] sm:$0xff] %v3757
                %v3759 = vld [vmem:[%s3705 + $0x138] sm:$0xff]
                %3760 = vst [vmem:[%s3706 + $0x138] sm:$0xff] %v3759
                %v3761 = vld [vmem:[%s3705 + $0x144] sm:$0xff]
                %3762 = vst [vmem:[%s3706 + $0x144] sm:$0xff] %v3761
                %v3763 = vld [vmem:[%s3705 + $0x150] sm:$0xff]
                %3764 = vst [vmem:[%s3706 + $0x150] sm:$0xff] %v3763
                %v3765 = vld [vmem:[%s3705 + $0x15c] sm:$0xff]
                %3766 = vst [vmem:[%s3706 + $0x15c] sm:$0xff] %v3765
                %v3767 = vld [vmem:[%s3705 + $0x168] sm:$0xff]
                %3768 = vst [vmem:[%s3706 + $0x168] sm:$0xff] %v3767
                %v3769 = vld [vmem:[%s3705 + $0x174] sm:$0xff]
                %3770 = vst [vmem:[%s3706 + $0x174] sm:$0xff] %v3769
                %v3771 = vld [vmem:[%s3705 + $0x180] sm:$0xff]
                %3772 = vst [vmem:[%s3706 + $0x180] sm:$0xff] %v3771
                %v3773 = vld [vmem:[%s3705 + $0x18c] sm:$0xff]
                %3774 = vst [vmem:[%s3706 + $0x18c] sm:$0xff] %v3773
                %v3775 = vld [vmem:[%s3705 + $0x198] sm:$0xff]
                %3776 = vst [vmem:[%s3706 + $0x198] sm:$0xff] %v3775
                %v3777 = vld [vmem:[%s3705 + $0x1a4] sm:$0xff]
                %3778 = vst [vmem:[%s3706 + $0x1a4] sm:$0xff] %v3777
                %v3779 = vld [vmem:[%s3705 + $0x1b0] sm:$0xff]
                %3780 = vst [vmem:[%s3706 + $0x1b0] sm:$0xff] %v3779
                %v3781 = vld [vmem:[%s3705 + $0x1bc] sm:$0xff]
                %3782 = vst [vmem:[%s3706 + $0x1bc] sm:$0xff] %v3781
                %s3783 = sadd.s32 1, %s3704
                %p3784 = scmp.ge.s32.totalorder %s3783, %s3696
                %s3785 = scalar_select %p3784, 0, %s3783
                %s3786 = smul.u32 %s3785, 456
                %s3787 = smul.u32 %s3785, 456
                %s3788 = scalar_lea.vmem %s3675, %s3786 [#allocation3]
                %s3789 = scalar_lea.vmem %s3688, %s3787
              $region57: #{tpu_custom_call.1} parent=51 // loop_footer
                %s3701 = sadd.s32 %s3699, 1
              $region58: #{tpu_custom_call.1} parent=51 // loop_footer_branch
                %3698 = sbr.rel target = $region54
              $region59: #{tpu_custom_call.1} parent=51 // loop_exit
                _
              %s3790 = sdiv.u32.pop %s3682, 38
              %s3791 = srem.u32.pop %s3682, 38
              %s3792 = smul.u32 %s3790, 38
              %s3793 = smul.u32 12, %s3792
              %s3794 = scalar_lea.vmem %s3675, %s3793 [#allocation3]
              %s3795 = smul.u32 12, %s3792
              %s3796 = scalar_lea.vmem %s3688, %s3795
              // While loop
              $region60: #{tpu_custom_call.1} parent=51 // loop_pre_header
                _
              $region61: #{tpu_custom_call.1} parent=51 // loop_header
                %s3798 = sphi 0, %s3800
                %p3799 = scmp.ge.s32.totalorder %s3798, %s3791
                %s3803 = sphi 0, %s3810
                %s3804 = sphi %s3794, %s3813
                %s3805 = sphi %s3796, %s3814
              $region62: #{tpu_custom_call.1} parent=51 // loop_header_branch
                %3802 = sbr.rel (%p3799) target = $region66
              $region63: #{tpu_custom_call.1} parent=51 // loop_body
                %v3806 = vld [vmem:[%s3804] sm:$0xff]
                %3807 = vst [vmem:[%s3805] sm:$0xff] %v3806
                %s3808 = sadd.s32 1, %s3803
                %p3809 = scmp.ge.s32.totalorder %s3808, %s3791
                %s3810 = scalar_select %p3809, 0, %s3808
                %s3811 = smul.u32 %s3810, 12
                %s3812 = smul.u32 %s3810, 12
                %s3813 = scalar_lea.vmem %s3794, %s3811 [#allocation3]
                %s3814 = scalar_lea.vmem %s3796, %s3812
              $region64: #{tpu_custom_call.1} parent=51 // loop_footer
                %s3800 = sadd.s32 %s3798, 1
              $region65: #{tpu_custom_call.1} parent=51 // loop_footer_branch
                %3797 = sbr.rel target = $region61
              $region66: #{tpu_custom_call.1} parent=51 // loop_exit
                _
              %s3816 = ssub.s32 16, 1
              %s3817 = sdiv.u32.pop %s3682, 38
              %s3818 = srem.u32.pop %s3682, 38
              // While loop
              $region67: #{tpu_custom_call.1} parent=51 // loop_pre_header
                _
              $region68: #{tpu_custom_call.1} parent=51 // loop_header
                %s3820 = sphi 0, %s3822
                %p3821 = scmp.ge.s32.totalorder %s3820, %s3817
                %s3825 = sphi 0, %s3906
                %s3826 = sphi %s3694, %s3909
                %s3827 = sphi %s3695, %s3910
              $region69: #{tpu_custom_call.1} parent=51 // loop_header_branch
                %3824 = sbr.rel (%p3821) target = $region73
              $region70: #{tpu_custom_call.1} parent=51 // loop_body
                %v3828 = vld [vmem:[%s3826] sm:%s3816]
                %3829 = vst [vmem:[%s3827] sm:%s3816] %v3828
                %v3830 = vld [vmem:[%s3826 + $0xc] sm:%s3816]
                %3831 = vst [vmem:[%s3827 + $0xc] sm:%s3816] %v3830
                %v3832 = vld [vmem:[%s3826 + $0x18] sm:%s3816]
                %3833 = vst [vmem:[%s3827 + $0x18] sm:%s3816] %v3832
                %v3834 = vld [vmem:[%s3826 + $0x24] sm:%s3816]
                %3835 = vst [vmem:[%s3827 + $0x24] sm:%s3816] %v3834
                %v3836 = vld [vmem:[%s3826 + $0x30] sm:%s3816]
                %3837 = vst [vmem:[%s3827 + $0x30] sm:%s3816] %v3836
                %v3838 = vld [vmem:[%s3826 + $0x3c] sm:%s3816]
                %3839 = vst [vmem:[%s3827 + $0x3c] sm:%s3816] %v3838
                %v3840 = vld [vmem:[%s3826 + $0x48] sm:%s3816]
                %3841 = vst [vmem:[%s3827 + $0x48] sm:%s3816] %v3840
                %v3842 = vld [vmem:[%s3826 + $0x54] sm:%s3816]
                %3843 = vst [vmem:[%s3827 + $0x54] sm:%s3816] %v3842
                %v3844 = vld [vmem:[%s3826 + $0x60] sm:%s3816]
                %3845 = vst [vmem:[%s3827 + $0x60] sm:%s3816] %v3844
                %v3846 = vld [vmem:[%s3826 + $0x6c] sm:%s3816]
                %3847 = vst [vmem:[%s3827 + $0x6c] sm:%s3816] %v3846
                %v3848 = vld [vmem:[%s3826 + $0x78] sm:%s3816]
                %3849 = vst [vmem:[%s3827 + $0x78] sm:%s3816] %v3848
                %v3850 = vld [vmem:[%s3826 + $0x84] sm:%s3816]
                %3851 = vst [vmem:[%s3827 + $0x84] sm:%s3816] %v3850
                %v3852 = vld [vmem:[%s3826 + $0x90] sm:%s3816]
                %3853 = vst [vmem:[%s3827 + $0x90] sm:%s3816] %v3852
                %v3854 = vld [vmem:[%s3826 + $0x9c] sm:%s3816]
                %3855 = vst [vmem:[%s3827 + $0x9c] sm:%s3816] %v3854
                %v3856 = vld [vmem:[%s3826 + $0xa8] sm:%s3816]
                %3857 = vst [vmem:[%s3827 + $0xa8] sm:%s3816] %v3856
                %v3858 = vld [vmem:[%s3826 + $0xb4] sm:%s3816]
                %3859 = vst [vmem:[%s3827 + $0xb4] sm:%s3816] %v3858
                %v3860 = vld [vmem:[%s3826 + $0xc0] sm:%s3816]
                %3861 = vst [vmem:[%s3827 + $0xc0] sm:%s3816] %v3860
                %v3862 = vld [vmem:[%s3826 + $0xcc] sm:%s3816]
                %3863 = vst [vmem:[%s3827 + $0xcc] sm:%s3816] %v3862
                %v3864 = vld [vmem:[%s3826 + $0xd8] sm:%s3816]
                %3865 = vst [vmem:[%s3827 + $0xd8] sm:%s3816] %v3864
                %v3866 = vld [vmem:[%s3826 + $0xe4] sm:%s3816]
                %3867 = vst [vmem:[%s3827 + $0xe4] sm:%s3816] %v3866
                %v3868 = vld [vmem:[%s3826 + $0xf0] sm:%s3816]
                %3869 = vst [vmem:[%s3827 + $0xf0] sm:%s3816] %v3868
                %v3870 = vld [vmem:[%s3826 + $0xfc] sm:%s3816]
                %3871 = vst [vmem:[%s3827 + $0xfc] sm:%s3816] %v3870
                %v3872 = vld [vmem:[%s3826 + $0x108] sm:%s3816]
                %3873 = vst [vmem:[%s3827 + $0x108] sm:%s3816] %v3872
                %v3874 = vld [vmem:[%s3826 + $0x114] sm:%s3816]
                %3875 = vst [vmem:[%s3827 + $0x114] sm:%s3816] %v3874
                %v3876 = vld [vmem:[%s3826 + $0x120] sm:%s3816]
                %3877 = vst [vmem:[%s3827 + $0x120] sm:%s3816] %v3876
                %v3878 = vld [vmem:[%s3826 + $0x12c] sm:%s3816]
                %3879 = vst [vmem:[%s3827 + $0x12c] sm:%s3816] %v3878
                %v3880 = vld [vmem:[%s3826 + $0x138] sm:%s3816]
                %3881 = vst [vmem:[%s3827 + $0x138] sm:%s3816] %v3880
                %v3882 = vld [vmem:[%s3826 + $0x144] sm:%s3816]
                %3883 = vst [vmem:[%s3827 + $0x144] sm:%s3816] %v3882
                %v3884 = vld [vmem:[%s3826 + $0x150] sm:%s3816]
                %3885 = vst [vmem:[%s3827 + $0x150] sm:%s3816] %v3884
                %v3886 = vld [vmem:[%s3826 + $0x15c] sm:%s3816]
                %3887 = vst [vmem:[%s3827 + $0x15c] sm:%s3816] %v3886
                %v3888 = vld [vmem:[%s3826 + $0x168] sm:%s3816]
                %3889 = vst [vmem:[%s3827 + $0x168] sm:%s3816] %v3888
                %v3890 = vld [vmem:[%s3826 + $0x174] sm:%s3816]
                %3891 = vst [vmem:[%s3827 + $0x174] sm:%s3816] %v3890
                %v3892 = vld [vmem:[%s3826 + $0x180] sm:%s3816]
                %3893 = vst [vmem:[%s3827 + $0x180] sm:%s3816] %v3892
                %v3894 = vld [vmem:[%s3826 + $0x18c] sm:%s3816]
                %3895 = vst [vmem:[%s3827 + $0x18c] sm:%s3816] %v3894
                %v3896 = vld [vmem:[%s3826 + $0x198] sm:%s3816]
                %3897 = vst [vmem:[%s3827 + $0x198] sm:%s3816] %v3896
                %v3898 = vld [vmem:[%s3826 + $0x1a4] sm:%s3816]
                %3899 = vst [vmem:[%s3827 + $0x1a4] sm:%s3816] %v3898
                %v3900 = vld [vmem:[%s3826 + $0x1b0] sm:%s3816]
                %3901 = vst [vmem:[%s3827 + $0x1b0] sm:%s3816] %v3900
                %v3902 = vld [vmem:[%s3826 + $0x1bc] sm:%s3816]
                %3903 = vst [vmem:[%s3827 + $0x1bc] sm:%s3816] %v3902
                %s3904 = sadd.s32 1, %s3825
                %p3905 = scmp.ge.s32.totalorder %s3904, %s3817
                %s3906 = scalar_select %p3905, 0, %s3904
                %s3907 = smul.u32 %s3906, 456
                %s3908 = smul.u32 %s3906, 456
                %s3909 = scalar_lea.vmem %s3694, %s3907 [#allocation3]
                %s3910 = scalar_lea.vmem %s3695, %s3908
              $region71: #{tpu_custom_call.1} parent=51 // loop_footer
                %s3822 = sadd.s32 %s3820, 1
              $region72: #{tpu_custom_call.1} parent=51 // loop_footer_branch
                %3819 = sbr.rel target = $region68
              $region73: #{tpu_custom_call.1} parent=51 // loop_exit
                _
              %s3911 = sdiv.u32.pop %s3682, 38
              %s3912 = srem.u32.pop %s3682, 38
              %s3913 = smul.u32 %s3911, 38
              %s3914 = smul.u32 12, %s3913
              %s3915 = scalar_lea.vmem %s3694, %s3914 [#allocation3]
              %s3916 = smul.u32 12, %s3913
              %s3917 = scalar_lea.vmem %s3695, %s3916
              // While loop
              $region74: #{tpu_custom_call.1} parent=51 // loop_pre_header
                _
              $region75: #{tpu_custom_call.1} parent=51 // loop_header
                %s3919 = sphi 0, %s3921
                %p3920 = scmp.ge.s32.totalorder %s3919, %s3912
                %s3924 = sphi 0, %s3931
                %s3925 = sphi %s3915, %s3934
                %s3926 = sphi %s3917, %s3935
              $region76: #{tpu_custom_call.1} parent=51 // loop_header_branch
                %3923 = sbr.rel (%p3920) target = $region80
              $region77: #{tpu_custom_call.1} parent=51 // loop_body
                %v3927 = vld [vmem:[%s3925] sm:%s3816]
                %3928 = vst [vmem:[%s3926] sm:%s3816] %v3927
                %s3929 = sadd.s32 1, %s3924
                %p3930 = scmp.ge.s32.totalorder %s3929, %s3912
                %s3931 = scalar_select %p3930, 0, %s3929
                %s3932 = smul.u32 %s3931, 12
                %s3933 = smul.u32 %s3931, 12
                %s3934 = scalar_lea.vmem %s3915, %s3932 [#allocation3]
                %s3935 = scalar_lea.vmem %s3917, %s3933
              $region78: #{tpu_custom_call.1} parent=51 // loop_footer
                %s3921 = sadd.s32 %s3919, 1
              $region79: #{tpu_custom_call.1} parent=51 // loop_footer_branch
                %3918 = sbr.rel target = $region75
              $region80: #{tpu_custom_call.1} parent=51 // loop_exit
                _
            $region52: #{tpu_custom_call.1} parent=47 // pred_fallthru
              _
          $region48: #{tpu_custom_call.1} parent=43 // pred_fallthru
            _
          %3936 = vnop
        $region44: #{tpu_custom_call.1} parent=39 // pred_fallthru
          _
      $region40: #{tpu_custom_call.1} parent=5 // pred_fallthru
        _
      %p3937 = scmp.le.s32.totalorder 2, %s11
      // Predicated region
      $region81: #{tpu_custom_call.1} parent=5 // pred_check
        %p3938 = pneg %p3937
      $region82: #{tpu_custom_call.1} parent=5 // pred_check_branch
        %3940 = sbr.rel (%p3938) target = $region84
      $region83: #{tpu_custom_call.1} parent=5 // pred_region
        %s3941 = ssub.s32 %s11, 2
        // Predicated region
        $region85: #{tpu_custom_call.1} parent=83 // pred_check
          %p3942 = pneg %p150
        $region86: #{tpu_custom_call.1} parent=83 // pred_check_branch
          %3944 = sbr.rel (%p3942) target = $region88
        $region87: #{tpu_custom_call.1} parent=83 // pred_region
          %s3945 = sand.u32 %s135, 1
          %s3946 = sand.u32 %s135, 1
          %s3947 = smul.addr %s3946, 456
          %s3948 = scalar_lea.vmem [#allocation3], %s3947
        $region88: #{tpu_custom_call.1} parent=83 // pred_fallthru
          _
      $region84: #{tpu_custom_call.1} parent=5 // pred_fallthru
        _
    $region6: #{tpu_custom_call.1} parent=1 // loop_footer
      %s15 = sadd.s32 1, %s11
    $region7: #{tpu_custom_call.1} parent=1 // loop_footer_branch
      %10 = sbr.rel target = $region3
    $region8: #{tpu_custom_call.1} parent=1 // loop_exit
      _

</llo_original>
